<compile_context>
chip_gen: v7x
topology: tpu7x:2x2x1
jax: 0.10.0
libtpu: 0.0.40
codegen_flags: <defaults>
</compile_context>

<pallas_src>
import numpy as np
import jax
import jax.numpy as jnp
from jax import lax
from jax.experimental import pallas as pl
from jax.experimental.pallas import tpu as pltpu


def _upsample_conv_kernel(xp_ref, wim_ref, w_ref, b_ref, out_ref):
    # xp_ref : (1, H+2, W+2, C)   replicate-padded input, one batch element
    # wim_ref: (2, 9*C, 2*Co)     folded weights  [a, (dy,dx,c), (b,co)]
    # w_ref  : (3, 3, C, Co)      original conv weights (boundary fixups)
    # b_ref  : (1, 2*Co)          bias duplicated over the w output phase
    # out_ref: (1, H, 2, W, 2*Co) out[0, i, a, j, b*Co+co] = y[2i+a, 2j+b, co]
    H = xp_ref.shape[1] - 2
    W = xp_ref.shape[2] - 2
    Co2 = out_ref.shape[4]
    Co = Co2 // 2
    f32 = jnp.float32

    def mm(a, b):
        return jnp.dot(a, b, preferred_element_type=f32)

    # ---- im2col at ORIGINAL resolution (shared by both output row phases) ---
    taps = [xp_ref[0, dy:dy + H, dx:dx + W, :]
            for dy in range(3) for dx in range(3)]
    patches = jnp.concatenate(taps, axis=-1).reshape(H * W, 9 * w_ref.shape[2])

    bias = b_ref[...].astype(f32)                      # (1, 2*Co)

    # 1-D 2x bilinear upsample (even/odd phases) of a clamped boundary line
    def up2(center, prev, nxt):
        return 0.75 * center + 0.25 * prev, 0.75 * center + 0.25 * nxt

    def shift_m1(e, o):      # o[k-1], k=0 -> e[0]  (value the fold used at -1)
        return jnp.concatenate([e[:1], o[:-1]], axis=0)

    def shift_p1(e, o):      # e[k+1], k=last -> o[last]
        return jnp.concatenate([e[1:], o[-1:]], axis=0)

    # boundary columns j=0 / j=W-1 of x, upsampled along H with clamping
    l_e, l_o = up2(xp_ref[0, 1:H + 1, 1, :], xp_ref[0, 0:H, 1, :],
                   xp_ref[0, 2:H + 2, 1, :])
    r_e, r_o = up2(xp_ref[0, 1:H + 1, W, :], xp_ref[0, 0:H, W, :],
                   xp_ref[0, 2:H + 2, W, :])

    for a in range(2):
        # -- main folded conv: one (H*W, 9C) @ (9C, 2Co) matmul per row phase --
        y = mm(patches, wim_ref[a]) + bias             # (H*W, 2Co) f32
        y = y.reshape(H, W, Co2)
        out_ref[0, :, a, :, :] = y.astype(out_ref.dtype)

        # -- fixups for the conv zero pad at output columns q=0 and q=2W-1 --
        if a == 0:
            lcol = (mm(shift_m1(l_e, l_o), w_ref[0, 0]) + mm(l_e, w_ref[1, 0])
                    + mm(l_o, w_ref[2, 0]))
            rcol = (mm(shift_m1(r_e, r_o), w_ref[0, 2]) + mm(r_e, w_ref[1, 2])
                    + mm(r_o, w_ref[2, 2]))
        else:
            lcol = (mm(l_e, w_ref[0, 0]) + mm(l_o, w_ref[1, 0])
                    + mm(shift_p1(l_e, l_o), w_ref[2, 0]))
            rcol = (mm(r_e, w_ref[0, 2]) + mm(r_o, w_ref[1, 2])
                    + mm(shift_p1(r_e, r_o), w_ref[2, 2]))
        cur = out_ref[0, :, a, 0, 0:Co].astype(f32)
        out_ref[0, :, a, 0, 0:Co] = (cur - lcol).astype(out_ref.dtype)
        cur = out_ref[0, :, a, W - 1, Co:Co2].astype(f32)
        out_ref[0, :, a, W - 1, Co:Co2] = (cur - rcol).astype(out_ref.dtype)

        # -- fixups for the conv zero pad at output rows p=0 and p=2H-1 --
        if a == 0:
            t_e, t_o = up2(xp_ref[0, 1, 1:W + 1, :], xp_ref[0, 1, 0:W, :],
                           xp_ref[0, 1, 2:W + 2, :])
            row_b0 = (mm(shift_m1(t_e, t_o), w_ref[0, 0]) + mm(t_e, w_ref[0, 1])
                      + mm(t_o, w_ref[0, 2]))
            row_b1 = (mm(t_e, w_ref[0, 0]) + mm(t_o, w_ref[0, 1])
                      + mm(shift_p1(t_e, t_o), w_ref[0, 2]))
            row = jnp.concatenate([row_b0, row_b1], axis=-1)       # (W, 2Co)
            cur = out_ref[0, 0, 0, :, :].astype(f32)
            out_ref[0, 0, 0, :, :] = (cur - row).astype(out_ref.dtype)
            # corner add-backs (double-subtracted by row + column fixups)
            c00 = mm(xp_ref[0, 1:2, 1, :], w_ref[0, 0])            # (1, Co)
            c01 = mm(xp_ref[0, 1:2, W, :], w_ref[0, 2])
            cur = out_ref[0, 0, 0, 0:1, 0:Co].astype(f32)
            out_ref[0, 0, 0, 0:1, 0:Co] = (cur + c00).astype(out_ref.dtype)
            cur = out_ref[0, 0, 0, W - 1:W, Co:Co2].astype(f32)
            out_ref[0, 0, 0, W - 1:W, Co:Co2] = (cur + c01).astype(out_ref.dtype)
        else:
            b_e, b_o = up2(xp_ref[0, H, 1:W + 1, :], xp_ref[0, H, 0:W, :],
                           xp_ref[0, H, 2:W + 2, :])
            row_b0 = (mm(shift_m1(b_e, b_o), w_ref[2, 0]) + mm(b_e, w_ref[2, 1])
                      + mm(b_o, w_ref[2, 2]))
            row_b1 = (mm(b_e, w_ref[2, 0]) + mm(b_o, w_ref[2, 1])
                      + mm(shift_p1(b_e, b_o), w_ref[2, 2]))
            row = jnp.concatenate([row_b0, row_b1], axis=-1)
            cur = out_ref[0, H - 1, 1, :, :].astype(f32)
            out_ref[0, H - 1, 1, :, :] = (cur - row).astype(out_ref.dtype)
            c10 = mm(xp_ref[0, H:H + 1, 1, :], w_ref[2, 0])
            c11 = mm(xp_ref[0, H:H + 1, W, :], w_ref[2, 2])
            cur = out_ref[0, H - 1, 1, 0:1, 0:Co].astype(f32)
            out_ref[0, H - 1, 1, 0:1, 0:Co] = (cur + c10).astype(out_ref.dtype)
            cur = out_ref[0, H - 1, 1, W - 1:W, Co:Co2].astype(f32)
            out_ref[0, H - 1, 1, W - 1:W, Co:Co2] = (cur + c11).astype(out_ref.dtype)


def upsample_conv(x_nchw, weight, bias):
    """Equivalent of UpSample.forward: bilinear 2x upsample + Conv2d(3x3, 'same').

    x_nchw: (N, Cin, H, W); weight: (Cout, Cin, 3, 3) [OIHW]; bias: (Cout,)
    returns: (N, Cout, 2H, 2W)
    """
    N, C, H, W = x_nchw.shape
    Co = weight.shape[0]

    x = jnp.transpose(x_nchw, (0, 2, 3, 1))                        # NHWC
    # replicate (edge) pad encodes the bilinear edge clamp, so the kernel can
    # use one position-independent folded stencil everywhere.
    xp = jnp.pad(x, ((0, 0), (1, 1), (1, 1), (0, 0)), mode='edge')

    wk = jnp.transpose(weight, (2, 3, 1, 0)).astype(jnp.float32)   # (3,3,C,Co)

    # A[a, ky, d]: coefficient of x[i+d-1] inside upsampled sample u[2i+a+ky-1]
    # (scale=2, align_corners=False).
    A = jnp.array([[[0.75, 0.25, 0.00],
                    [0.25, 0.75, 0.00],
                    [0.00, 0.75, 0.25]],
                   [[0.25, 0.75, 0.00],
                    [0.00, 0.75, 0.25],
                    [0.00, 0.25, 0.75]]], dtype=jnp.float32)
    # Weff[a, dy, dx, c, b, co] = sum_{ky,kx} A[a,ky,dy] A[b,kx,dx] W[ky,kx,c,co]
    weff = jnp.einsum('ayd,bxe,yxco->adecbo', A, A, wk)
    wim = weff.reshape(2, 9 * C, 2 * Co).astype(x.dtype)

    b2 = jnp.concatenate([bias, bias]).reshape(1, 2 * Co).astype(jnp.float32)

    out = pl.pallas_call(
        _upsample_conv_kernel,
        out_shape=jax.ShapeDtypeStruct((N, H, 2, W, 2 * Co), x.dtype),
        grid_spec=pltpu.PrefetchScalarGridSpec(
            num_scalar_prefetch=0,
            grid=(N,),
            in_specs=[
                pl.BlockSpec((1, H + 2, W + 2, C), lambda n: (n, 0, 0, 0)),
                pl.BlockSpec((2, 9 * C, 2 * Co), lambda n: (0, 0, 0)),
                pl.BlockSpec((3, 3, C, Co), lambda n: (0, 0, 0, 0)),
                pl.BlockSpec((1, 2 * Co), lambda n: (0, 0)),
            ],
            out_specs=pl.BlockSpec((1, H, 2, W, 2 * Co),
                                   lambda n: (n, 0, 0, 0, 0)),
        ),
        compiler_params=pltpu.CompilerParams(
            dimension_semantics=("parallel",)),
    )(xp, wim, wk, b2)

    # phase interleave is a pure reshape (free); only NCHW transpose left to XLA
    out = out.reshape(N, 2 * H, 2 * W, Co)
    return jnp.transpose(out, (0, 3, 1, 2))


# ------------------- pure-JAX reference (PyTorch semantics) -------------------
def _ref_upsample_bilinear_2x(x):                                  # (N, C, H, W)
    N, C, H, W = x.shape

    def idx_weights(n_in, n_out):
        src = (jnp.arange(n_out, dtype=jnp.float32) + 0.5) / 2.0 - 0.5
        src = jnp.maximum(src, 0.0)                  # align_corners=False clamp
        i0 = jnp.floor(src).astype(jnp.int32)
        i1 = jnp.minimum(i0 + 1, n_in - 1)
        w1 = src - i0.astype(jnp.float32)
        return i0, i1, w1

    y0, y1, wy = idx_weights(H, 2 * H)
    x0, x1, wx = idx_weights(W, 2 * W)
    top = (x[:, :, y0, :] * (1.0 - wy)[None, None, :, None]
           + x[:, :, y1, :] * wy[None, None, :, None])
    out = top[:, :, :, x0] * (1.0 - wx) + top[:, :, :, x1] * wx
    return out


def _ref_forward(x, weight, bias):
    up = _ref_upsample_bilinear_2x(x)
    out = lax.conv_general_dilated(
        up, weight, window_strides=(1, 1), padding='SAME',
        dimension_numbers=('NCHW', 'OIHW', 'NCHW'))
    return out + bias[None, :, None, None]


if __name__ == "__main__":
    key = jax.random.PRNGKey(0)
    k1, k2, k3 = jax.random.split(key, 3)

    N, Cin, Cout, H, W = 2, 4, 8, 16, 16
    x = jax.random.normal(k1, (N, Cin, H, W), jnp.float32)
    weight = jax.random.normal(k2, (Cout, Cin, 3, 3), jnp.float32) * 0.1
    bias = jax.random.normal(k3, (Cout,), jnp.float32) * 0.1

    out = jax.jit(upsample_conv)(x, weight, bias)
    jax.block_until_ready(out)

    assert out.shape == (N, Cout, 2 * H, 2 * W), out.shape
    ref = _ref_forward(x, weight, bias)
    np.testing.assert_allclose(np.asarray(out), np.asarray(ref),
                               atol=1e-4, rtol=1e-4)
    print("KERNEL_OK")
</pallas_src>

<mosaic_0001>
module attributes {stable_mosaic.version = 11 : i64} {
  func.func @_upsample_conv_kernel(%arg0: i32, %arg1: memref<1x18x18x4xf32, #tpu.memory_space<vmem>>, %arg2: memref<2x36x16xf32, #tpu.memory_space<vmem>>, %arg3: memref<3x3x4x8xf32, #tpu.memory_space<vmem>>, %arg4: memref<1x16xf32, #tpu.memory_space<vmem>>, %arg5: memref<1x16x2x16x16xf32, #tpu.memory_space<vmem>>) attributes {dimension_semantics = [#tpu.dimension_semantics<parallel>], iteration_bounds = array<i64: 2>, scalar_prefetch = 0 : i64, scratch_operands = 0 : i64, tpu.core_type = #tpu.core_type<tc>, window_params = [{transform_indices = @transform_0, window_bounds = array<i64: 1, 18, 18, 4>}, {pipeline_mode = #tpu.pipeline_mode<synchronous>, transform_indices = @transform_1, window_bounds = array<i64: 2, 36, 16>}, {pipeline_mode = #tpu.pipeline_mode<synchronous>, transform_indices = @transform_2, window_bounds = array<i64: 3, 3, 4, 8>}, {pipeline_mode = #tpu.pipeline_mode<synchronous>, transform_indices = @transform_3, window_bounds = array<i64: 1, 16>}, {transform_indices = @transform_4, window_bounds = array<i64: 1, 16, 2, 16, 16>}]} {
    %c0 = arith.constant 0 : index
    %c0_0 = arith.constant 0 : index
    %c0_1 = arith.constant 0 : index
    %c0_2 = arith.constant 0 : index
    %0 = vector.load %arg1[%c0, %c0_0, %c0_1, %c0_2] : memref<1x18x18x4xf32, #tpu.memory_space<vmem>>, vector<1x16x16x4xf32>
    %1 = vector.shape_cast %0 : vector<1x16x16x4xf32> to vector<16x16x4xf32>
    %c0_3 = arith.constant 0 : index
    %c0_4 = arith.constant 0 : index
    %c1 = arith.constant 1 : index
    %c0_5 = arith.constant 0 : index
    %2 = vector.load %arg1[%c0_3, %c0_4, %c1, %c0_5] : memref<1x18x18x4xf32, #tpu.memory_space<vmem>>, vector<1x16x16x4xf32>
    %3 = vector.shape_cast %2 : vector<1x16x16x4xf32> to vector<16x16x4xf32>
    %c0_6 = arith.constant 0 : index
    %c0_7 = arith.constant 0 : index
    %c2 = arith.constant 2 : index
    %c0_8 = arith.constant 0 : index
    %4 = vector.load %arg1[%c0_6, %c0_7, %c2, %c0_8] : memref<1x18x18x4xf32, #tpu.memory_space<vmem>>, vector<1x16x16x4xf32>
    %5 = vector.shape_cast %4 : vector<1x16x16x4xf32> to vector<16x16x4xf32>
    %c0_9 = arith.constant 0 : index
    %c1_10 = arith.constant 1 : index
    %c0_11 = arith.constant 0 : index
    %c0_12 = arith.constant 0 : index
    %6 = vector.load %arg1[%c0_9, %c1_10, %c0_11, %c0_12] : memref<1x18x18x4xf32, #tpu.memory_space<vmem>>, vector<1x16x16x4xf32>
    %7 = vector.shape_cast %6 : vector<1x16x16x4xf32> to vector<16x16x4xf32>
    %c0_13 = arith.constant 0 : index
    %c1_14 = arith.constant 1 : index
    %c1_15 = arith.constant 1 : index
    %c0_16 = arith.constant 0 : index
    %8 = vector.load %arg1[%c0_13, %c1_14, %c1_15, %c0_16] : memref<1x18x18x4xf32, #tpu.memory_space<vmem>>, vector<1x16x16x4xf32>
    %9 = vector.shape_cast %8 : vector<1x16x16x4xf32> to vector<16x16x4xf32>
    %c0_17 = arith.constant 0 : index
    %c1_18 = arith.constant 1 : index
    %c2_19 = arith.constant 2 : index
    %c0_20 = arith.constant 0 : index
    %10 = vector.load %arg1[%c0_17, %c1_18, %c2_19, %c0_20] : memref<1x18x18x4xf32, #tpu.memory_space<vmem>>, vector<1x16x16x4xf32>
    %11 = vector.shape_cast %10 : vector<1x16x16x4xf32> to vector<16x16x4xf32>
    %c0_21 = arith.constant 0 : index
    %c2_22 = arith.constant 2 : index
    %c0_23 = arith.constant 0 : index
    %c0_24 = arith.constant 0 : index
    %12 = vector.load %arg1[%c0_21, %c2_22, %c0_23, %c0_24] : memref<1x18x18x4xf32, #tpu.memory_space<vmem>>, vector<1x16x16x4xf32>
    %13 = vector.shape_cast %12 : vector<1x16x16x4xf32> to vector<16x16x4xf32>
    %c0_25 = arith.constant 0 : index
    %c2_26 = arith.constant 2 : index
    %c1_27 = arith.constant 1 : index
    %c0_28 = arith.constant 0 : index
    %14 = vector.load %arg1[%c0_25, %c2_26, %c1_27, %c0_28] : memref<1x18x18x4xf32, #tpu.memory_space<vmem>>, vector<1x16x16x4xf32>
    %15 = vector.shape_cast %14 : vector<1x16x16x4xf32> to vector<16x16x4xf32>
    %c0_29 = arith.constant 0 : index
    %c2_30 = arith.constant 2 : index
    %c2_31 = arith.constant 2 : index
    %c0_32 = arith.constant 0 : index
    %16 = vector.load %arg1[%c0_29, %c2_30, %c2_31, %c0_32] : memref<1x18x18x4xf32, #tpu.memory_space<vmem>>, vector<1x16x16x4xf32>
    %17 = vector.shape_cast %16 : vector<1x16x16x4xf32> to vector<16x16x4xf32>
    %18 = tpu.concatenate %1, %3, %5, %7, %9, %11, %13, %15, %17 in 2 : vector<16x16x4xf32>, vector<16x16x4xf32>, vector<16x16x4xf32>, vector<16x16x4xf32>, vector<16x16x4xf32>, vector<16x16x4xf32>, vector<16x16x4xf32>, vector<16x16x4xf32>, vector<16x16x4xf32> -> vector<16x16x36xf32>
    %19 = vector.shape_cast %18 : vector<16x16x36xf32> to vector<256x36xf32>
    %c0_33 = arith.constant 0 : index
    %c0_34 = arith.constant 0 : index
    %20 = vector.load %arg4[%c0_33, %c0_34] : memref<1x16xf32, #tpu.memory_space<vmem>>, vector<1x16xf32>
    %c0_35 = arith.constant 0 : index
    %c1_36 = arith.constant 1 : index
    %c1_37 = arith.constant 1 : index
    %c0_38 = arith.constant 0 : index
    %21 = vector.load %arg1[%c0_35, %c1_36, %c1_37, %c0_38] : memref<1x18x18x4xf32, #tpu.memory_space<vmem>>, vector<1x16x1x4xf32>
    %22 = vector.shape_cast %21 : vector<1x16x1x4xf32> to vector<16x4xf32>
    %c0_39 = arith.constant 0 : index
    %c0_40 = arith.constant 0 : index
    %c1_41 = arith.constant 1 : index
    %c0_42 = arith.constant 0 : index
    %23 = vector.load %arg1[%c0_39, %c0_40, %c1_41, %c0_42] : memref<1x18x18x4xf32, #tpu.memory_space<vmem>>, vector<1x16x1x4xf32>
    %24 = vector.shape_cast %23 : vector<1x16x1x4xf32> to vector<16x4xf32>
    %c0_43 = arith.constant 0 : index
    %c2_44 = arith.constant 2 : index
    %c1_45 = arith.constant 1 : index
    %c0_46 = arith.constant 0 : index
    %25 = vector.load %arg1[%c0_43, %c2_44, %c1_45, %c0_46] : memref<1x18x18x4xf32, #tpu.memory_space<vmem>>, vector<1x16x1x4xf32>
    %26 = vector.shape_cast %25 : vector<1x16x1x4xf32> to vector<16x4xf32>
    %cst = arith.constant 7.500000e-01 : f32
    %27 = vector.broadcast %cst : f32 to vector<16x4xf32>
    %28 = arith.mulf %27, %22 : vector<16x4xf32>
    %cst_47 = arith.constant 2.500000e-01 : f32
    %29 = vector.broadcast %cst_47 : f32 to vector<16x4xf32>
    %30 = arith.mulf %29, %24 : vector<16x4xf32>
    %31 = arith.addf %28, %30 : vector<16x4xf32>
    %cst_48 = arith.constant 7.500000e-01 : f32
    %32 = vector.broadcast %cst_48 : f32 to vector<16x4xf32>
    %33 = arith.mulf %32, %22 : vector<16x4xf32>
    %cst_49 = arith.constant 2.500000e-01 : f32
    %34 = vector.broadcast %cst_49 : f32 to vector<16x4xf32>
    %35 = arith.mulf %34, %26 : vector<16x4xf32>
    %36 = arith.addf %33, %35 : vector<16x4xf32>
    %c0_50 = arith.constant 0 : index
    %c1_51 = arith.constant 1 : index
    %c16 = arith.constant 16 : index
    %c0_52 = arith.constant 0 : index
    %37 = vector.load %arg1[%c0_50, %c1_51, %c16, %c0_52] : memref<1x18x18x4xf32, #tpu.memory_space<vmem>>, vector<1x16x1x4xf32>
    %38 = vector.shape_cast %37 : vector<1x16x1x4xf32> to vector<16x4xf32>
    %c0_53 = arith.constant 0 : index
    %c0_54 = arith.constant 0 : index
    %c16_55 = arith.constant 16 : index
    %c0_56 = arith.constant 0 : index
    %39 = vector.load %arg1[%c0_53, %c0_54, %c16_55, %c0_56] : memref<1x18x18x4xf32, #tpu.memory_space<vmem>>, vector<1x16x1x4xf32>
    %40 = vector.shape_cast %39 : vector<1x16x1x4xf32> to vector<16x4xf32>
    %c0_57 = arith.constant 0 : index
    %c2_58 = arith.constant 2 : index
    %c16_59 = arith.constant 16 : index
    %c0_60 = arith.constant 0 : index
    %41 = vector.load %arg1[%c0_57, %c2_58, %c16_59, %c0_60] : memref<1x18x18x4xf32, #tpu.memory_space<vmem>>, vector<1x16x1x4xf32>
    %42 = vector.shape_cast %41 : vector<1x16x1x4xf32> to vector<16x4xf32>
    %cst_61 = arith.constant 7.500000e-01 : f32
    %43 = vector.broadcast %cst_61 : f32 to vector<16x4xf32>
    %44 = arith.mulf %43, %38 : vector<16x4xf32>
    %cst_62 = arith.constant 2.500000e-01 : f32
    %45 = vector.broadcast %cst_62 : f32 to vector<16x4xf32>
    %46 = arith.mulf %45, %40 : vector<16x4xf32>
    %47 = arith.addf %44, %46 : vector<16x4xf32>
    %cst_63 = arith.constant 7.500000e-01 : f32
    %48 = vector.broadcast %cst_63 : f32 to vector<16x4xf32>
    %49 = arith.mulf %48, %38 : vector<16x4xf32>
    %cst_64 = arith.constant 2.500000e-01 : f32
    %50 = vector.broadcast %cst_64 : f32 to vector<16x4xf32>
    %51 = arith.mulf %50, %42 : vector<16x4xf32>
    %52 = arith.addf %49, %51 : vector<16x4xf32>
    %c0_65 = arith.constant 0 : index
    %c0_66 = arith.constant 0 : index
    %c0_67 = arith.constant 0 : index
    %53 = vector.load %arg2[%c0_65, %c0_66, %c0_67] : memref<2x36x16xf32, #tpu.memory_space<vmem>>, vector<1x36x16xf32>
    %54 = vector.shape_cast %53 : vector<1x36x16xf32> to vector<36x16xf32>
    %cst_68 = arith.constant dense<0.000000e+00> : vector<256x16xf32>
    %55 = tpu.matmul %19, %54, %cst_68 {dimension_numbers = #tpu.dot_dimension_numbers<[1], [0], [0], [1], [0, 0, 1, 1], [], []>} : vector<256x36xf32>, vector<36x16xf32>, vector<256x16xf32> -> vector<256x16xf32>
    %56 = vector.broadcast %20 : vector<1x16xf32> to vector<256x16xf32>
    %57 = arith.addf %55, %56 : vector<256x16xf32>
    %58 = vector.shape_cast %57 : vector<256x16xf32> to vector<16x16x16xf32>
    %c0_69 = arith.constant 0 : index
    %c0_70 = arith.constant 0 : index
    %c0_71 = arith.constant 0 : index
    %c0_72 = arith.constant 0 : index
    %c0_73 = arith.constant 0 : index
    %59 = vector.load %arg5[%c0_69, %c0_70, %c0_71, %c0_72, %c0_73] : memref<1x16x2x16x16xf32, #tpu.memory_space<vmem>>, vector<1x16x1x16x16xf32>
    %60 = vector.shape_cast %59 : vector<1x16x1x16x16xf32> to vector<16x16x16xf32>
    %61 = vector.shape_cast %58 : vector<16x16x16xf32> to vector<1x16x1x16x16xf32>
    tpu.vector_store %arg5[%c0_69, %c0_70, %c0_71, %c0_72, %c0_73], %61 {strides = array<i32>} : memref<1x16x2x16x16xf32, #tpu.memory_space<vmem>>, vector<1x16x1x16x16xf32>,
    %62 = vector.extract_strided_slice %31 {offsets = [0, 0], sizes = [1, 4], strides = [1, 1]} : vector<16x4xf32> to vector<1x4xf32>
    %63 = vector.extract_strided_slice %36 {offsets = [0, 0], sizes = [15, 4], strides = [1, 1]} : vector<16x4xf32> to vector<15x4xf32>
    %64 = tpu.concatenate %62, %63 in 0 : vector<1x4xf32>, vector<15x4xf32> -> vector<16x4xf32>
    %c0_74 = arith.constant 0 : index
    %c0_75 = arith.constant 0 : index
    %c0_76 = arith.constant 0 : index
    %c0_77 = arith.constant 0 : index
    %65 = vector.load %arg3[%c0_74, %c0_75, %c0_76, %c0_77] : memref<3x3x4x8xf32, #tpu.memory_space<vmem>>, vector<1x1x4x8xf32>
    %66 = vector.shape_cast %65 : vector<1x1x4x8xf32> to vector<4x8xf32>
    %cst_78 = arith.constant dense<0.000000e+00> : vector<16x8xf32>
    %67 = tpu.matmul %64, %66, %cst_78 {dimension_numbers = #tpu.dot_dimension_numbers<[1], [0], [0], [1], [0, 0, 1, 1], [], []>} : vector<16x4xf32>, vector<4x8xf32>, vector<16x8xf32> -> vector<16x8xf32>
    %c1_79 = arith.constant 1 : index
    %c0_80 = arith.constant 0 : index
    %c0_81 = arith.constant 0 : index
    %c0_82 = arith.constant 0 : index
    %68 = vector.load %arg3[%c1_79, %c0_80, %c0_81, %c0_82] : memref<3x3x4x8xf32, #tpu.memory_space<vmem>>, vector<1x1x4x8xf32>
    %69 = vector.shape_cast %68 : vector<1x1x4x8xf32> to vector<4x8xf32>
    %cst_83 = arith.constant dense<0.000000e+00> : vector<16x8xf32>
    %70 = tpu.matmul %31, %69, %cst_83 {dimension_numbers = #tpu.dot_dimension_numbers<[1], [0], [0], [1], [0, 0, 1, 1], [], []>} : vector<16x4xf32>, vector<4x8xf32>, vector<16x8xf32> -> vector<16x8xf32>
    %71 = arith.addf %67, %70 : vector<16x8xf32>
    %c2_84 = arith.constant 2 : index
    %c0_85 = arith.constant 0 : index
    %c0_86 = arith.constant 0 : index
    %c0_87 = arith.constant 0 : index
    %72 = vector.load %arg3[%c2_84, %c0_85, %c0_86, %c0_87] : memref<3x3x4x8xf32, #tpu.memory_space<vmem>>, vector<1x1x4x8xf32>
    %73 = vector.shape_cast %72 : vector<1x1x4x8xf32> to vector<4x8xf32>
    %cst_88 = arith.constant dense<0.000000e+00> : vector<16x8xf32>
    %74 = tpu.matmul %36, %73, %cst_88 {dimension_numbers = #tpu.dot_dimension_numbers<[1], [0], [0], [1], [0, 0, 1, 1], [], []>} : vector<16x4xf32>, vector<4x8xf32>, vector<16x8xf32> -> vector<16x8xf32>
    %75 = arith.addf %71, %74 : vector<16x8xf32>
    %76 = vector.extract_strided_slice %47 {offsets = [0, 0], sizes = [1, 4], strides = [1, 1]} : vector<16x4xf32> to vector<1x4xf32>
    %77 = vector.extract_strided_slice %52 {offsets = [0, 0], sizes = [15, 4], strides = [1, 1]} : vector<16x4xf32> to vector<15x4xf32>
    %78 = tpu.concatenate %76, %77 in 0 : vector<1x4xf32>, vector<15x4xf32> -> vector<16x4xf32>
    %c0_89 = arith.constant 0 : index
    %c2_90 = arith.constant 2 : index
    %c0_91 = arith.constant 0 : index
    %c0_92 = arith.constant 0 : index
    %79 = vector.load %arg3[%c0_89, %c2_90, %c0_91, %c0_92] : memref<3x3x4x8xf32, #tpu.memory_space<vmem>>, vector<1x1x4x8xf32>
    %80 = vector.shape_cast %79 : vector<1x1x4x8xf32> to vector<4x8xf32>
    %cst_93 = arith.constant dense<0.000000e+00> : vector<16x8xf32>
    %81 = tpu.matmul %78, %80, %cst_93 {dimension_numbers = #tpu.dot_dimension_numbers<[1], [0], [0], [1], [0, 0, 1, 1], [], []>} : vector<16x4xf32>, vector<4x8xf32>, vector<16x8xf32> -> vector<16x8xf32>
    %c1_94 = arith.constant 1 : index
    %c2_95 = arith.constant 2 : index
    %c0_96 = arith.constant 0 : index
    %c0_97 = arith.constant 0 : index
    %82 = vector.load %arg3[%c1_94, %c2_95, %c0_96, %c0_97] : memref<3x3x4x8xf32, #tpu.memory_space<vmem>>, vector<1x1x4x8xf32>
    %83 = vector.shape_cast %82 : vector<1x1x4x8xf32> to vector<4x8xf32>
    %cst_98 = arith.constant dense<0.000000e+00> : vector<16x8xf32>
    %84 = tpu.matmul %47, %83, %cst_98 {dimension_numbers = #tpu.dot_dimension_numbers<[1], [0], [0], [1], [0, 0, 1, 1], [], []>} : vector<16x4xf32>, vector<4x8xf32>, vector<16x8xf32> -> vector<16x8xf32>
    %85 = arith.addf %81, %84 : vector<16x8xf32>
    %c2_99 = arith.constant 2 : index
    %c2_100 = arith.constant 2 : index
    %c0_101 = arith.constant 0 : index
    %c0_102 = arith.constant 0 : index
    %86 = vector.load %arg3[%c2_99, %c2_100, %c0_101, %c0_102] : memref<3x3x4x8xf32, #tpu.memory_space<vmem>>, vector<1x1x4x8xf32>
    %87 = vector.shape_cast %86 : vector<1x1x4x8xf32> to vector<4x8xf32>
    %cst_103 = arith.constant dense<0.000000e+00> : vector<16x8xf32>
    %88 = tpu.matmul %52, %87, %cst_103 {dimension_numbers = #tpu.dot_dimension_numbers<[1], [0], [0], [1], [0, 0, 1, 1], [], []>} : vector<16x4xf32>, vector<4x8xf32>, vector<16x8xf32> -> vector<16x8xf32>
    %89 = arith.addf %85, %88 : vector<16x8xf32>
    %c0_104 = arith.constant 0 : index
    %c0_105 = arith.constant 0 : index
    %c0_106 = arith.constant 0 : index
    %c0_107 = arith.constant 0 : index
    %c0_108 = arith.constant 0 : index
    %90 = vector.load %arg5[%c0_104, %c0_105, %c0_106, %c0_107, %c0_108] : memref<1x16x2x16x16xf32, #tpu.memory_space<vmem>>, vector<1x16x1x1x8xf32>
    %91 = vector.shape_cast %90 : vector<1x16x1x1x8xf32> to vector<16x8xf32>
    %92 = arith.subf %91, %75 : vector<16x8xf32>
    %c0_109 = arith.constant 0 : index
    %c0_110 = arith.constant 0 : index
    %c0_111 = arith.constant 0 : index
    %c0_112 = arith.constant 0 : index
    %c0_113 = arith.constant 0 : index
    %93 = vector.load %arg5[%c0_109, %c0_110, %c0_111, %c0_112, %c0_113] : memref<1x16x2x16x16xf32, #tpu.memory_space<vmem>>, vector<1x16x1x1x8xf32>
    %94 = vector.shape_cast %93 : vector<1x16x1x1x8xf32> to vector<16x8xf32>
    %95 = vector.shape_cast %92 : vector<16x8xf32> to vector<1x16x1x1x8xf32>
    tpu.vector_store %arg5[%c0_109, %c0_110, %c0_111, %c0_112, %c0_113], %95 {strides = array<i32>} : memref<1x16x2x16x16xf32, #tpu.memory_space<vmem>>, vector<1x16x1x1x8xf32>,
    %c0_114 = arith.constant 0 : index
    %c0_115 = arith.constant 0 : index
    %c0_116 = arith.constant 0 : index
    %c15 = arith.constant 15 : index
    %c8 = arith.constant 8 : index
    %96 = vector.load %arg5[%c0_114, %c0_115, %c0_116, %c15, %c8] : memref<1x16x2x16x16xf32, #tpu.memory_space<vmem>>, vector<1x16x1x1x8xf32>
    %97 = vector.shape_cast %96 : vector<1x16x1x1x8xf32> to vector<16x8xf32>
    %98 = arith.subf %97, %89 : vector<16x8xf32>
    %c0_117 = arith.constant 0 : index
    %c0_118 = arith.constant 0 : index
    %c0_119 = arith.constant 0 : index
    %c15_120 = arith.constant 15 : index
    %c8_121 = arith.constant 8 : index
    %99 = vector.load %arg5[%c0_117, %c0_118, %c0_119, %c15_120, %c8_121] : memref<1x16x2x16x16xf32, #tpu.memory_space<vmem>>, vector<1x16x1x1x8xf32>
    %100 = vector.shape_cast %99 : vector<1x16x1x1x8xf32> to vector<16x8xf32>
    %101 = vector.shape_cast %98 : vector<16x8xf32> to vector<1x16x1x1x8xf32>
    tpu.vector_store %arg5[%c0_117, %c0_118, %c0_119, %c15_120, %c8_121], %101 {strides = array<i32>} : memref<1x16x2x16x16xf32, #tpu.memory_space<vmem>>, vector<1x16x1x1x8xf32>,
    %c0_122 = arith.constant 0 : index
    %c1_123 = arith.constant 1 : index
    %c1_124 = arith.constant 1 : index
    %c0_125 = arith.constant 0 : index
    %102 = vector.load %arg1[%c0_122, %c1_123, %c1_124, %c0_125] : memref<1x18x18x4xf32, #tpu.memory_space<vmem>>, vector<1x1x16x4xf32>
    %103 = vector.shape_cast %102 : vector<1x1x16x4xf32> to vector<16x4xf32>
    %c0_126 = arith.constant 0 : index
    %c1_127 = arith.constant 1 : index
    %c0_128 = arith.constant 0 : index
    %c0_129 = arith.constant 0 : index
    %104 = vector.load %arg1[%c0_126, %c1_127, %c0_128, %c0_129] : memref<1x18x18x4xf32, #tpu.memory_space<vmem>>, vector<1x1x16x4xf32>
    %105 = vector.shape_cast %104 : vector<1x1x16x4xf32> to vector<16x4xf32>
    %c0_130 = arith.constant 0 : index
    %c1_131 = arith.constant 1 : index
    %c2_132 = arith.constant 2 : index
    %c0_133 = arith.constant 0 : index
    %106 = vector.load %arg1[%c0_130, %c1_131, %c2_132, %c0_133] : memref<1x18x18x4xf32, #tpu.memory_space<vmem>>, vector<1x1x16x4xf32>
    %107 = vector.shape_cast %106 : vector<1x1x16x4xf32> to vector<16x4xf32>
    %cst_134 = arith.constant 7.500000e-01 : f32
    %108 = vector.broadcast %cst_134 : f32 to vector<16x4xf32>
    %109 = arith.mulf %108, %103 : vector<16x4xf32>
    %cst_135 = arith.constant 2.500000e-01 : f32
    %110 = vector.broadcast %cst_135 : f32 to vector<16x4xf32>
    %111 = arith.mulf %110, %105 : vector<16x4xf32>
    %112 = arith.addf %109, %111 : vector<16x4xf32>
    %cst_136 = arith.constant 7.500000e-01 : f32
    %113 = vector.broadcast %cst_136 : f32 to vector<16x4xf32>
    %114 = arith.mulf %113, %103 : vector<16x4xf32>
    %cst_137 = arith.constant 2.500000e-01 : f32
    %115 = vector.broadcast %cst_137 : f32 to vector<16x4xf32>
    %116 = arith.mulf %115, %107 : vector<16x4xf32>
    %117 = arith.addf %114, %116 : vector<16x4xf32>
    %118 = vector.extract_strided_slice %112 {offsets = [0, 0], sizes = [1, 4], strides = [1, 1]} : vector<16x4xf32> to vector<1x4xf32>
    %119 = vector.extract_strided_slice %117 {offsets = [0, 0], sizes = [15, 4], strides = [1, 1]} : vector<16x4xf32> to vector<15x4xf32>
    %120 = tpu.concatenate %118, %119 in 0 : vector<1x4xf32>, vector<15x4xf32> -> vector<16x4xf32>
    %c0_138 = arith.constant 0 : index
    %c0_139 = arith.constant 0 : index
    %c0_140 = arith.constant 0 : index
    %c0_141 = arith.constant 0 : index
    %121 = vector.load %arg3[%c0_138, %c0_139, %c0_140, %c0_141] : memref<3x3x4x8xf32, #tpu.memory_space<vmem>>, vector<1x1x4x8xf32>
    %122 = vector.shape_cast %121 : vector<1x1x4x8xf32> to vector<4x8xf32>
    %cst_142 = arith.constant dense<0.000000e+00> : vector<16x8xf32>
    %123 = tpu.matmul %120, %122, %cst_142 {dimension_numbers = #tpu.dot_dimension_numbers<[1], [0], [0], [1], [0, 0, 1, 1], [], []>} : vector<16x4xf32>, vector<4x8xf32>, vector<16x8xf32> -> vector<16x8xf32>
    %c0_143 = arith.constant 0 : index
    %c1_144 = arith.constant 1 : index
    %c0_145 = arith.constant 0 : index
    %c0_146 = arith.constant 0 : index
    %124 = vector.load %arg3[%c0_143, %c1_144, %c0_145, %c0_146] : memref<3x3x4x8xf32, #tpu.memory_space<vmem>>, vector<1x1x4x8xf32>
    %125 = vector.shape_cast %124 : vector<1x1x4x8xf32> to vector<4x8xf32>
    %cst_147 = arith.constant dense<0.000000e+00> : vector<16x8xf32>
    %126 = tpu.matmul %112, %125, %cst_147 {dimension_numbers = #tpu.dot_dimension_numbers<[1], [0], [0], [1], [0, 0, 1, 1], [], []>} : vector<16x4xf32>, vector<4x8xf32>, vector<16x8xf32> -> vector<16x8xf32>
    %127 = arith.addf %123, %126 : vector<16x8xf32>
    %c0_148 = arith.constant 0 : index
    %c2_149 = arith.constant 2 : index
    %c0_150 = arith.constant 0 : index
    %c0_151 = arith.constant 0 : index
    %128 = vector.load %arg3[%c0_148, %c2_149, %c0_150, %c0_151] : memref<3x3x4x8xf32, #tpu.memory_space<vmem>>, vector<1x1x4x8xf32>
    %129 = vector.shape_cast %128 : vector<1x1x4x8xf32> to vector<4x8xf32>
    %cst_152 = arith.constant dense<0.000000e+00> : vector<16x8xf32>
    %130 = tpu.matmul %117, %129, %cst_152 {dimension_numbers = #tpu.dot_dimension_numbers<[1], [0], [0], [1], [0, 0, 1, 1], [], []>} : vector<16x4xf32>, vector<4x8xf32>, vector<16x8xf32> -> vector<16x8xf32>
    %131 = arith.addf %127, %130 : vector<16x8xf32>
    %c0_153 = arith.constant 0 : index
    %c0_154 = arith.constant 0 : index
    %c0_155 = arith.constant 0 : index
    %c0_156 = arith.constant 0 : index
    %132 = vector.load %arg3[%c0_153, %c0_154, %c0_155, %c0_156] : memref<3x3x4x8xf32, #tpu.memory_space<vmem>>, vector<1x1x4x8xf32>
    %133 = vector.shape_cast %132 : vector<1x1x4x8xf32> to vector<4x8xf32>
    %cst_157 = arith.constant dense<0.000000e+00> : vector<16x8xf32>
    %134 = tpu.matmul %112, %133, %cst_157 {dimension_numbers = #tpu.dot_dimension_numbers<[1], [0], [0], [1], [0, 0, 1, 1], [], []>} : vector<16x4xf32>, vector<4x8xf32>, vector<16x8xf32> -> vector<16x8xf32>
    %c0_158 = arith.constant 0 : index
    %c1_159 = arith.constant 1 : index
    %c0_160 = arith.constant 0 : index
    %c0_161 = arith.constant 0 : index
    %135 = vector.load %arg3[%c0_158, %c1_159, %c0_160, %c0_161] : memref<3x3x4x8xf32, #tpu.memory_space<vmem>>, vector<1x1x4x8xf32>
    %136 = vector.shape_cast %135 : vector<1x1x4x8xf32> to vector<4x8xf32>
    %cst_162 = arith.constant dense<0.000000e+00> : vector<16x8xf32>
    %137 = tpu.matmul %117, %136, %cst_162 {dimension_numbers = #tpu.dot_dimension_numbers<[1], [0], [0], [1], [0, 0, 1, 1], [], []>} : vector<16x4xf32>, vector<4x8xf32>, vector<16x8xf32> -> vector<16x8xf32>
    %138 = arith.addf %134, %137 : vector<16x8xf32>
    %139 = vector.extract_strided_slice %112 {offsets = [1, 0], sizes = [15, 4], strides = [1, 1]} : vector<16x4xf32> to vector<15x4xf32>
    %140 = vector.extract_strided_slice %117 {offsets = [15, 0], sizes = [1, 4], strides = [1, 1]} : vector<16x4xf32> to vector<1x4xf32>
    %141 = tpu.concatenate %139, %140 in 0 : vector<15x4xf32>, vector<1x4xf32> -> vector<16x4xf32>
    %c0_163 = arith.constant 0 : index
    %c2_164 = arith.constant 2 : index
    %c0_165 = arith.constant 0 : index
    %c0_166 = arith.constant 0 : index
    %142 = vector.load %arg3[%c0_163, %c2_164, %c0_165, %c0_166] : memref<3x3x4x8xf32, #tpu.memory_space<vmem>>, vector<1x1x4x8xf32>
    %143 = vector.shape_cast %142 : vector<1x1x4x8xf32> to vector<4x8xf32>
    %cst_167 = arith.constant dense<0.000000e+00> : vector<16x8xf32>
    %144 = tpu.matmul %141, %143, %cst_167 {dimension_numbers = #tpu.dot_dimension_numbers<[1], [0], [0], [1], [0, 0, 1, 1], [], []>} : vector<16x4xf32>, vector<4x8xf32>, vector<16x8xf32> -> vector<16x8xf32>
    %145 = arith.addf %138, %144 : vector<16x8xf32>
    %146 = tpu.concatenate %131, %145 in 1 : vector<16x8xf32>, vector<16x8xf32> -> vector<16x16xf32>
    %c0_168 = arith.constant 0 : index
    %c0_169 = arith.constant 0 : index
    %c0_170 = arith.constant 0 : index
    %c0_171 = arith.constant 0 : index
    %c0_172 = arith.constant 0 : index
    %147 = vector.load %arg5[%c0_168, %c0_169, %c0_170, %c0_171, %c0_172] : memref<1x16x2x16x16xf32, #tpu.memory_space<vmem>>, vector<1x1x1x16x16xf32>
    %148 = vector.shape_cast %147 : vector<1x1x1x16x16xf32> to vector<16x16xf32>
    %149 = arith.subf %148, %146 : vector<16x16xf32>
    %c0_173 = arith.constant 0 : index
    %c0_174 = arith.constant 0 : index
    %c0_175 = arith.constant 0 : index
    %c0_176 = arith.constant 0 : index
    %c0_177 = arith.constant 0 : index
    %150 = vector.load %arg5[%c0_173, %c0_174, %c0_175, %c0_176, %c0_177] : memref<1x16x2x16x16xf32, #tpu.memory_space<vmem>>, vector<1x1x1x16x16xf32>
    %151 = vector.shape_cast %150 : vector<1x1x1x16x16xf32> to vector<16x16xf32>
    %152 = vector.shape_cast %149 : vector<16x16xf32> to vector<1x1x1x16x16xf32>
    tpu.vector_store %arg5[%c0_173, %c0_174, %c0_175, %c0_176, %c0_177], %152 {strides = array<i32>} : memref<1x16x2x16x16xf32, #tpu.memory_space<vmem>>, vector<1x1x1x16x16xf32>,
    %c0_178 = arith.constant 0 : index
    %c1_179 = arith.constant 1 : index
    %c1_180 = arith.constant 1 : index
    %c0_181 = arith.constant 0 : index
    %153 = vector.load %arg1[%c0_178, %c1_179, %c1_180, %c0_181] : memref<1x18x18x4xf32, #tpu.memory_space<vmem>>, vector<1x1x1x4xf32>
    %154 = vector.shape_cast %153 : vector<1x1x1x4xf32> to vector<1x4xf32>
    %c0_182 = arith.constant 0 : index
    %c0_183 = arith.constant 0 : index
    %c0_184 = arith.constant 0 : index
    %c0_185 = arith.constant 0 : index
    %155 = vector.load %arg3[%c0_182, %c0_183, %c0_184, %c0_185] : memref<3x3x4x8xf32, #tpu.memory_space<vmem>>, vector<1x1x4x8xf32>
    %156 = vector.shape_cast %155 : vector<1x1x4x8xf32> to vector<4x8xf32>
    %cst_186 = arith.constant dense<0.000000e+00> : vector<1x8xf32>
    %157 = tpu.matmul %154, %156, %cst_186 {dimension_numbers = #tpu.dot_dimension_numbers<[1], [0], [0], [1], [0, 0, 1, 1], [], []>} : vector<1x4xf32>, vector<4x8xf32>, vector<1x8xf32> -> vector<1x8xf32>
    %c0_187 = arith.constant 0 : index
    %c1_188 = arith.constant 1 : index
    %c16_189 = arith.constant 16 : index
    %c0_190 = arith.constant 0 : index
    %158 = vector.load %arg1[%c0_187, %c1_188, %c16_189, %c0_190] : memref<1x18x18x4xf32, #tpu.memory_space<vmem>>, vector<1x1x1x4xf32>
    %159 = vector.shape_cast %158 : vector<1x1x1x4xf32> to vector<1x4xf32>
    %c0_191 = arith.constant 0 : index
    %c2_192 = arith.constant 2 : index
    %c0_193 = arith.constant 0 : index
    %c0_194 = arith.constant 0 : index
    %160 = vector.load %arg3[%c0_191, %c2_192, %c0_193, %c0_194] : memref<3x3x4x8xf32, #tpu.memory_space<vmem>>, vector<1x1x4x8xf32>
    %161 = vector.shape_cast %160 : vector<1x1x4x8xf32> to vector<4x8xf32>
    %cst_195 = arith.constant dense<0.000000e+00> : vector<1x8xf32>
    %162 = tpu.matmul %159, %161, %cst_195 {dimension_numbers = #tpu.dot_dimension_numbers<[1], [0], [0], [1], [0, 0, 1, 1], [], []>} : vector<1x4xf32>, vector<4x8xf32>, vector<1x8xf32> -> vector<1x8xf32>
    %c0_196 = arith.constant 0 : index
    %c0_197 = arith.constant 0 : index
    %c0_198 = arith.constant 0 : index
    %c0_199 = arith.constant 0 : index
    %c0_200 = arith.constant 0 : index
    %163 = vector.load %arg5[%c0_196, %c0_197, %c0_198, %c0_199, %c0_200] : memref<1x16x2x16x16xf32, #tpu.memory_space<vmem>>, vector<1x1x1x1x8xf32>
    %164 = vector.shape_cast %163 : vector<1x1x1x1x8xf32> to vector<1x8xf32>
    %165 = arith.addf %164, %157 : vector<1x8xf32>
    %c0_201 = arith.constant 0 : index
    %c0_202 = arith.constant 0 : index
    %c0_203 = arith.constant 0 : index
    %c0_204 = arith.constant 0 : index
    %c0_205 = arith.constant 0 : index
    %166 = vector.load %arg5[%c0_201, %c0_202, %c0_203, %c0_204, %c0_205] : memref<1x16x2x16x16xf32, #tpu.memory_space<vmem>>, vector<1x1x1x1x8xf32>
    %167 = vector.shape_cast %166 : vector<1x1x1x1x8xf32> to vector<1x8xf32>
    %168 = vector.shape_cast %165 : vector<1x8xf32> to vector<1x1x1x1x8xf32>
    tpu.vector_store %arg5[%c0_201, %c0_202, %c0_203, %c0_204, %c0_205], %168 {strides = array<i32>} : memref<1x16x2x16x16xf32, #tpu.memory_space<vmem>>, vector<1x1x1x1x8xf32>,
    %c0_206 = arith.constant 0 : index
    %c0_207 = arith.constant 0 : index
    %c0_208 = arith.constant 0 : index
    %c15_209 = arith.constant 15 : index
    %c8_210 = arith.constant 8 : index
    %169 = vector.load %arg5[%c0_206, %c0_207, %c0_208, %c15_209, %c8_210] : memref<1x16x2x16x16xf32, #tpu.memory_space<vmem>>, vector<1x1x1x1x8xf32>
    %170 = vector.shape_cast %169 : vector<1x1x1x1x8xf32> to vector<1x8xf32>
    %171 = arith.addf %170, %162 : vector<1x8xf32>
    %c0_211 = arith.constant 0 : index
    %c0_212 = arith.constant 0 : index
    %c0_213 = arith.constant 0 : index
    %c15_214 = arith.constant 15 : index
    %c8_215 = arith.constant 8 : index
    %172 = vector.load %arg5[%c0_211, %c0_212, %c0_213, %c15_214, %c8_215] : memref<1x16x2x16x16xf32, #tpu.memory_space<vmem>>, vector<1x1x1x1x8xf32>
    %173 = vector.shape_cast %172 : vector<1x1x1x1x8xf32> to vector<1x8xf32>
    %174 = vector.shape_cast %171 : vector<1x8xf32> to vector<1x1x1x1x8xf32>
    tpu.vector_store %arg5[%c0_211, %c0_212, %c0_213, %c15_214, %c8_215], %174 {strides = array<i32>} : memref<1x16x2x16x16xf32, #tpu.memory_space<vmem>>, vector<1x1x1x1x8xf32>,
    %c1_216 = arith.constant 1 : index
    %c0_217 = arith.constant 0 : index
    %c0_218 = arith.constant 0 : index
    %175 = vector.load %arg2[%c1_216, %c0_217, %c0_218] : memref<2x36x16xf32, #tpu.memory_space<vmem>>, vector<1x36x16xf32>
    %176 = vector.shape_cast %175 : vector<1x36x16xf32> to vector<36x16xf32>
    %cst_219 = arith.constant dense<0.000000e+00> : vector<256x16xf32>
    %177 = tpu.matmul %19, %176, %cst_219 {dimension_numbers = #tpu.dot_dimension_numbers<[1], [0], [0], [1], [0, 0, 1, 1], [], []>} : vector<256x36xf32>, vector<36x16xf32>, vector<256x16xf32> -> vector<256x16xf32>
    %178 = vector.broadcast %20 : vector<1x16xf32> to vector<256x16xf32>
    %179 = arith.addf %177, %178 : vector<256x16xf32>
    %180 = vector.shape_cast %179 : vector<256x16xf32> to vector<16x16x16xf32>
    %c0_220 = arith.constant 0 : index
    %c0_221 = arith.constant 0 : index
    %c1_222 = arith.constant 1 : index
    %c0_223 = arith.constant 0 : index
    %c0_224 = arith.constant 0 : index
    %181 = vector.load %arg5[%c0_220, %c0_221, %c1_222, %c0_223, %c0_224] : memref<1x16x2x16x16xf32, #tpu.memory_space<vmem>>, vector<1x16x1x16x16xf32>
    %182 = vector.shape_cast %181 : vector<1x16x1x16x16xf32> to vector<16x16x16xf32>
    %183 = vector.shape_cast %180 : vector<16x16x16xf32> to vector<1x16x1x16x16xf32>
    tpu.vector_store %arg5[%c0_220, %c0_221, %c1_222, %c0_223, %c0_224], %183 {strides = array<i32>} : memref<1x16x2x16x16xf32, #tpu.memory_space<vmem>>, vector<1x16x1x16x16xf32>,
    %c0_225 = arith.constant 0 : index
    %c0_226 = arith.constant 0 : index
    %c0_227 = arith.constant 0 : index
    %c0_228 = arith.constant 0 : index
    %184 = vector.load %arg3[%c0_225, %c0_226, %c0_227, %c0_228] : memref<3x3x4x8xf32, #tpu.memory_space<vmem>>, vector<1x1x4x8xf32>
    %185 = vector.shape_cast %184 : vector<1x1x4x8xf32> to vector<4x8xf32>
    %cst_229 = arith.constant dense<0.000000e+00> : vector<16x8xf32>
    %186 = tpu.matmul %31, %185, %cst_229 {dimension_numbers = #tpu.dot_dimension_numbers<[1], [0], [0], [1], [0, 0, 1, 1], [], []>} : vector<16x4xf32>, vector<4x8xf32>, vector<16x8xf32> -> vector<16x8xf32>
    %c1_230 = arith.constant 1 : index
    %c0_231 = arith.constant 0 : index
    %c0_232 = arith.constant 0 : index
    %c0_233 = arith.constant 0 : index
    %187 = vector.load %arg3[%c1_230, %c0_231, %c0_232, %c0_233] : memref<3x3x4x8xf32, #tpu.memory_space<vmem>>, vector<1x1x4x8xf32>
    %188 = vector.shape_cast %187 : vector<1x1x4x8xf32> to vector<4x8xf32>
    %cst_234 = arith.constant dense<0.000000e+00> : vector<16x8xf32>
    %189 = tpu.matmul %36, %188, %cst_234 {dimension_numbers = #tpu.dot_dimension_numbers<[1], [0], [0], [1], [0, 0, 1, 1], [], []>} : vector<16x4xf32>, vector<4x8xf32>, vector<16x8xf32> -> vector<16x8xf32>
    %190 = arith.addf %186, %189 : vector<16x8xf32>
    %191 = vector.extract_strided_slice %31 {offsets = [1, 0], sizes = [15, 4], strides = [1, 1]} : vector<16x4xf32> to vector<15x4xf32>
    %192 = vector.extract_strided_slice %36 {offsets = [15, 0], sizes = [1, 4], strides = [1, 1]} : vector<16x4xf32> to vector<1x4xf32>
    %193 = tpu.concatenate %191, %192 in 0 : vector<15x4xf32>, vector<1x4xf32> -> vector<16x4xf32>
    %c2_235 = arith.constant 2 : index
    %c0_236 = arith.constant 0 : index
    %c0_237 = arith.constant 0 : index
    %c0_238 = arith.constant 0 : index
    %194 = vector.load %arg3[%c2_235, %c0_236, %c0_237, %c0_238] : memref<3x3x4x8xf32, #tpu.memory_space<vmem>>, vector<1x1x4x8xf32>
    %195 = vector.shape_cast %194 : vector<1x1x4x8xf32> to vector<4x8xf32>
    %cst_239 = arith.constant dense<0.000000e+00> : vector<16x8xf32>
    %196 = tpu.matmul %193, %195, %cst_239 {dimension_numbers = #tpu.dot_dimension_numbers<[1], [0], [0], [1], [0, 0, 1, 1], [], []>} : vector<16x4xf32>, vector<4x8xf32>, vector<16x8xf32> -> vector<16x8xf32>
    %197 = arith.addf %190, %196 : vector<16x8xf32>
    %c0_240 = arith.constant 0 : index
    %c2_241 = arith.constant 2 : index
    %c0_242 = arith.constant 0 : index
    %c0_243 = arith.constant 0 : index
    %198 = vector.load %arg3[%c0_240, %c2_241, %c0_242, %c0_243] : memref<3x3x4x8xf32, #tpu.memory_space<vmem>>, vector<1x1x4x8xf32>
    %199 = vector.shape_cast %198 : vector<1x1x4x8xf32> to vector<4x8xf32>
    %cst_244 = arith.constant dense<0.000000e+00> : vector<16x8xf32>
    %200 = tpu.matmul %47, %199, %cst_244 {dimension_numbers = #tpu.dot_dimension_numbers<[1], [0], [0], [1], [0, 0, 1, 1], [], []>} : vector<16x4xf32>, vector<4x8xf32>, vector<16x8xf32> -> vector<16x8xf32>
    %c1_245 = arith.constant 1 : index
    %c2_246 = arith.constant 2 : index
    %c0_247 = arith.constant 0 : index
    %c0_248 = arith.constant 0 : index
    %201 = vector.load %arg3[%c1_245, %c2_246, %c0_247, %c0_248] : memref<3x3x4x8xf32, #tpu.memory_space<vmem>>, vector<1x1x4x8xf32>
    %202 = vector.shape_cast %201 : vector<1x1x4x8xf32> to vector<4x8xf32>
    %cst_249 = arith.constant dense<0.000000e+00> : vector<16x8xf32>
    %203 = tpu.matmul %52, %202, %cst_249 {dimension_numbers = #tpu.dot_dimension_numbers<[1], [0], [0], [1], [0, 0, 1, 1], [], []>} : vector<16x4xf32>, vector<4x8xf32>, vector<16x8xf32> -> vector<16x8xf32>
    %204 = arith.addf %200, %203 : vector<16x8xf32>
    %205 = vector.extract_strided_slice %47 {offsets = [1, 0], sizes = [15, 4], strides = [1, 1]} : vector<16x4xf32> to vector<15x4xf32>
    %206 = vector.extract_strided_slice %52 {offsets = [15, 0], sizes = [1, 4], strides = [1, 1]} : vector<16x4xf32> to vector<1x4xf32>
    %207 = tpu.concatenate %205, %206 in 0 : vector<15x4xf32>, vector<1x4xf32> -> vector<16x4xf32>
    %c2_250 = arith.constant 2 : index
    %c2_251 = arith.constant 2 : index
    %c0_252 = arith.constant 0 : index
    %c0_253 = arith.constant 0 : index
    %208 = vector.load %arg3[%c2_250, %c2_251, %c0_252, %c0_253] : memref<3x3x4x8xf32, #tpu.memory_space<vmem>>, vector<1x1x4x8xf32>
    %209 = vector.shape_cast %208 : vector<1x1x4x8xf32> to vector<4x8xf32>
    %cst_254 = arith.constant dense<0.000000e+00> : vector<16x8xf32>
    %210 = tpu.matmul %207, %209, %cst_254 {dimension_numbers = #tpu.dot_dimension_numbers<[1], [0], [0], [1], [0, 0, 1, 1], [], []>} : vector<16x4xf32>, vector<4x8xf32>, vector<16x8xf32> -> vector<16x8xf32>
    %211 = arith.addf %204, %210 : vector<16x8xf32>
    %c0_255 = arith.constant 0 : index
    %c0_256 = arith.constant 0 : index
    %c1_257 = arith.constant 1 : index
    %c0_258 = arith.constant 0 : index
    %c0_259 = arith.constant 0 : index
    %212 = vector.load %arg5[%c0_255, %c0_256, %c1_257, %c0_258, %c0_259] : memref<1x16x2x16x16xf32, #tpu.memory_space<vmem>>, vector<1x16x1x1x8xf32>
    %213 = vector.shape_cast %212 : vector<1x16x1x1x8xf32> to vector<16x8xf32>
    %214 = arith.subf %213, %197 : vector<16x8xf32>
    %c0_260 = arith.constant 0 : index
    %c0_261 = arith.constant 0 : index
    %c1_262 = arith.constant 1 : index
    %c0_263 = arith.constant 0 : index
    %c0_264 = arith.constant 0 : index
    %215 = vector.load %arg5[%c0_260, %c0_261, %c1_262, %c0_263, %c0_264] : memref<1x16x2x16x16xf32, #tpu.memory_space<vmem>>, vector<1x16x1x1x8xf32>
    %216 = vector.shape_cast %215 : vector<1x16x1x1x8xf32> to vector<16x8xf32>
    %217 = vector.shape_cast %214 : vector<16x8xf32> to vector<1x16x1x1x8xf32>
    tpu.vector_store %arg5[%c0_260, %c0_261, %c1_262, %c0_263, %c0_264], %217 {strides = array<i32>} : memref<1x16x2x16x16xf32, #tpu.memory_space<vmem>>, vector<1x16x1x1x8xf32>,
    %c0_265 = arith.constant 0 : index
    %c0_266 = arith.constant 0 : index
    %c1_267 = arith.constant 1 : index
    %c15_268 = arith.constant 15 : index
    %c8_269 = arith.constant 8 : index
    %218 = vector.load %arg5[%c0_265, %c0_266, %c1_267, %c15_268, %c8_269] : memref<1x16x2x16x16xf32, #tpu.memory_space<vmem>>, vector<1x16x1x1x8xf32>
    %219 = vector.shape_cast %218 : vector<1x16x1x1x8xf32> to vector<16x8xf32>
    %220 = arith.subf %219, %211 : vector<16x8xf32>
    %c0_270 = arith.constant 0 : index
    %c0_271 = arith.constant 0 : index
    %c1_272 = arith.constant 1 : index
    %c15_273 = arith.constant 15 : index
    %c8_274 = arith.constant 8 : index
    %221 = vector.load %arg5[%c0_270, %c0_271, %c1_272, %c15_273, %c8_274] : memref<1x16x2x16x16xf32, #tpu.memory_space<vmem>>, vector<1x16x1x1x8xf32>
    %222 = vector.shape_cast %221 : vector<1x16x1x1x8xf32> to vector<16x8xf32>
    %223 = vector.shape_cast %220 : vector<16x8xf32> to vector<1x16x1x1x8xf32>
    tpu.vector_store %arg5[%c0_270, %c0_271, %c1_272, %c15_273, %c8_274], %223 {strides = array<i32>} : memref<1x16x2x16x16xf32, #tpu.memory_space<vmem>>, vector<1x16x1x1x8xf32>,
    %c0_275 = arith.constant 0 : index
    %c16_276 = arith.constant 16 : index
    %c1_277 = arith.constant 1 : index
    %c0_278 = arith.constant 0 : index
    %224 = vector.load %arg1[%c0_275, %c16_276, %c1_277, %c0_278] : memref<1x18x18x4xf32, #tpu.memory_space<vmem>>, vector<1x1x16x4xf32>
    %225 = vector.shape_cast %224 : vector<1x1x16x4xf32> to vector<16x4xf32>
    %c0_279 = arith.constant 0 : index
    %c16_280 = arith.constant 16 : index
    %c0_281 = arith.constant 0 : index
    %c0_282 = arith.constant 0 : index
    %226 = vector.load %arg1[%c0_279, %c16_280, %c0_281, %c0_282] : memref<1x18x18x4xf32, #tpu.memory_space<vmem>>, vector<1x1x16x4xf32>
    %227 = vector.shape_cast %226 : vector<1x1x16x4xf32> to vector<16x4xf32>
    %c0_283 = arith.constant 0 : index
    %c16_284 = arith.constant 16 : index
    %c2_285 = arith.constant 2 : index
    %c0_286 = arith.constant 0 : index
    %228 = vector.load %arg1[%c0_283, %c16_284, %c2_285, %c0_286] : memref<1x18x18x4xf32, #tpu.memory_space<vmem>>, vector<1x1x16x4xf32>
    %229 = vector.shape_cast %228 : vector<1x1x16x4xf32> to vector<16x4xf32>
    %cst_287 = arith.constant 7.500000e-01 : f32
    %230 = vector.broadcast %cst_287 : f32 to vector<16x4xf32>
    %231 = arith.mulf %230, %225 : vector<16x4xf32>
    %cst_288 = arith.constant 2.500000e-01 : f32
    %232 = vector.broadcast %cst_288 : f32 to vector<16x4xf32>
    %233 = arith.mulf %232, %227 : vector<16x4xf32>
    %234 = arith.addf %231, %233 : vector<16x4xf32>
    %cst_289 = arith.constant 7.500000e-01 : f32
    %235 = vector.broadcast %cst_289 : f32 to vector<16x4xf32>
    %236 = arith.mulf %235, %225 : vector<16x4xf32>
    %cst_290 = arith.constant 2.500000e-01 : f32
    %237 = vector.broadcast %cst_290 : f32 to vector<16x4xf32>
    %238 = arith.mulf %237, %229 : vector<16x4xf32>
    %239 = arith.addf %236, %238 : vector<16x4xf32>
    %240 = vector.extract_strided_slice %234 {offsets = [0, 0], sizes = [1, 4], strides = [1, 1]} : vector<16x4xf32> to vector<1x4xf32>
    %241 = vector.extract_strided_slice %239 {offsets = [0, 0], sizes = [15, 4], strides = [1, 1]} : vector<16x4xf32> to vector<15x4xf32>
    %242 = tpu.concatenate %240, %241 in 0 : vector<1x4xf32>, vector<15x4xf32> -> vector<16x4xf32>
    %c2_291 = arith.constant 2 : index
    %c0_292 = arith.constant 0 : index
    %c0_293 = arith.constant 0 : index
    %c0_294 = arith.constant 0 : index
    %243 = vector.load %arg3[%c2_291, %c0_292, %c0_293, %c0_294] : memref<3x3x4x8xf32, #tpu.memory_space<vmem>>, vector<1x1x4x8xf32>
    %244 = vector.shape_cast %243 : vector<1x1x4x8xf32> to vector<4x8xf32>
    %cst_295 = arith.constant dense<0.000000e+00> : vector<16x8xf32>
    %245 = tpu.matmul %242, %244, %cst_295 {dimension_numbers = #tpu.dot_dimension_numbers<[1], [0], [0], [1], [0, 0, 1, 1], [], []>} : vector<16x4xf32>, vector<4x8xf32>, vector<16x8xf32> -> vector<16x8xf32>
    %c2_296 = arith.constant 2 : index
    %c1_297 = arith.constant 1 : index
    %c0_298 = arith.constant 0 : index
    %c0_299 = arith.constant 0 : index
    %246 = vector.load %arg3[%c2_296, %c1_297, %c0_298, %c0_299] : memref<3x3x4x8xf32, #tpu.memory_space<vmem>>, vector<1x1x4x8xf32>
    %247 = vector.shape_cast %246 : vector<1x1x4x8xf32> to vector<4x8xf32>
    %cst_300 = arith.constant dense<0.000000e+00> : vector<16x8xf32>
    %248 = tpu.matmul %234, %247, %cst_300 {dimension_numbers = #tpu.dot_dimension_numbers<[1], [0], [0], [1], [0, 0, 1, 1], [], []>} : vector<16x4xf32>, vector<4x8xf32>, vector<16x8xf32> -> vector<16x8xf32>
    %249 = arith.addf %245, %248 : vector<16x8xf32>
    %c2_301 = arith.constant 2 : index
    %c2_302 = arith.constant 2 : index
    %c0_303 = arith.constant 0 : index
    %c0_304 = arith.constant 0 : index
    %250 = vector.load %arg3[%c2_301, %c2_302, %c0_303, %c0_304] : memref<3x3x4x8xf32, #tpu.memory_space<vmem>>, vector<1x1x4x8xf32>
    %251 = vector.shape_cast %250 : vector<1x1x4x8xf32> to vector<4x8xf32>
    %cst_305 = arith.constant dense<0.000000e+00> : vector<16x8xf32>
    %252 = tpu.matmul %239, %251, %cst_305 {dimension_numbers = #tpu.dot_dimension_numbers<[1], [0], [0], [1], [0, 0, 1, 1], [], []>} : vector<16x4xf32>, vector<4x8xf32>, vector<16x8xf32> -> vector<16x8xf32>
    %253 = arith.addf %249, %252 : vector<16x8xf32>
    %c2_306 = arith.constant 2 : index
    %c0_307 = arith.constant 0 : index
    %c0_308 = arith.constant 0 : index
    %c0_309 = arith.constant 0 : index
    %254 = vector.load %arg3[%c2_306, %c0_307, %c0_308, %c0_309] : memref<3x3x4x8xf32, #tpu.memory_space<vmem>>, vector<1x1x4x8xf32>
    %255 = vector.shape_cast %254 : vector<1x1x4x8xf32> to vector<4x8xf32>
    %cst_310 = arith.constant dense<0.000000e+00> : vector<16x8xf32>
    %256 = tpu.matmul %234, %255, %cst_310 {dimension_numbers = #tpu.dot_dimension_numbers<[1], [0], [0], [1], [0, 0, 1, 1], [], []>} : vector<16x4xf32>, vector<4x8xf32>, vector<16x8xf32> -> vector<16x8xf32>
    %c2_311 = arith.constant 2 : index
    %c1_312 = arith.constant 1 : index
    %c0_313 = arith.constant 0 : index
    %c0_314 = arith.constant 0 : index
    %257 = vector.load %arg3[%c2_311, %c1_312, %c0_313, %c0_314] : memref<3x3x4x8xf32, #tpu.memory_space<vmem>>, vector<1x1x4x8xf32>
    %258 = vector.shape_cast %257 : vector<1x1x4x8xf32> to vector<4x8xf32>
    %cst_315 = arith.constant dense<0.000000e+00> : vector<16x8xf32>
    %259 = tpu.matmul %239, %258, %cst_315 {dimension_numbers = #tpu.dot_dimension_numbers<[1], [0], [0], [1], [0, 0, 1, 1], [], []>} : vector<16x4xf32>, vector<4x8xf32>, vector<16x8xf32> -> vector<16x8xf32>
    %260 = arith.addf %256, %259 : vector<16x8xf32>
    %261 = vector.extract_strided_slice %234 {offsets = [1, 0], sizes = [15, 4], strides = [1, 1]} : vector<16x4xf32> to vector<15x4xf32>
    %262 = vector.extract_strided_slice %239 {offsets = [15, 0], sizes = [1, 4], strides = [1, 1]} : vector<16x4xf32> to vector<1x4xf32>
    %263 = tpu.concatenate %261, %262 in 0 : vector<15x4xf32>, vector<1x4xf32> -> vector<16x4xf32>
    %c2_316 = arith.constant 2 : index
    %c2_317 = arith.constant 2 : index
    %c0_318 = arith.constant 0 : index
    %c0_319 = arith.constant 0 : index
    %264 = vector.load %arg3[%c2_316, %c2_317, %c0_318, %c0_319] : memref<3x3x4x8xf32, #tpu.memory_space<vmem>>, vector<1x1x4x8xf32>
    %265 = vector.shape_cast %264 : vector<1x1x4x8xf32> to vector<4x8xf32>
    %cst_320 = arith.constant dense<0.000000e+00> : vector<16x8xf32>
    %266 = tpu.matmul %263, %265, %cst_320 {dimension_numbers = #tpu.dot_dimension_numbers<[1], [0], [0], [1], [0, 0, 1, 1], [], []>} : vector<16x4xf32>, vector<4x8xf32>, vector<16x8xf32> -> vector<16x8xf32>
    %267 = arith.addf %260, %266 : vector<16x8xf32>
    %268 = tpu.concatenate %253, %267 in 1 : vector<16x8xf32>, vector<16x8xf32> -> vector<16x16xf32>
    %c0_321 = arith.constant 0 : index
    %c15_322 = arith.constant 15 : index
    %c1_323 = arith.constant 1 : index
    %c0_324 = arith.constant 0 : index
    %c0_325 = arith.constant 0 : index
    %269 = vector.load %arg5[%c0_321, %c15_322, %c1_323, %c0_324, %c0_325] : memref<1x16x2x16x16xf32, #tpu.memory_space<vmem>>, vector<1x1x1x16x16xf32>
    %270 = vector.shape_cast %269 : vector<1x1x1x16x16xf32> to vector<16x16xf32>
    %271 = arith.subf %270, %268 : vector<16x16xf32>
    %c0_326 = arith.constant 0 : index
    %c15_327 = arith.constant 15 : index
    %c1_328 = arith.constant 1 : index
    %c0_329 = arith.constant 0 : index
    %c0_330 = arith.constant 0 : index
    %272 = vector.load %arg5[%c0_326, %c15_327, %c1_328, %c0_329, %c0_330] : memref<1x16x2x16x16xf32, #tpu.memory_space<vmem>>, vector<1x1x1x16x16xf32>
    %273 = vector.shape_cast %272 : vector<1x1x1x16x16xf32> to vector<16x16xf32>
    %274 = vector.shape_cast %271 : vector<16x16xf32> to vector<1x1x1x16x16xf32>
    tpu.vector_store %arg5[%c0_326, %c15_327, %c1_328, %c0_329, %c0_330], %274 {strides = array<i32>} : memref<1x16x2x16x16xf32, #tpu.memory_space<vmem>>, vector<1x1x1x16x16xf32>,
    %c0_331 = arith.constant 0 : index
    %c16_332 = arith.constant 16 : index
    %c1_333 = arith.constant 1 : index
    %c0_334 = arith.constant 0 : index
    %275 = vector.load %arg1[%c0_331, %c16_332, %c1_333, %c0_334] : memref<1x18x18x4xf32, #tpu.memory_space<vmem>>, vector<1x1x1x4xf32>
    %276 = vector.shape_cast %275 : vector<1x1x1x4xf32> to vector<1x4xf32>
    %c2_335 = arith.constant 2 : index
    %c0_336 = arith.constant 0 : index
    %c0_337 = arith.constant 0 : index
    %c0_338 = arith.constant 0 : index
    %277 = vector.load %arg3[%c2_335, %c0_336, %c0_337, %c0_338] : memref<3x3x4x8xf32, #tpu.memory_space<vmem>>, vector<1x1x4x8xf32>
    %278 = vector.shape_cast %277 : vector<1x1x4x8xf32> to vector<4x8xf32>
    %cst_339 = arith.constant dense<0.000000e+00> : vector<1x8xf32>
    %279 = tpu.matmul %276, %278, %cst_339 {dimension_numbers = #tpu.dot_dimension_numbers<[1], [0], [0], [1], [0, 0, 1, 1], [], []>} : vector<1x4xf32>, vector<4x8xf32>, vector<1x8xf32> -> vector<1x8xf32>
    %c0_340 = arith.constant 0 : index
    %c16_341 = arith.constant 16 : index
    %c16_342 = arith.constant 16 : index
    %c0_343 = arith.constant 0 : index
    %280 = vector.load %arg1[%c0_340, %c16_341, %c16_342, %c0_343] : memref<1x18x18x4xf32, #tpu.memory_space<vmem>>, vector<1x1x1x4xf32>
    %281 = vector.shape_cast %280 : vector<1x1x1x4xf32> to vector<1x4xf32>
    %c2_344 = arith.constant 2 : index
    %c2_345 = arith.constant 2 : index
    %c0_346 = arith.constant 0 : index
    %c0_347 = arith.constant 0 : index
    %282 = vector.load %arg3[%c2_344, %c2_345, %c0_346, %c0_347] : memref<3x3x4x8xf32, #tpu.memory_space<vmem>>, vector<1x1x4x8xf32>
    %283 = vector.shape_cast %282 : vector<1x1x4x8xf32> to vector<4x8xf32>
    %cst_348 = arith.constant dense<0.000000e+00> : vector<1x8xf32>
    %284 = tpu.matmul %281, %283, %cst_348 {dimension_numbers = #tpu.dot_dimension_numbers<[1], [0], [0], [1], [0, 0, 1, 1], [], []>} : vector<1x4xf32>, vector<4x8xf32>, vector<1x8xf32> -> vector<1x8xf32>
    %c0_349 = arith.constant 0 : index
    %c15_350 = arith.constant 15 : index
    %c1_351 = arith.constant 1 : index
    %c0_352 = arith.constant 0 : index
    %c0_353 = arith.constant 0 : index
    %285 = vector.load %arg5[%c0_349, %c15_350, %c1_351, %c0_352, %c0_353] : memref<1x16x2x16x16xf32, #tpu.memory_space<vmem>>, vector<1x1x1x1x8xf32>
    %286 = vector.shape_cast %285 : vector<1x1x1x1x8xf32> to vector<1x8xf32>
    %287 = arith.addf %286, %279 : vector<1x8xf32>
    %c0_354 = arith.constant 0 : index
    %c15_355 = arith.constant 15 : index
    %c1_356 = arith.constant 1 : index
    %c0_357 = arith.constant 0 : index
    %c0_358 = arith.constant 0 : index
    %288 = vector.load %arg5[%c0_354, %c15_355, %c1_356, %c0_357, %c0_358] : memref<1x16x2x16x16xf32, #tpu.memory_space<vmem>>, vector<1x1x1x1x8xf32>
    %289 = vector.shape_cast %288 : vector<1x1x1x1x8xf32> to vector<1x8xf32>
    %290 = vector.shape_cast %287 : vector<1x8xf32> to vector<1x1x1x1x8xf32>
    tpu.vector_store %arg5[%c0_354, %c15_355, %c1_356, %c0_357, %c0_358], %290 {strides = array<i32>} : memref<1x16x2x16x16xf32, #tpu.memory_space<vmem>>, vector<1x1x1x1x8xf32>,
    %c0_359 = arith.constant 0 : index
    %c15_360 = arith.constant 15 : index
    %c1_361 = arith.constant 1 : index
    %c15_362 = arith.constant 15 : index
    %c8_363 = arith.constant 8 : index
    %291 = vector.load %arg5[%c0_359, %c15_360, %c1_361, %c15_362, %c8_363] : memref<1x16x2x16x16xf32, #tpu.memory_space<vmem>>, vector<1x1x1x1x8xf32>
    %292 = vector.shape_cast %291 : vector<1x1x1x1x8xf32> to vector<1x8xf32>
    %293 = arith.addf %292, %284 : vector<1x8xf32>
    %c0_364 = arith.constant 0 : index
    %c15_365 = arith.constant 15 : index
    %c1_366 = arith.constant 1 : index
    %c15_367 = arith.constant 15 : index
    %c8_368 = arith.constant 8 : index
    %294 = vector.load %arg5[%c0_364, %c15_365, %c1_366, %c15_367, %c8_368] : memref<1x16x2x16x16xf32, #tpu.memory_space<vmem>>, vector<1x1x1x1x8xf32>
    %295 = vector.shape_cast %294 : vector<1x1x1x1x8xf32> to vector<1x8xf32>
    %296 = vector.shape_cast %293 : vector<1x8xf32> to vector<1x1x1x1x8xf32>
    tpu.vector_store %arg5[%c0_364, %c15_365, %c1_366, %c15_367, %c8_368], %296 {strides = array<i32>} : memref<1x16x2x16x16xf32, #tpu.memory_space<vmem>>, vector<1x1x1x1x8xf32>,
    return
  }
  func.func @transform_0(%arg0: i32) -> (i32, i32, i32, i32) {
    %c0_i32 = arith.constant 0 : i32
    %c0_i32_0 = arith.constant 0 : i32
    %c0_i32_1 = arith.constant 0 : i32
    %c0_i32_2 = arith.constant 0 : i32
    return %arg0, %c0_i32, %c0_i32_0, %c0_i32_1 : i32, i32, i32, i32
  }
  func.func @transform_1(%arg0: i32) -> (i32, i32, i32) {
    %c0_i32 = arith.constant 0 : i32
    %c0_i32_0 = arith.constant 0 : i32
    %c0_i32_1 = arith.constant 0 : i32
    %c0_i32_2 = arith.constant 0 : i32
    return %c0_i32, %c0_i32_0, %c0_i32_1 : i32, i32, i32
  }
  func.func @transform_2(%arg0: i32) -> (i32, i32, i32, i32) {
    %c0_i32 = arith.constant 0 : i32
    %c0_i32_0 = arith.constant 0 : i32
    %c0_i32_1 = arith.constant 0 : i32
    %c0_i32_2 = arith.constant 0 : i32
    %c0_i32_3 = arith.constant 0 : i32
    return %c0_i32, %c0_i32_0, %c0_i32_1, %c0_i32_2 : i32, i32, i32, i32
  }
  func.func @transform_3(%arg0: i32) -> (i32, i32) {
    %c0_i32 = arith.constant 0 : i32
    %c0_i32_0 = arith.constant 0 : i32
    %c0_i32_1 = arith.constant 0 : i32
    return %c0_i32, %c0_i32_0 : i32, i32
  }
  func.func @transform_4(%arg0: i32) -> (i32, i32, i32, i32, i32) {
    %c0_i32 = arith.constant 0 : i32
    %c0_i32_0 = arith.constant 0 : i32
    %c0_i32_1 = arith.constant 0 : i32
    %c0_i32_2 = arith.constant 0 : i32
    %c0_i32_3 = arith.constant 0 : i32
    return %arg0, %c0_i32, %c0_i32_0, %c0_i32_1, %c0_i32_2 : i32, i32, i32, i32, i32
  }
}

</mosaic_0001>

<llo_original>
// kernel: upsample_conv.1
$region0: #{upsample_conv.1}
  #allocation0 [shape = 'u32[]', space=smem, size = 0x4, offset = 0x4, fixed_abs, tag = 'smem constant byte address 0x4 - core index']
  #allocation1 [shape = 'u32[144,128]{1,0:T(1,128)}', space=vmem, size = 0x12000, scoped, tag = 'internal scratch']
  %s0 = inlined_call_operand.vmem [shape: f32[2,18,18,4], index: 0, kind: input, shape index: {}]
  %s1 = inlined_call_operand.vmem [shape: f32[2,36,16], index: 1, kind: input, shape index: {}]
  %s2 = inlined_call_operand.vmem [shape: f32[3,3,4,8], index: 2, kind: input, shape index: {}]
  %s3 = inlined_call_operand.vmem [shape: f32[1,16], index: 3, kind: input, shape index: {}]
  %s4 = inlined_call_operand.vmem [shape: f32[2,16,2,16,16], index: 4, kind: output, shape index: {}]
  %s5 = sld [smem:[#allocation0]]
  $region49: #{upsample_conv.1} parent=0
    _
  %s7 = ssub.s32 1, %s5
  %s8 = scalar_select 0, %s7, %s5
  loop: start=0, step=1, limit=4
  $region2: #{upsample_conv.1} parent=0 // loop_pre_header
    _
  $region3: #{upsample_conv.1} parent=0 // loop_header
    %s10 = sphi 0, %s14
    %p11 = scmp.ge.s32.totalorder %s10, 4
    %s20 = sphi 0, %s22
    %s23 = sphi 0, %s20
    %s24 = sphi 0, %s23
    %s40 = sphi 0, %s24
    %s44 = sphi 0, %s44
    %s46 = sphi 0, %s44
    %s47 = sphi 0, %s46
    %s61 = sphi 0, %s47
    %s65 = sphi 0, %s65
    %s67 = sphi 0, %s65
    %s68 = sphi 0, %s67
    %s82 = sphi 0, %s68
    %s86 = sphi 0, %s86
    %s88 = sphi 0, %s86
    %s89 = sphi 0, %s88
    %s103 = sphi 0, %s89
    %s109 = sphi 0, %s111
    %s112 = sphi 0, %s109
    %s113 = sphi 0, %s112
    %s129 = sphi 0, %s113
  $region4: #{upsample_conv.1} parent=0 // loop_header_branch
    %13 = sbr.rel (%p11) target = $region8
  $region5: #{upsample_conv.1} parent=0 // loop_body
    %s15 = ssub.s32 %s10, 1
    %s16 = ssub.s32 %s10, 2
    %s17 = sadd.s32 %s10, 1
    %s18 = ssub.s32 %s10, %s17
    %p19 = scmp.eq.s32.totalorder %s18, 0
    %s21 = sadd.s32 %s20, 1
    %s22 = scalar_select %p19, %s20, %s21
    %p25 = pneg %p19
    %p26 = scmp.eq.s32.totalorder %s10, 1
    %p27 = por %p25, %p26
    %p28 = scmp.ne.s32.totalorder %s20, %s23
    %p29 = scmp.eq.s32.totalorder %s10, 0
    %p30 = por %p28, %p29
    %p31 = scmp.ne.s32.totalorder %s20, %s23
    %p32 = scmp.eq.s32.totalorder %s15, 1
    %p33 = por %p31, %p32
    %p34 = scmp.ne.s32.totalorder %s23, %s24
    %p35 = scmp.eq.s32.totalorder %s15, 0
    %p36 = por %p34, %p35
    %p37 = scmp.ne.s32.totalorder %s23, %s24
    %p38 = scmp.eq.s32.totalorder %s16, 1
    %p39 = por %p37, %p38
    %p41 = scmp.ne.s32.totalorder %s24, %s40
    %p42 = scmp.eq.s32.totalorder %s16, 0
    %p43 = por %p41, %p42
    %s45 = sadd.s32 %s44, 1
    %p48 = scmp.eq.s32.totalorder %s10, 1
    %p49 = scmp.ne.s32.totalorder %s44, %s46
    %p50 = scmp.eq.s32.totalorder %s10, 0
    %p51 = por %p49, %p50
    %p52 = scmp.ne.s32.totalorder %s44, %s46
    %p53 = scmp.eq.s32.totalorder %s15, 1
    %p54 = por %p52, %p53
    %p55 = scmp.ne.s32.totalorder %s46, %s47
    %p56 = scmp.eq.s32.totalorder %s15, 0
    %p57 = por %p55, %p56
    %p58 = scmp.ne.s32.totalorder %s46, %s47
    %p59 = scmp.eq.s32.totalorder %s16, 1
    %p60 = por %p58, %p59
    %p62 = scmp.ne.s32.totalorder %s47, %s61
    %p63 = scmp.eq.s32.totalorder %s16, 0
    %p64 = por %p62, %p63
    %s66 = sadd.s32 %s65, 1
    %p69 = scmp.eq.s32.totalorder %s10, 1
    %p70 = scmp.ne.s32.totalorder %s65, %s67
    %p71 = scmp.eq.s32.totalorder %s10, 0
    %p72 = por %p70, %p71
    %p73 = scmp.ne.s32.totalorder %s65, %s67
    %p74 = scmp.eq.s32.totalorder %s15, 1
    %p75 = por %p73, %p74
    %p76 = scmp.ne.s32.totalorder %s67, %s68
    %p77 = scmp.eq.s32.totalorder %s15, 0
    %p78 = por %p76, %p77
    %p79 = scmp.ne.s32.totalorder %s67, %s68
    %p80 = scmp.eq.s32.totalorder %s16, 1
    %p81 = por %p79, %p80
    %p83 = scmp.ne.s32.totalorder %s68, %s82
    %p84 = scmp.eq.s32.totalorder %s16, 0
    %p85 = por %p83, %p84
    %s87 = sadd.s32 %s86, 1
    %p90 = scmp.eq.s32.totalorder %s10, 1
    %p91 = scmp.ne.s32.totalorder %s86, %s88
    %p92 = scmp.eq.s32.totalorder %s10, 0
    %p93 = por %p91, %p92
    %p94 = scmp.ne.s32.totalorder %s86, %s88
    %p95 = scmp.eq.s32.totalorder %s15, 1
    %p96 = por %p94, %p95
    %p97 = scmp.ne.s32.totalorder %s88, %s89
    %p98 = scmp.eq.s32.totalorder %s15, 0
    %p99 = por %p97, %p98
    %p100 = scmp.ne.s32.totalorder %s88, %s89
    %p101 = scmp.eq.s32.totalorder %s16, 1
    %p102 = por %p100, %p101
    %p104 = scmp.ne.s32.totalorder %s89, %s103
    %p105 = scmp.eq.s32.totalorder %s16, 0
    %p106 = por %p104, %p105
    %s107 = ssub.s32 %s10, %s17
    %p108 = scmp.eq.s32.totalorder %s107, 0
    %s110 = sadd.s32 %s109, 1
    %s111 = scalar_select %p108, %s109, %s110
    %p114 = pneg %p108
    %p115 = scmp.eq.s32.totalorder %s10, 1
    %p116 = por %p114, %p115
    %p117 = scmp.ne.s32.totalorder %s109, %s112
    %p118 = scmp.eq.s32.totalorder %s10, 0
    %p119 = por %p117, %p118
    %p120 = scmp.ne.s32.totalorder %s109, %s112
    %p121 = scmp.eq.s32.totalorder %s15, 1
    %p122 = por %p120, %p121
    %p123 = scmp.ne.s32.totalorder %s112, %s113
    %p124 = scmp.eq.s32.totalorder %s15, 0
    %p125 = por %p123, %p124
    %p126 = scmp.ne.s32.totalorder %s112, %s113
    %p127 = scmp.eq.s32.totalorder %s16, 1
    %p128 = por %p126, %p127
    %p130 = scmp.ne.s32.totalorder %s113, %s129
    %p131 = scmp.eq.s32.totalorder %s16, 0
    %p132 = por %p130, %p131
    %p133 = scmp.le.s32.totalorder 1, %s10
    %p134 = scmp.lt.s32.totalorder %s10, 3
    %p135 = pnand %p133, %p134
    %p136 = pneg %p135
    // Predicated region
    $region9: #{upsample_conv.1} parent=5 // pred_check
      _
    $region10: #{upsample_conv.1} parent=5 // pred_check_branch
      %138 = sbr.rel (%p135) target = $region12
    $region11: #{upsample_conv.1} parent=5 // pred_region
      %s139 = ssub.s32 %s10, 1
      // Predicated region
      $region13: #{upsample_conv.1} parent=11 // pred_check
        %p140 = pneg %p57
      $region14: #{upsample_conv.1} parent=11 // pred_check_branch
        %142 = sbr.rel (%p140) target = $region16
      $region15: #{upsample_conv.1} parent=11 // pred_region
        _
      $region16: #{upsample_conv.1} parent=11 // pred_fallthru
        _
      // Predicated region
      $region17: #{upsample_conv.1} parent=11 // pred_check
        %p143 = pneg %p78
      $region18: #{upsample_conv.1} parent=11 // pred_check_branch
        %145 = sbr.rel (%p143) target = $region20
      $region19: #{upsample_conv.1} parent=11 // pred_region
        _
      $region20: #{upsample_conv.1} parent=11 // pred_fallthru
        _
      // Predicated region
      $region21: #{upsample_conv.1} parent=11 // pred_check
        %p146 = pneg %p99
      $region22: #{upsample_conv.1} parent=11 // pred_check_branch
        %148 = sbr.rel (%p146) target = $region24
      $region23: #{upsample_conv.1} parent=11 // pred_region
        _
      $region24: #{upsample_conv.1} parent=11 // pred_fallthru
        _
    $region12: #{upsample_conv.1} parent=5 // pred_fallthru
      _
    %p149 = scmp.lt.s32.totalorder %s10, 2
    // Predicated region
    $region25: #{upsample_conv.1} parent=5 // pred_check
      %p150 = pneg %p149
    $region26: #{upsample_conv.1} parent=5 // pred_check_branch
      %152 = sbr.rel (%p150) target = $region28
    $region27: #{upsample_conv.1} parent=5 // pred_region
      // Predicated region
      $region29: #{upsample_conv.1} parent=27 // pred_check
        %p153 = pneg %p30
      $region30: #{upsample_conv.1} parent=27 // pred_check_branch
        %155 = sbr.rel (%p153) target = $region32
      $region31: #{upsample_conv.1} parent=27 // pred_region
        %p156 = scmp.lt.s32.totalorder %s10, 1
        %s157 = scalar_select %p156, %s10, 1
        %s158 = smul.addr %s157, 54
        %s159 = smul.addr %s158, 8
        %s160 = scalar_lea.vmem %s0, %s159
      $region32: #{upsample_conv.1} parent=27 // pred_fallthru
        _
    $region28: #{upsample_conv.1} parent=5 // pred_fallthru
      _
    %p161 = scmp.le.s32.totalorder 1, %s10
    %p162 = scmp.lt.s32.totalorder %s10, 3
    %p163 = pnand %p161, %p162
    %p164 = pneg %p163
    // Predicated region
    $region33: #{upsample_conv.1} parent=5 // pred_check
      _
    $region34: #{upsample_conv.1} parent=5 // pred_check_branch
      %166 = sbr.rel (%p163) target = $region36
    $region35: #{upsample_conv.1} parent=5 // pred_region
      %s167 = ssub.s32 %s10, 1
      %p168 = scmp.lt.s32.totalorder %s15, 1
      %s169 = scalar_select %p168, %s15, 1
      %s170 = smul.addr %s169, 54
      %s171 = smul.addr %s170, 8
      %s172 = scalar_lea.vmem %s0, %s171
      %p173 = pneg %p36
      %p174 = pneg %p33
      %p175 = pneg %p57
      %p176 = pneg %p54
      %p177 = pneg %p78
      %p178 = pneg %p75
      %p179 = pneg %p99
      %p180 = pneg %p96
      %p181 = pneg %p125
      %p182 = pneg %p122
      %p183 = scmp.lt.s32.totalorder %s15, 1
      %s184 = scalar_select %p183, %s15, 1
      %s185 = smul.addr %s184, 64
      %s186 = smul.addr %s185, 8
      %s187 = scalar_lea.vmem %s4, %s186
      %p188 = scmp.lt.s32.totalorder %s15, 1
      %s189 = scalar_select %p188, %s15, 1
      %s190 = smul.addr %s189, 54
      %s191 = smul.addr %s190, 8
      %s192 = scalar_lea.vmem %s0, %s191
      %p193 = scmp.lt.s32.totalorder %s15, 1
      %s194 = scalar_select %p193, %s15, 1
      %s195 = smul.addr %s194, 64
      %s196 = smul.addr %s195, 8
      %s197 = scalar_lea.vmem %s4, %s196
      %v198 = vld [vmem:[%s192] sm:$0xff]
      %v199 = vld [vmem:[%s192 + $0x8] sm:$0xff]
      %v200 = vld [vmem:[%s192 + $0x18] sm:$0xff]
      %v201 = vld [vmem:[%s192 + $0x20] sm:$0xff]
      %v202 = vld [vmem:[%s192 + $0x30] sm:$0xff]
      %v203 = vld [vmem:[%s192 + $0x38] sm:$0xff]
      %v204 = vld [vmem:[%s192 + $0x48] sm:$0xff]
      %v205 = vld [vmem:[%s192 + $0x50] sm:$0xff]
      %v206 = vld [vmem:[%s192 + $0x60] sm:$0xff]
      %v207 = vld [vmem:[%s192 + $0x68] sm:$0xff]
      %v208 = vld [vmem:[%s192 + $0x78] sm:$0xff]
      %v209 = vld [vmem:[%s192 + $0x80] sm:$0xff]
      %v210 = vld [vmem:[%s192 + $0x90] sm:$0xff]
      %v211 = vld [vmem:[%s192 + $0x98] sm:$0xff]
      %v212 = vld [vmem:[%s192 + $0xa8] sm:$0xff]
      %v213 = vld [vmem:[%s192 + $0xb0] sm:$0xff]
      %v214 = vld [vmem:[%s192 + $0xc0] sm:$0xff]
      %v215 = vld [vmem:[%s192 + $0xc8] sm:$0xff]
      %v216 = vld [vmem:[%s192 + $0xd8] sm:$0xff]
      %v217 = vld [vmem:[%s192 + $0xe0] sm:$0xff]
      %v218 = vld [vmem:[%s192 + $0xf0] sm:$0xff]
      %v219 = vld [vmem:[%s192 + $0xf8] sm:$0xff]
      %v220 = vld [vmem:[%s192 + $0x108] sm:$0xff]
      %v221 = vld [vmem:[%s192 + $0x110] sm:$0xff]
      %v222 = vld [vmem:[%s192 + $0x120] sm:$0xff]
      %v223 = vld [vmem:[%s192 + $0x128] sm:$0xff]
      %v224 = vld [vmem:[%s192 + $0x138] sm:$0xff]
      %v225 = vld [vmem:[%s192 + $0x140] sm:$0xff]
      %v226 = vld [vmem:[%s192 + $0x150] sm:$0xff]
      %v227 = vld [vmem:[%s192 + $0x158] sm:$0xff]
      %v228 = vld [vmem:[%s192 + $0x168] sm:$0xff]
      %v229 = vld [vmem:[%s192 + $0x170] sm:$0xff]
      %v230 = vld [vmem:[%s192 + $0x1] sm:$0xff]
      %v231 = vld [vmem:[%s192 + $0x9] sm:$0xff]
      %v232 = vld [vmem:[%s192 + $0x19] sm:$0xff]
      %v233 = vld [vmem:[%s192 + $0x21] sm:$0xff]
      %v234 = vld [vmem:[%s192 + $0x31] sm:$0xff]
      %v235 = vld [vmem:[%s192 + $0x39] sm:$0xff]
      %v236 = vld [vmem:[%s192 + $0x49] sm:$0xff]
      %v237 = vld [vmem:[%s192 + $0x51] sm:$0xff]
      %v238 = vld [vmem:[%s192 + $0x61] sm:$0xff]
      %v239 = vld [vmem:[%s192 + $0x69] sm:$0xff]
      %v240 = vld [vmem:[%s192 + $0x79] sm:$0xff]
      %v241 = vld [vmem:[%s192 + $0x81] sm:$0xff]
      %v242 = vld [vmem:[%s192 + $0x91] sm:$0xff]
      %v243 = vld [vmem:[%s192 + $0x99] sm:$0xff]
      %v244 = vld [vmem:[%s192 + $0xa9] sm:$0xff]
      %v245 = vld [vmem:[%s192 + $0xb1] sm:$0xff]
      %v246 = vld [vmem:[%s192 + $0xc1] sm:$0xff]
      %v247 = vld [vmem:[%s192 + $0xc9] sm:$0xff]
      %v248 = vld [vmem:[%s192 + $0xd9] sm:$0xff]
      %v249 = vld [vmem:[%s192 + $0xe1] sm:$0xff]
      %v250 = vld [vmem:[%s192 + $0xf1] sm:$0xff]
      %v251 = vld [vmem:[%s192 + $0xf9] sm:$0xff]
      %v252 = vld [vmem:[%s192 + $0x109] sm:$0xff]
      %v253 = vld [vmem:[%s192 + $0x111] sm:$0xff]
      %v254 = vld [vmem:[%s192 + $0x121] sm:$0xff]
      %v255 = vld [vmem:[%s192 + $0x129] sm:$0xff]
      %v256 = vld [vmem:[%s192 + $0x139] sm:$0xff]
      %v257 = vld [vmem:[%s192 + $0x141] sm:$0xff]
      %v258 = vld [vmem:[%s192 + $0x151] sm:$0xff]
      %v259 = vld [vmem:[%s192 + $0x159] sm:$0xff]
      %v260 = vld [vmem:[%s192 + $0x169] sm:$0xff]
      %v261 = vld [vmem:[%s192 + $0x171] sm:$0xff]
      %v262 = vld [vmem:[%s192 + $0x2] sm:$0xff]
      %v263 = vld [vmem:[%s192 + $0xa] sm:$0xff]
      %v264 = vld [vmem:[%s192 + $0x1a] sm:$0xff]
      %v265 = vld [vmem:[%s192 + $0x22] sm:$0xff]
      %v266 = vld [vmem:[%s192 + $0x32] sm:$0xff]
      %v267 = vld [vmem:[%s192 + $0x3a] sm:$0xff]
      %v268 = vld [vmem:[%s192 + $0x4a] sm:$0xff]
      %v269 = vld [vmem:[%s192 + $0x52] sm:$0xff]
      %v270 = vld [vmem:[%s192 + $0x62] sm:$0xff]
      %v271 = vld [vmem:[%s192 + $0x6a] sm:$0xff]
      %v272 = vld [vmem:[%s192 + $0x7a] sm:$0xff]
      %v273 = vld [vmem:[%s192 + $0x82] sm:$0xff]
      %v274 = vld [vmem:[%s192 + $0x92] sm:$0xff]
      %v275 = vld [vmem:[%s192 + $0x9a] sm:$0xff]
      %v276 = vld [vmem:[%s192 + $0xaa] sm:$0xff]
      %v277 = vld [vmem:[%s192 + $0xb2] sm:$0xff]
      %v278 = vld [vmem:[%s192 + $0xc2] sm:$0xff]
      %v279 = vld [vmem:[%s192 + $0xca] sm:$0xff]
      %v280 = vld [vmem:[%s192 + $0xda] sm:$0xff]
      %v281 = vld [vmem:[%s192 + $0xe2] sm:$0xff]
      %v282 = vld [vmem:[%s192 + $0xf2] sm:$0xff]
      %v283 = vld [vmem:[%s192 + $0xfa] sm:$0xff]
      %v284 = vld [vmem:[%s192 + $0x10a] sm:$0xff]
      %v285 = vld [vmem:[%s192 + $0x112] sm:$0xff]
      %v286 = vld [vmem:[%s192 + $0x122] sm:$0xff]
      %v287 = vld [vmem:[%s192 + $0x12a] sm:$0xff]
      %v288 = vld [vmem:[%s192 + $0x13a] sm:$0xff]
      %v289 = vld [vmem:[%s192 + $0x142] sm:$0xff]
      %v290 = vld [vmem:[%s192 + $0x152] sm:$0xff]
      %v291 = vld [vmem:[%s192 + $0x15a] sm:$0xff]
      %v292 = vld [vmem:[%s192 + $0x16a] sm:$0xff]
      %v293 = vld [vmem:[%s192 + $0x172] sm:$0xff]
      %s294 = scalar_lea.vmem %s192, 24
      %v295 = vld [vmem:[%s294] sm:$0xff]
      %v296 = vld [vmem:[%s294 + $0x8] sm:$0xff]
      %v297 = vld [vmem:[%s294 + $0x18] sm:$0xff]
      %v298 = vld [vmem:[%s294 + $0x20] sm:$0xff]
      %v299 = vld [vmem:[%s294 + $0x30] sm:$0xff]
      %v300 = vld [vmem:[%s294 + $0x38] sm:$0xff]
      %v301 = vld [vmem:[%s294 + $0x48] sm:$0xff]
      %v302 = vld [vmem:[%s294 + $0x50] sm:$0xff]
      %v303 = vld [vmem:[%s294 + $0x60] sm:$0xff]
      %v304 = vld [vmem:[%s294 + $0x68] sm:$0xff]
      %v305 = vld [vmem:[%s294 + $0x78] sm:$0xff]
      %v306 = vld [vmem:[%s294 + $0x80] sm:$0xff]
      %v307 = vld [vmem:[%s294 + $0x90] sm:$0xff]
      %v308 = vld [vmem:[%s294 + $0x98] sm:$0xff]
      %v309 = vld [vmem:[%s294 + $0xa8] sm:$0xff]
      %v310 = vld [vmem:[%s294 + $0xb0] sm:$0xff]
      %v311 = vld [vmem:[%s294 + $0xc0] sm:$0xff]
      %v312 = vld [vmem:[%s294 + $0xc8] sm:$0xff]
      %v313 = vld [vmem:[%s294 + $0xd8] sm:$0xff]
      %v314 = vld [vmem:[%s294 + $0xe0] sm:$0xff]
      %v315 = vld [vmem:[%s294 + $0xf0] sm:$0xff]
      %v316 = vld [vmem:[%s294 + $0xf8] sm:$0xff]
      %v317 = vld [vmem:[%s294 + $0x108] sm:$0xff]
      %v318 = vld [vmem:[%s294 + $0x110] sm:$0xff]
      %v319 = vld [vmem:[%s294 + $0x120] sm:$0xff]
      %v320 = vld [vmem:[%s294 + $0x128] sm:$0xff]
      %v321 = vld [vmem:[%s294 + $0x138] sm:$0xff]
      %v322 = vld [vmem:[%s294 + $0x140] sm:$0xff]
      %v323 = vld [vmem:[%s294 + $0x150] sm:$0xff]
      %v324 = vld [vmem:[%s294 + $0x158] sm:$0xff]
      %v325 = vld [vmem:[%s294 + $0x168] sm:$0xff]
      %v326 = vld [vmem:[%s294 + $0x170] sm:$0xff]
      %v327 = vld [vmem:[%s294 + $0x1] sm:$0xff]
      %v328 = vld [vmem:[%s294 + $0x9] sm:$0xff]
      %v329 = vld [vmem:[%s294 + $0x19] sm:$0xff]
      %v330 = vld [vmem:[%s294 + $0x21] sm:$0xff]
      %v331 = vld [vmem:[%s294 + $0x31] sm:$0xff]
      %v332 = vld [vmem:[%s294 + $0x39] sm:$0xff]
      %v333 = vld [vmem:[%s294 + $0x49] sm:$0xff]
      %v334 = vld [vmem:[%s294 + $0x51] sm:$0xff]
      %v335 = vld [vmem:[%s294 + $0x61] sm:$0xff]
      %v336 = vld [vmem:[%s294 + $0x69] sm:$0xff]
      %v337 = vld [vmem:[%s294 + $0x79] sm:$0xff]
      %v338 = vld [vmem:[%s294 + $0x81] sm:$0xff]
      %v339 = vld [vmem:[%s294 + $0x91] sm:$0xff]
      %v340 = vld [vmem:[%s294 + $0x99] sm:$0xff]
      %v341 = vld [vmem:[%s294 + $0xa9] sm:$0xff]
      %v342 = vld [vmem:[%s294 + $0xb1] sm:$0xff]
      %v343 = vld [vmem:[%s294 + $0xc1] sm:$0xff]
      %v344 = vld [vmem:[%s294 + $0xc9] sm:$0xff]
      %v345 = vld [vmem:[%s294 + $0xd9] sm:$0xff]
      %v346 = vld [vmem:[%s294 + $0xe1] sm:$0xff]
      %v347 = vld [vmem:[%s294 + $0xf1] sm:$0xff]
      %v348 = vld [vmem:[%s294 + $0xf9] sm:$0xff]
      %v349 = vld [vmem:[%s294 + $0x109] sm:$0xff]
      %v350 = vld [vmem:[%s294 + $0x111] sm:$0xff]
      %v351 = vld [vmem:[%s294 + $0x121] sm:$0xff]
      %v352 = vld [vmem:[%s294 + $0x129] sm:$0xff]
      %v353 = vld [vmem:[%s294 + $0x139] sm:$0xff]
      %v354 = vld [vmem:[%s294 + $0x141] sm:$0xff]
      %v355 = vld [vmem:[%s294 + $0x151] sm:$0xff]
      %v356 = vld [vmem:[%s294 + $0x159] sm:$0xff]
      %v357 = vld [vmem:[%s294 + $0x169] sm:$0xff]
      %v358 = vld [vmem:[%s294 + $0x171] sm:$0xff]
      %v359 = vld [vmem:[%s294 + $0x2] sm:$0xff]
      %v360 = vld [vmem:[%s294 + $0xa] sm:$0xff]
      %v361 = vld [vmem:[%s294 + $0x1a] sm:$0xff]
      %v362 = vld [vmem:[%s294 + $0x22] sm:$0xff]
      %v363 = vld [vmem:[%s294 + $0x32] sm:$0xff]
      %v364 = vld [vmem:[%s294 + $0x3a] sm:$0xff]
      %v365 = vld [vmem:[%s294 + $0x4a] sm:$0xff]
      %v366 = vld [vmem:[%s294 + $0x52] sm:$0xff]
      %v367 = vld [vmem:[%s294 + $0x62] sm:$0xff]
      %v368 = vld [vmem:[%s294 + $0x6a] sm:$0xff]
      %v369 = vld [vmem:[%s294 + $0x7a] sm:$0xff]
      %v370 = vld [vmem:[%s294 + $0x82] sm:$0xff]
      %v371 = vld [vmem:[%s294 + $0x92] sm:$0xff]
      %v372 = vld [vmem:[%s294 + $0x9a] sm:$0xff]
      %v373 = vld [vmem:[%s294 + $0xaa] sm:$0xff]
      %v374 = vld [vmem:[%s294 + $0xb2] sm:$0xff]
      %v375 = vld [vmem:[%s294 + $0xc2] sm:$0xff]
      %v376 = vld [vmem:[%s294 + $0xca] sm:$0xff]
      %v377 = vld [vmem:[%s294 + $0xda] sm:$0xff]
      %v378 = vld [vmem:[%s294 + $0xe2] sm:$0xff]
      %v379 = vld [vmem:[%s294 + $0xf2] sm:$0xff]
      %v380 = vld [vmem:[%s294 + $0xfa] sm:$0xff]
      %v381 = vld [vmem:[%s294 + $0x10a] sm:$0xff]
      %v382 = vld [vmem:[%s294 + $0x112] sm:$0xff]
      %v383 = vld [vmem:[%s294 + $0x122] sm:$0xff]
      %v384 = vld [vmem:[%s294 + $0x12a] sm:$0xff]
      %v385 = vld [vmem:[%s294 + $0x13a] sm:$0xff]
      %v386 = vld [vmem:[%s294 + $0x142] sm:$0xff]
      %v387 = vld [vmem:[%s294 + $0x152] sm:$0xff]
      %v388 = vld [vmem:[%s294 + $0x15a] sm:$0xff]
      %v389 = vld [vmem:[%s294 + $0x16a] sm:$0xff]
      %v390 = vld [vmem:[%s294 + $0x172] sm:$0xff]
      %s391 = scalar_lea.vmem %s192, 48
      %v392 = vld [vmem:[%s391] sm:$0xff]
      %v393 = vld [vmem:[%s391 + $0x8] sm:$0xff]
      %v394 = vld [vmem:[%s391 + $0x18] sm:$0xff]
      %v395 = vld [vmem:[%s391 + $0x20] sm:$0xff]
      %v396 = vld [vmem:[%s391 + $0x30] sm:$0xff]
      %v397 = vld [vmem:[%s391 + $0x38] sm:$0xff]
      %v398 = vld [vmem:[%s391 + $0x48] sm:$0xff]
      %v399 = vld [vmem:[%s391 + $0x50] sm:$0xff]
      %v400 = vld [vmem:[%s391 + $0x60] sm:$0xff]
      %v401 = vld [vmem:[%s391 + $0x68] sm:$0xff]
      %v402 = vld [vmem:[%s391 + $0x78] sm:$0xff]
      %v403 = vld [vmem:[%s391 + $0x80] sm:$0xff]
      %v404 = vld [vmem:[%s391 + $0x90] sm:$0xff]
      %v405 = vld [vmem:[%s391 + $0x98] sm:$0xff]
      %v406 = vld [vmem:[%s391 + $0xa8] sm:$0xff]
      %v407 = vld [vmem:[%s391 + $0xb0] sm:$0xff]
      %v408 = vld [vmem:[%s391 + $0xc0] sm:$0xff]
      %v409 = vld [vmem:[%s391 + $0xc8] sm:$0xff]
      %v410 = vld [vmem:[%s391 + $0xd8] sm:$0xff]
      %v411 = vld [vmem:[%s391 + $0xe0] sm:$0xff]
      %v412 = vld [vmem:[%s391 + $0xf0] sm:$0xff]
      %v413 = vld [vmem:[%s391 + $0xf8] sm:$0xff]
      %v414 = vld [vmem:[%s391 + $0x108] sm:$0xff]
      %v415 = vld [vmem:[%s391 + $0x110] sm:$0xff]
      %v416 = vld [vmem:[%s391 + $0x120] sm:$0xff]
      %v417 = vld [vmem:[%s391 + $0x128] sm:$0xff]
      %v418 = vld [vmem:[%s391 + $0x138] sm:$0xff]
      %v419 = vld [vmem:[%s391 + $0x140] sm:$0xff]
      %v420 = vld [vmem:[%s391 + $0x150] sm:$0xff]
      %v421 = vld [vmem:[%s391 + $0x158] sm:$0xff]
      %v422 = vld [vmem:[%s391 + $0x168] sm:$0xff]
      %v423 = vld [vmem:[%s391 + $0x170] sm:$0xff]
      %v424 = vld [vmem:[%s391 + $0x1] sm:$0xff]
      %v425 = vld [vmem:[%s391 + $0x9] sm:$0xff]
      %v426 = vld [vmem:[%s391 + $0x19] sm:$0xff]
      %v427 = vld [vmem:[%s391 + $0x21] sm:$0xff]
      %v428 = vld [vmem:[%s391 + $0x31] sm:$0xff]
      %v429 = vld [vmem:[%s391 + $0x39] sm:$0xff]
      %v430 = vld [vmem:[%s391 + $0x49] sm:$0xff]
      %v431 = vld [vmem:[%s391 + $0x51] sm:$0xff]
      %v432 = vld [vmem:[%s391 + $0x61] sm:$0xff]
      %v433 = vld [vmem:[%s391 + $0x69] sm:$0xff]
      %v434 = vld [vmem:[%s391 + $0x79] sm:$0xff]
      %v435 = vld [vmem:[%s391 + $0x81] sm:$0xff]
      %v436 = vld [vmem:[%s391 + $0x91] sm:$0xff]
      %v437 = vld [vmem:[%s391 + $0x99] sm:$0xff]
      %v438 = vld [vmem:[%s391 + $0xa9] sm:$0xff]
      %v439 = vld [vmem:[%s391 + $0xb1] sm:$0xff]
      %v440 = vld [vmem:[%s391 + $0xc1] sm:$0xff]
      %v441 = vld [vmem:[%s391 + $0xc9] sm:$0xff]
      %v442 = vld [vmem:[%s391 + $0xd9] sm:$0xff]
      %v443 = vld [vmem:[%s391 + $0xe1] sm:$0xff]
      %v444 = vld [vmem:[%s391 + $0xf1] sm:$0xff]
      %v445 = vld [vmem:[%s391 + $0xf9] sm:$0xff]
      %v446 = vld [vmem:[%s391 + $0x109] sm:$0xff]
      %v447 = vld [vmem:[%s391 + $0x111] sm:$0xff]
      %v448 = vld [vmem:[%s391 + $0x121] sm:$0xff]
      %v449 = vld [vmem:[%s391 + $0x129] sm:$0xff]
      %v450 = vld [vmem:[%s391 + $0x139] sm:$0xff]
      %v451 = vld [vmem:[%s391 + $0x141] sm:$0xff]
      %v452 = vld [vmem:[%s391 + $0x151] sm:$0xff]
      %v453 = vld [vmem:[%s391 + $0x159] sm:$0xff]
      %v454 = vld [vmem:[%s391 + $0x169] sm:$0xff]
      %v455 = vld [vmem:[%s391 + $0x171] sm:$0xff]
      %v456 = vld [vmem:[%s391 + $0x2] sm:$0xff]
      %v457 = vld [vmem:[%s391 + $0xa] sm:$0xff]
      %v458 = vld [vmem:[%s391 + $0x1a] sm:$0xff]
      %v459 = vld [vmem:[%s391 + $0x22] sm:$0xff]
      %v460 = vld [vmem:[%s391 + $0x32] sm:$0xff]
      %v461 = vld [vmem:[%s391 + $0x3a] sm:$0xff]
      %v462 = vld [vmem:[%s391 + $0x4a] sm:$0xff]
      %v463 = vld [vmem:[%s391 + $0x52] sm:$0xff]
      %v464 = vld [vmem:[%s391 + $0x62] sm:$0xff]
      %v465 = vld [vmem:[%s391 + $0x6a] sm:$0xff]
      %v466 = vld [vmem:[%s391 + $0x7a] sm:$0xff]
      %v467 = vld [vmem:[%s391 + $0x82] sm:$0xff]
      %v468 = vld [vmem:[%s391 + $0x92] sm:$0xff]
      %v469 = vld [vmem:[%s391 + $0x9a] sm:$0xff]
      %v470 = vld [vmem:[%s391 + $0xaa] sm:$0xff]
      %v471 = vld [vmem:[%s391 + $0xb2] sm:$0xff]
      %v472 = vld [vmem:[%s391 + $0xc2] sm:$0xff]
      %v473 = vld [vmem:[%s391 + $0xca] sm:$0xff]
      %v474 = vld [vmem:[%s391 + $0xda] sm:$0xff]
      %v475 = vld [vmem:[%s391 + $0xe2] sm:$0xff]
      %v476 = vld [vmem:[%s391 + $0xf2] sm:$0xff]
      %v477 = vld [vmem:[%s391 + $0xfa] sm:$0xff]
      %v478 = vld [vmem:[%s391 + $0x10a] sm:$0xff]
      %v479 = vld [vmem:[%s391 + $0x112] sm:$0xff]
      %v480 = vld [vmem:[%s391 + $0x122] sm:$0xff]
      %v481 = vld [vmem:[%s391 + $0x12a] sm:$0xff]
      %v482 = vld [vmem:[%s391 + $0x13a] sm:$0xff]
      %v483 = vld [vmem:[%s391 + $0x142] sm:$0xff]
      %v484 = vld [vmem:[%s391 + $0x152] sm:$0xff]
      %v485 = vld [vmem:[%s391 + $0x15a] sm:$0xff]
      %v486 = vld [vmem:[%s391 + $0x16a] sm:$0xff]
      %v487 = vld [vmem:[%s391 + $0x172] sm:$0xff]
      %520 = vrot.lane.b32.xlu0 %v230, 4
      %v521 = vpop.permute.xlu0 %520
      %522 = vrot.lane.b32.xlu0 %v231, 4
      %v523 = vpop.permute.xlu0 %522
      %524 = vrot.lane.b32.xlu0 %v232, 4
      %v525 = vpop.permute.xlu0 %524
      %526 = vrot.lane.b32.xlu0 %v233, 4
      %v527 = vpop.permute.xlu0 %526
      %528 = vrot.lane.b32.xlu0 %v234, 4
      %v529 = vpop.permute.xlu0 %528
      %530 = vrot.lane.b32.xlu0 %v235, 4
      %v531 = vpop.permute.xlu0 %530
      %532 = vrot.lane.b32.xlu0 %v236, 4
      %v533 = vpop.permute.xlu0 %532
      %534 = vrot.lane.b32.xlu0 %v237, 4
      %v535 = vpop.permute.xlu0 %534
      %536 = vrot.lane.b32.xlu0 %v238, 4
      %v537 = vpop.permute.xlu0 %536
      %538 = vrot.lane.b32.xlu0 %v239, 4
      %v539 = vpop.permute.xlu0 %538
      %540 = vrot.lane.b32.xlu0 %v240, 4
      %v541 = vpop.permute.xlu0 %540
      %542 = vrot.lane.b32.xlu0 %v241, 4
      %v543 = vpop.permute.xlu0 %542
      %544 = vrot.lane.b32.xlu0 %v242, 4
      %v545 = vpop.permute.xlu0 %544
      %546 = vrot.lane.b32.xlu0 %v243, 4
      %v547 = vpop.permute.xlu0 %546
      %548 = vrot.lane.b32.xlu0 %v244, 4
      %v549 = vpop.permute.xlu0 %548
      %550 = vrot.lane.b32.xlu0 %v245, 4
      %v551 = vpop.permute.xlu0 %550
      %552 = vrot.lane.b32.xlu0 %v246, 4
      %v553 = vpop.permute.xlu0 %552
      %554 = vrot.lane.b32.xlu0 %v247, 4
      %v555 = vpop.permute.xlu0 %554
      %556 = vrot.lane.b32.xlu0 %v248, 4
      %v557 = vpop.permute.xlu0 %556
      %558 = vrot.lane.b32.xlu0 %v249, 4
      %v559 = vpop.permute.xlu0 %558
      %560 = vrot.lane.b32.xlu0 %v250, 4
      %v561 = vpop.permute.xlu0 %560
      %562 = vrot.lane.b32.xlu0 %v251, 4
      %v563 = vpop.permute.xlu0 %562
      %564 = vrot.lane.b32.xlu0 %v252, 4
      %v565 = vpop.permute.xlu0 %564
      %566 = vrot.lane.b32.xlu0 %v253, 4
      %v567 = vpop.permute.xlu0 %566
      %568 = vrot.lane.b32.xlu0 %v254, 4
      %v569 = vpop.permute.xlu0 %568
      %570 = vrot.lane.b32.xlu0 %v255, 4
      %v571 = vpop.permute.xlu0 %570
      %572 = vrot.lane.b32.xlu0 %v256, 4
      %v573 = vpop.permute.xlu0 %572
      %574 = vrot.lane.b32.xlu0 %v257, 4
      %v575 = vpop.permute.xlu0 %574
      %576 = vrot.lane.b32.xlu0 %v258, 4
      %v577 = vpop.permute.xlu0 %576
      %578 = vrot.lane.b32.xlu0 %v259, 4
      %v579 = vpop.permute.xlu0 %578
      %580 = vrot.lane.b32.xlu0 %v260, 4
      %v581 = vpop.permute.xlu0 %580
      %582 = vrot.lane.b32.xlu0 %v261, 4
      %v583 = vpop.permute.xlu0 %582
      %648 = vrot.lane.b32.xlu0 %v262, 8
      %v649 = vpop.permute.xlu0 %648
      %650 = vrot.lane.b32.xlu0 %v263, 8
      %v651 = vpop.permute.xlu0 %650
      %652 = vrot.lane.b32.xlu0 %v264, 8
      %v653 = vpop.permute.xlu0 %652
      %654 = vrot.lane.b32.xlu0 %v265, 8
      %v655 = vpop.permute.xlu0 %654
      %656 = vrot.lane.b32.xlu0 %v266, 8
      %v657 = vpop.permute.xlu0 %656
      %658 = vrot.lane.b32.xlu0 %v267, 8
      %v659 = vpop.permute.xlu0 %658
      %660 = vrot.lane.b32.xlu0 %v268, 8
      %v661 = vpop.permute.xlu0 %660
      %662 = vrot.lane.b32.xlu0 %v269, 8
      %v663 = vpop.permute.xlu0 %662
      %664 = vrot.lane.b32.xlu0 %v270, 8
      %v665 = vpop.permute.xlu0 %664
      %666 = vrot.lane.b32.xlu0 %v271, 8
      %v667 = vpop.permute.xlu0 %666
      %668 = vrot.lane.b32.xlu0 %v272, 8
      %v669 = vpop.permute.xlu0 %668
      %670 = vrot.lane.b32.xlu0 %v273, 8
      %v671 = vpop.permute.xlu0 %670
      %672 = vrot.lane.b32.xlu0 %v274, 8
      %v673 = vpop.permute.xlu0 %672
      %674 = vrot.lane.b32.xlu0 %v275, 8
      %v675 = vpop.permute.xlu0 %674
      %676 = vrot.lane.b32.xlu0 %v276, 8
      %v677 = vpop.permute.xlu0 %676
      %678 = vrot.lane.b32.xlu0 %v277, 8
      %v679 = vpop.permute.xlu0 %678
      %680 = vrot.lane.b32.xlu0 %v278, 8
      %v681 = vpop.permute.xlu0 %680
      %682 = vrot.lane.b32.xlu0 %v279, 8
      %v683 = vpop.permute.xlu0 %682
      %684 = vrot.lane.b32.xlu0 %v280, 8
      %v685 = vpop.permute.xlu0 %684
      %686 = vrot.lane.b32.xlu0 %v281, 8
      %v687 = vpop.permute.xlu0 %686
      %688 = vrot.lane.b32.xlu0 %v282, 8
      %v689 = vpop.permute.xlu0 %688
      %690 = vrot.lane.b32.xlu0 %v283, 8
      %v691 = vpop.permute.xlu0 %690
      %692 = vrot.lane.b32.xlu0 %v284, 8
      %v693 = vpop.permute.xlu0 %692
      %694 = vrot.lane.b32.xlu0 %v285, 8
      %v695 = vpop.permute.xlu0 %694
      %696 = vrot.lane.b32.xlu0 %v286, 8
      %v697 = vpop.permute.xlu0 %696
      %698 = vrot.lane.b32.xlu0 %v287, 8
      %v699 = vpop.permute.xlu0 %698
      %700 = vrot.lane.b32.xlu0 %v288, 8
      %v701 = vpop.permute.xlu0 %700
      %702 = vrot.lane.b32.xlu0 %v289, 8
      %v703 = vpop.permute.xlu0 %702
      %704 = vrot.lane.b32.xlu0 %v290, 8
      %v705 = vpop.permute.xlu0 %704
      %706 = vrot.lane.b32.xlu0 %v291, 8
      %v707 = vpop.permute.xlu0 %706
      %708 = vrot.lane.b32.xlu0 %v292, 8
      %v709 = vpop.permute.xlu0 %708
      %710 = vrot.lane.b32.xlu0 %v293, 8
      %v711 = vpop.permute.xlu0 %710
      %776 = vrot.lane.b32.xlu0 %v295, 12
      %v777 = vpop.permute.xlu0 %776
      %778 = vrot.lane.b32.xlu0 %v296, 12
      %v779 = vpop.permute.xlu0 %778
      %780 = vrot.lane.b32.xlu0 %v297, 12
      %v781 = vpop.permute.xlu0 %780
      %782 = vrot.lane.b32.xlu0 %v298, 12
      %v783 = vpop.permute.xlu0 %782
      %784 = vrot.lane.b32.xlu0 %v299, 12
      %v785 = vpop.permute.xlu0 %784
      %786 = vrot.lane.b32.xlu0 %v300, 12
      %v787 = vpop.permute.xlu0 %786
      %788 = vrot.lane.b32.xlu0 %v301, 12
      %v789 = vpop.permute.xlu0 %788
      %790 = vrot.lane.b32.xlu0 %v302, 12
      %v791 = vpop.permute.xlu0 %790
      %792 = vrot.lane.b32.xlu0 %v303, 12
      %v793 = vpop.permute.xlu0 %792
      %794 = vrot.lane.b32.xlu0 %v304, 12
      %v795 = vpop.permute.xlu0 %794
      %796 = vrot.lane.b32.xlu0 %v305, 12
      %v797 = vpop.permute.xlu0 %796
      %798 = vrot.lane.b32.xlu0 %v306, 12
      %v799 = vpop.permute.xlu0 %798
      %800 = vrot.lane.b32.xlu0 %v307, 12
      %v801 = vpop.permute.xlu0 %800
      %802 = vrot.lane.b32.xlu0 %v308, 12
      %v803 = vpop.permute.xlu0 %802
      %804 = vrot.lane.b32.xlu0 %v309, 12
      %v805 = vpop.permute.xlu0 %804
      %806 = vrot.lane.b32.xlu0 %v310, 12
      %v807 = vpop.permute.xlu0 %806
      %808 = vrot.lane.b32.xlu0 %v311, 12
      %v809 = vpop.permute.xlu0 %808
      %810 = vrot.lane.b32.xlu0 %v312, 12
      %v811 = vpop.permute.xlu0 %810
      %812 = vrot.lane.b32.xlu0 %v313, 12
      %v813 = vpop.permute.xlu0 %812
      %814 = vrot.lane.b32.xlu0 %v314, 12
      %v815 = vpop.permute.xlu0 %814
      %816 = vrot.lane.b32.xlu0 %v315, 12
      %v817 = vpop.permute.xlu0 %816
      %818 = vrot.lane.b32.xlu0 %v316, 12
      %v819 = vpop.permute.xlu0 %818
      %820 = vrot.lane.b32.xlu0 %v317, 12
      %v821 = vpop.permute.xlu0 %820
      %822 = vrot.lane.b32.xlu0 %v318, 12
      %v823 = vpop.permute.xlu0 %822
      %824 = vrot.lane.b32.xlu0 %v319, 12
      %v825 = vpop.permute.xlu0 %824
      %826 = vrot.lane.b32.xlu0 %v320, 12
      %v827 = vpop.permute.xlu0 %826
      %828 = vrot.lane.b32.xlu0 %v321, 12
      %v829 = vpop.permute.xlu0 %828
      %830 = vrot.lane.b32.xlu0 %v322, 12
      %v831 = vpop.permute.xlu0 %830
      %832 = vrot.lane.b32.xlu0 %v323, 12
      %v833 = vpop.permute.xlu0 %832
      %834 = vrot.lane.b32.xlu0 %v324, 12
      %v835 = vpop.permute.xlu0 %834
      %836 = vrot.lane.b32.xlu0 %v325, 12
      %v837 = vpop.permute.xlu0 %836
      %838 = vrot.lane.b32.xlu0 %v326, 12
      %v839 = vpop.permute.xlu0 %838
      %904 = vrot.lane.b32.xlu0 %v327, 16
      %v905 = vpop.permute.xlu0 %904
      %906 = vrot.lane.b32.xlu0 %v328, 16
      %v907 = vpop.permute.xlu0 %906
      %908 = vrot.lane.b32.xlu0 %v329, 16
      %v909 = vpop.permute.xlu0 %908
      %910 = vrot.lane.b32.xlu0 %v330, 16
      %v911 = vpop.permute.xlu0 %910
      %912 = vrot.lane.b32.xlu0 %v331, 16
      %v913 = vpop.permute.xlu0 %912
      %914 = vrot.lane.b32.xlu0 %v332, 16
      %v915 = vpop.permute.xlu0 %914
      %916 = vrot.lane.b32.xlu0 %v333, 16
      %v917 = vpop.permute.xlu0 %916
      %918 = vrot.lane.b32.xlu0 %v334, 16
      %v919 = vpop.permute.xlu0 %918
      %920 = vrot.lane.b32.xlu0 %v335, 16
      %v921 = vpop.permute.xlu0 %920
      %922 = vrot.lane.b32.xlu0 %v336, 16
      %v923 = vpop.permute.xlu0 %922
      %924 = vrot.lane.b32.xlu0 %v337, 16
      %v925 = vpop.permute.xlu0 %924
      %926 = vrot.lane.b32.xlu0 %v338, 16
      %v927 = vpop.permute.xlu0 %926
      %928 = vrot.lane.b32.xlu0 %v339, 16
      %v929 = vpop.permute.xlu0 %928
      %930 = vrot.lane.b32.xlu0 %v340, 16
      %v931 = vpop.permute.xlu0 %930
      %932 = vrot.lane.b32.xlu0 %v341, 16
      %v933 = vpop.permute.xlu0 %932
      %934 = vrot.lane.b32.xlu0 %v342, 16
      %v935 = vpop.permute.xlu0 %934
      %936 = vrot.lane.b32.xlu0 %v343, 16
      %v937 = vpop.permute.xlu0 %936
      %938 = vrot.lane.b32.xlu0 %v344, 16
      %v939 = vpop.permute.xlu0 %938
      %940 = vrot.lane.b32.xlu0 %v345, 16
      %v941 = vpop.permute.xlu0 %940
      %942 = vrot.lane.b32.xlu0 %v346, 16
      %v943 = vpop.permute.xlu0 %942
      %944 = vrot.lane.b32.xlu0 %v347, 16
      %v945 = vpop.permute.xlu0 %944
      %946 = vrot.lane.b32.xlu0 %v348, 16
      %v947 = vpop.permute.xlu0 %946
      %948 = vrot.lane.b32.xlu0 %v349, 16
      %v949 = vpop.permute.xlu0 %948
      %950 = vrot.lane.b32.xlu0 %v350, 16
      %v951 = vpop.permute.xlu0 %950
      %952 = vrot.lane.b32.xlu0 %v351, 16
      %v953 = vpop.permute.xlu0 %952
      %954 = vrot.lane.b32.xlu0 %v352, 16
      %v955 = vpop.permute.xlu0 %954
      %956 = vrot.lane.b32.xlu0 %v353, 16
      %v957 = vpop.permute.xlu0 %956
      %958 = vrot.lane.b32.xlu0 %v354, 16
      %v959 = vpop.permute.xlu0 %958
      %960 = vrot.lane.b32.xlu0 %v355, 16
      %v961 = vpop.permute.xlu0 %960
      %962 = vrot.lane.b32.xlu0 %v356, 16
      %v963 = vpop.permute.xlu0 %962
      %964 = vrot.lane.b32.xlu0 %v357, 16
      %v965 = vpop.permute.xlu0 %964
      %966 = vrot.lane.b32.xlu0 %v358, 16
      %v967 = vpop.permute.xlu0 %966
      %1032 = vrot.lane.b32.xlu0 %v359, 20
      %v1033 = vpop.permute.xlu0 %1032
      %1034 = vrot.lane.b32.xlu0 %v360, 20
      %v1035 = vpop.permute.xlu0 %1034
      %1036 = vrot.lane.b32.xlu0 %v361, 20
      %v1037 = vpop.permute.xlu0 %1036
      %1038 = vrot.lane.b32.xlu0 %v362, 20
      %v1039 = vpop.permute.xlu0 %1038
      %1040 = vrot.lane.b32.xlu0 %v363, 20
      %v1041 = vpop.permute.xlu0 %1040
      %1042 = vrot.lane.b32.xlu0 %v364, 20
      %v1043 = vpop.permute.xlu0 %1042
      %1044 = vrot.lane.b32.xlu0 %v365, 20
      %v1045 = vpop.permute.xlu0 %1044
      %1046 = vrot.lane.b32.xlu0 %v366, 20
      %v1047 = vpop.permute.xlu0 %1046
      %1048 = vrot.lane.b32.xlu0 %v367, 20
      %v1049 = vpop.permute.xlu0 %1048
      %1050 = vrot.lane.b32.xlu0 %v368, 20
      %v1051 = vpop.permute.xlu0 %1050
      %1052 = vrot.lane.b32.xlu0 %v369, 20
      %v1053 = vpop.permute.xlu0 %1052
      %1054 = vrot.lane.b32.xlu0 %v370, 20
      %v1055 = vpop.permute.xlu0 %1054
      %1056 = vrot.lane.b32.xlu0 %v371, 20
      %v1057 = vpop.permute.xlu0 %1056
      %1058 = vrot.lane.b32.xlu0 %v372, 20
      %v1059 = vpop.permute.xlu0 %1058
      %1060 = vrot.lane.b32.xlu0 %v373, 20
      %v1061 = vpop.permute.xlu0 %1060
      %1062 = vrot.lane.b32.xlu0 %v374, 20
      %v1063 = vpop.permute.xlu0 %1062
      %1064 = vrot.lane.b32.xlu0 %v375, 20
      %v1065 = vpop.permute.xlu0 %1064
      %1066 = vrot.lane.b32.xlu0 %v376, 20
      %v1067 = vpop.permute.xlu0 %1066
      %1068 = vrot.lane.b32.xlu0 %v377, 20
      %v1069 = vpop.permute.xlu0 %1068
      %1070 = vrot.lane.b32.xlu0 %v378, 20
      %v1071 = vpop.permute.xlu0 %1070
      %1072 = vrot.lane.b32.xlu0 %v379, 20
      %v1073 = vpop.permute.xlu0 %1072
      %1074 = vrot.lane.b32.xlu0 %v380, 20
      %v1075 = vpop.permute.xlu0 %1074
      %1076 = vrot.lane.b32.xlu0 %v381, 20
      %v1077 = vpop.permute.xlu0 %1076
      %1078 = vrot.lane.b32.xlu0 %v382, 20
      %v1079 = vpop.permute.xlu0 %1078
      %1080 = vrot.lane.b32.xlu0 %v383, 20
      %v1081 = vpop.permute.xlu0 %1080
      %1082 = vrot.lane.b32.xlu0 %v384, 20
      %v1083 = vpop.permute.xlu0 %1082
      %1084 = vrot.lane.b32.xlu0 %v385, 20
      %v1085 = vpop.permute.xlu0 %1084
      %1086 = vrot.lane.b32.xlu0 %v386, 20
      %v1087 = vpop.permute.xlu0 %1086
      %1088 = vrot.lane.b32.xlu0 %v387, 20
      %v1089 = vpop.permute.xlu0 %1088
      %1090 = vrot.lane.b32.xlu0 %v388, 20
      %v1091 = vpop.permute.xlu0 %1090
      %1092 = vrot.lane.b32.xlu0 %v389, 20
      %v1093 = vpop.permute.xlu0 %1092
      %1094 = vrot.lane.b32.xlu0 %v390, 20
      %v1095 = vpop.permute.xlu0 %1094
      %1160 = vrot.lane.b32.xlu0 %v392, 24
      %v1161 = vpop.permute.xlu0 %1160
      %1162 = vrot.lane.b32.xlu0 %v393, 24
      %v1163 = vpop.permute.xlu0 %1162
      %1164 = vrot.lane.b32.xlu0 %v394, 24
      %v1165 = vpop.permute.xlu0 %1164
      %1166 = vrot.lane.b32.xlu0 %v395, 24
      %v1167 = vpop.permute.xlu0 %1166
      %1168 = vrot.lane.b32.xlu0 %v396, 24
      %v1169 = vpop.permute.xlu0 %1168
      %1170 = vrot.lane.b32.xlu0 %v397, 24
      %v1171 = vpop.permute.xlu0 %1170
      %1172 = vrot.lane.b32.xlu0 %v398, 24
      %v1173 = vpop.permute.xlu0 %1172
      %1174 = vrot.lane.b32.xlu0 %v399, 24
      %v1175 = vpop.permute.xlu0 %1174
      %1176 = vrot.lane.b32.xlu0 %v400, 24
      %v1177 = vpop.permute.xlu0 %1176
      %1178 = vrot.lane.b32.xlu0 %v401, 24
      %v1179 = vpop.permute.xlu0 %1178
      %1180 = vrot.lane.b32.xlu0 %v402, 24
      %v1181 = vpop.permute.xlu0 %1180
      %1182 = vrot.lane.b32.xlu0 %v403, 24
      %v1183 = vpop.permute.xlu0 %1182
      %1184 = vrot.lane.b32.xlu0 %v404, 24
      %v1185 = vpop.permute.xlu0 %1184
      %1186 = vrot.lane.b32.xlu0 %v405, 24
      %v1187 = vpop.permute.xlu0 %1186
      %1188 = vrot.lane.b32.xlu0 %v406, 24
      %v1189 = vpop.permute.xlu0 %1188
      %1190 = vrot.lane.b32.xlu0 %v407, 24
      %v1191 = vpop.permute.xlu0 %1190
      %1192 = vrot.lane.b32.xlu0 %v408, 24
      %v1193 = vpop.permute.xlu0 %1192
      %1194 = vrot.lane.b32.xlu0 %v409, 24
      %v1195 = vpop.permute.xlu0 %1194
      %1196 = vrot.lane.b32.xlu0 %v410, 24
      %v1197 = vpop.permute.xlu0 %1196
      %1198 = vrot.lane.b32.xlu0 %v411, 24
      %v1199 = vpop.permute.xlu0 %1198
      %1200 = vrot.lane.b32.xlu0 %v412, 24
      %v1201 = vpop.permute.xlu0 %1200
      %1202 = vrot.lane.b32.xlu0 %v413, 24
      %v1203 = vpop.permute.xlu0 %1202
      %1204 = vrot.lane.b32.xlu0 %v414, 24
      %v1205 = vpop.permute.xlu0 %1204
      %1206 = vrot.lane.b32.xlu0 %v415, 24
      %v1207 = vpop.permute.xlu0 %1206
      %1208 = vrot.lane.b32.xlu0 %v416, 24
      %v1209 = vpop.permute.xlu0 %1208
      %1210 = vrot.lane.b32.xlu0 %v417, 24
      %v1211 = vpop.permute.xlu0 %1210
      %1212 = vrot.lane.b32.xlu0 %v418, 24
      %v1213 = vpop.permute.xlu0 %1212
      %1214 = vrot.lane.b32.xlu0 %v419, 24
      %v1215 = vpop.permute.xlu0 %1214
      %1216 = vrot.lane.b32.xlu0 %v420, 24
      %v1217 = vpop.permute.xlu0 %1216
      %1218 = vrot.lane.b32.xlu0 %v421, 24
      %v1219 = vpop.permute.xlu0 %1218
      %1220 = vrot.lane.b32.xlu0 %v422, 24
      %v1221 = vpop.permute.xlu0 %1220
      %1222 = vrot.lane.b32.xlu0 %v423, 24
      %v1223 = vpop.permute.xlu0 %1222
      %1288 = vrot.lane.b32.xlu0 %v424, 28
      %v1289 = vpop.permute.xlu0 %1288
      %1290 = vrot.lane.b32.xlu0 %v425, 28
      %v1291 = vpop.permute.xlu0 %1290
      %1292 = vrot.lane.b32.xlu0 %v426, 28
      %v1293 = vpop.permute.xlu0 %1292
      %1294 = vrot.lane.b32.xlu0 %v427, 28
      %v1295 = vpop.permute.xlu0 %1294
      %1296 = vrot.lane.b32.xlu0 %v428, 28
      %v1297 = vpop.permute.xlu0 %1296
      %1298 = vrot.lane.b32.xlu0 %v429, 28
      %v1299 = vpop.permute.xlu0 %1298
      %1300 = vrot.lane.b32.xlu0 %v430, 28
      %v1301 = vpop.permute.xlu0 %1300
      %1302 = vrot.lane.b32.xlu0 %v431, 28
      %v1303 = vpop.permute.xlu0 %1302
      %1304 = vrot.lane.b32.xlu0 %v432, 28
      %v1305 = vpop.permute.xlu0 %1304
      %1306 = vrot.lane.b32.xlu0 %v433, 28
      %v1307 = vpop.permute.xlu0 %1306
      %1308 = vrot.lane.b32.xlu0 %v434, 28
      %v1309 = vpop.permute.xlu0 %1308
      %1310 = vrot.lane.b32.xlu0 %v435, 28
      %v1311 = vpop.permute.xlu0 %1310
      %1312 = vrot.lane.b32.xlu0 %v436, 28
      %v1313 = vpop.permute.xlu0 %1312
      %1314 = vrot.lane.b32.xlu0 %v437, 28
      %v1315 = vpop.permute.xlu0 %1314
      %1316 = vrot.lane.b32.xlu0 %v438, 28
      %v1317 = vpop.permute.xlu0 %1316
      %1318 = vrot.lane.b32.xlu0 %v439, 28
      %v1319 = vpop.permute.xlu0 %1318
      %1320 = vrot.lane.b32.xlu0 %v440, 28
      %v1321 = vpop.permute.xlu0 %1320
      %1322 = vrot.lane.b32.xlu0 %v441, 28
      %v1323 = vpop.permute.xlu0 %1322
      %1324 = vrot.lane.b32.xlu0 %v442, 28
      %v1325 = vpop.permute.xlu0 %1324
      %1326 = vrot.lane.b32.xlu0 %v443, 28
      %v1327 = vpop.permute.xlu0 %1326
      %1328 = vrot.lane.b32.xlu0 %v444, 28
      %v1329 = vpop.permute.xlu0 %1328
      %1330 = vrot.lane.b32.xlu0 %v445, 28
      %v1331 = vpop.permute.xlu0 %1330
      %1332 = vrot.lane.b32.xlu0 %v446, 28
      %v1333 = vpop.permute.xlu0 %1332
      %1334 = vrot.lane.b32.xlu0 %v447, 28
      %v1335 = vpop.permute.xlu0 %1334
      %1336 = vrot.lane.b32.xlu0 %v448, 28
      %v1337 = vpop.permute.xlu0 %1336
      %1338 = vrot.lane.b32.xlu0 %v449, 28
      %v1339 = vpop.permute.xlu0 %1338
      %1340 = vrot.lane.b32.xlu0 %v450, 28
      %v1341 = vpop.permute.xlu0 %1340
      %1342 = vrot.lane.b32.xlu0 %v451, 28
      %v1343 = vpop.permute.xlu0 %1342
      %1344 = vrot.lane.b32.xlu0 %v452, 28
      %v1345 = vpop.permute.xlu0 %1344
      %1346 = vrot.lane.b32.xlu0 %v453, 28
      %v1347 = vpop.permute.xlu0 %1346
      %1348 = vrot.lane.b32.xlu0 %v454, 28
      %v1349 = vpop.permute.xlu0 %1348
      %1350 = vrot.lane.b32.xlu0 %v455, 28
      %v1351 = vpop.permute.xlu0 %1350
      %1416 = vrot.lane.b32.xlu0 %v456, 32
      %v1417 = vpop.permute.xlu0 %1416
      %1418 = vrot.lane.b32.xlu0 %v457, 32
      %v1419 = vpop.permute.xlu0 %1418
      %1420 = vrot.lane.b32.xlu0 %v458, 32
      %v1421 = vpop.permute.xlu0 %1420
      %1422 = vrot.lane.b32.xlu0 %v459, 32
      %v1423 = vpop.permute.xlu0 %1422
      %1424 = vrot.lane.b32.xlu0 %v460, 32
      %v1425 = vpop.permute.xlu0 %1424
      %1426 = vrot.lane.b32.xlu0 %v461, 32
      %v1427 = vpop.permute.xlu0 %1426
      %1428 = vrot.lane.b32.xlu0 %v462, 32
      %v1429 = vpop.permute.xlu0 %1428
      %1430 = vrot.lane.b32.xlu0 %v463, 32
      %v1431 = vpop.permute.xlu0 %1430
      %1432 = vrot.lane.b32.xlu0 %v464, 32
      %v1433 = vpop.permute.xlu0 %1432
      %1434 = vrot.lane.b32.xlu0 %v465, 32
      %v1435 = vpop.permute.xlu0 %1434
      %1436 = vrot.lane.b32.xlu0 %v466, 32
      %v1437 = vpop.permute.xlu0 %1436
      %1438 = vrot.lane.b32.xlu0 %v467, 32
      %v1439 = vpop.permute.xlu0 %1438
      %1440 = vrot.lane.b32.xlu0 %v468, 32
      %v1441 = vpop.permute.xlu0 %1440
      %1442 = vrot.lane.b32.xlu0 %v469, 32
      %v1443 = vpop.permute.xlu0 %1442
      %1444 = vrot.lane.b32.xlu0 %v470, 32
      %v1445 = vpop.permute.xlu0 %1444
      %1446 = vrot.lane.b32.xlu0 %v471, 32
      %v1447 = vpop.permute.xlu0 %1446
      %1448 = vrot.lane.b32.xlu0 %v472, 32
      %v1449 = vpop.permute.xlu0 %1448
      %1450 = vrot.lane.b32.xlu0 %v473, 32
      %v1451 = vpop.permute.xlu0 %1450
      %1452 = vrot.lane.b32.xlu0 %v474, 32
      %v1453 = vpop.permute.xlu0 %1452
      %1454 = vrot.lane.b32.xlu0 %v475, 32
      %v1455 = vpop.permute.xlu0 %1454
      %1456 = vrot.lane.b32.xlu0 %v476, 32
      %v1457 = vpop.permute.xlu0 %1456
      %1458 = vrot.lane.b32.xlu0 %v477, 32
      %v1459 = vpop.permute.xlu0 %1458
      %1460 = vrot.lane.b32.xlu0 %v478, 32
      %v1461 = vpop.permute.xlu0 %1460
      %1462 = vrot.lane.b32.xlu0 %v479, 32
      %v1463 = vpop.permute.xlu0 %1462
      %1464 = vrot.lane.b32.xlu0 %v480, 32
      %v1465 = vpop.permute.xlu0 %1464
      %1466 = vrot.lane.b32.xlu0 %v481, 32
      %v1467 = vpop.permute.xlu0 %1466
      %1468 = vrot.lane.b32.xlu0 %v482, 32
      %v1469 = vpop.permute.xlu0 %1468
      %1470 = vrot.lane.b32.xlu0 %v483, 32
      %v1471 = vpop.permute.xlu0 %1470
      %1472 = vrot.lane.b32.xlu0 %v484, 32
      %v1473 = vpop.permute.xlu0 %1472
      %1474 = vrot.lane.b32.xlu0 %v485, 32
      %v1475 = vpop.permute.xlu0 %1474
      %1476 = vrot.lane.b32.xlu0 %v486, 32
      %v1477 = vpop.permute.xlu0 %1476
      %1478 = vrot.lane.b32.xlu0 %v487, 32
      %v1479 = vpop.permute.xlu0 %1478
      %vm1512 = vcmask 31744
      %v1513 = vsel %vm1512, %v198, %v521
      %v1514 = vsel %vm1512, %v199, %v523
      %v1515 = vsel %vm1512, %v200, %v525
      %v1516 = vsel %vm1512, %v201, %v527
      %v1517 = vsel %vm1512, %v202, %v529
      %v1518 = vsel %vm1512, %v203, %v531
      %v1519 = vsel %vm1512, %v204, %v533
      %v1520 = vsel %vm1512, %v205, %v535
      %v1521 = vsel %vm1512, %v206, %v537
      %v1522 = vsel %vm1512, %v207, %v539
      %v1523 = vsel %vm1512, %v208, %v541
      %v1524 = vsel %vm1512, %v209, %v543
      %v1525 = vsel %vm1512, %v210, %v545
      %v1526 = vsel %vm1512, %v211, %v547
      %v1527 = vsel %vm1512, %v212, %v549
      %v1528 = vsel %vm1512, %v213, %v551
      %v1529 = vsel %vm1512, %v214, %v553
      %v1530 = vsel %vm1512, %v215, %v555
      %v1531 = vsel %vm1512, %v216, %v557
      %v1532 = vsel %vm1512, %v217, %v559
      %v1533 = vsel %vm1512, %v218, %v561
      %v1534 = vsel %vm1512, %v219, %v563
      %v1535 = vsel %vm1512, %v220, %v565
      %v1536 = vsel %vm1512, %v221, %v567
      %v1537 = vsel %vm1512, %v222, %v569
      %v1538 = vsel %vm1512, %v223, %v571
      %v1539 = vsel %vm1512, %v224, %v573
      %v1540 = vsel %vm1512, %v225, %v575
      %v1541 = vsel %vm1512, %v226, %v577
      %v1542 = vsel %vm1512, %v227, %v579
      %v1543 = vsel %vm1512, %v228, %v581
      %v1544 = vsel %vm1512, %v229, %v583
      %vm1545 = vcmask 64512
      %v1546 = vsel %vm1545, %v1513, %v649
      %v1547 = vsel %vm1545, %v1514, %v651
      %v1548 = vsel %vm1545, %v1515, %v653
      %v1549 = vsel %vm1545, %v1516, %v655
      %v1550 = vsel %vm1545, %v1517, %v657
      %v1551 = vsel %vm1545, %v1518, %v659
      %v1552 = vsel %vm1545, %v1519, %v661
      %v1553 = vsel %vm1545, %v1520, %v663
      %v1554 = vsel %vm1545, %v1521, %v665
      %v1555 = vsel %vm1545, %v1522, %v667
      %v1556 = vsel %vm1545, %v1523, %v669
      %v1557 = vsel %vm1545, %v1524, %v671
      %v1558 = vsel %vm1545, %v1525, %v673
      %v1559 = vsel %vm1545, %v1526, %v675
      %v1560 = vsel %vm1545, %v1527, %v677
      %v1561 = vsel %vm1545, %v1528, %v679
      %v1562 = vsel %vm1545, %v1529, %v681
      %v1563 = vsel %vm1545, %v1530, %v683
      %v1564 = vsel %vm1545, %v1531, %v685
      %v1565 = vsel %vm1545, %v1532, %v687
      %v1566 = vsel %vm1545, %v1533, %v689
      %v1567 = vsel %vm1545, %v1534, %v691
      %v1568 = vsel %vm1545, %v1535, %v693
      %v1569 = vsel %vm1545, %v1536, %v695
      %v1570 = vsel %vm1545, %v1537, %v697
      %v1571 = vsel %vm1545, %v1538, %v699
      %v1572 = vsel %vm1545, %v1539, %v701
      %v1573 = vsel %vm1545, %v1540, %v703
      %v1574 = vsel %vm1545, %v1541, %v705
      %v1575 = vsel %vm1545, %v1542, %v707
      %v1576 = vsel %vm1545, %v1543, %v709
      %v1577 = vsel %vm1545, %v1544, %v711
      %vm1578 = vcmask 97280
      %v1579 = vsel %vm1578, %v1546, %v777
      %v1580 = vsel %vm1578, %v1547, %v779
      %v1581 = vsel %vm1578, %v1548, %v781
      %v1582 = vsel %vm1578, %v1549, %v783
      %v1583 = vsel %vm1578, %v1550, %v785
      %v1584 = vsel %vm1578, %v1551, %v787
      %v1585 = vsel %vm1578, %v1552, %v789
      %v1586 = vsel %vm1578, %v1553, %v791
      %v1587 = vsel %vm1578, %v1554, %v793
      %v1588 = vsel %vm1578, %v1555, %v795
      %v1589 = vsel %vm1578, %v1556, %v797
      %v1590 = vsel %vm1578, %v1557, %v799
      %v1591 = vsel %vm1578, %v1558, %v801
      %v1592 = vsel %vm1578, %v1559, %v803
      %v1593 = vsel %vm1578, %v1560, %v805
      %v1594 = vsel %vm1578, %v1561, %v807
      %v1595 = vsel %vm1578, %v1562, %v809
      %v1596 = vsel %vm1578, %v1563, %v811
      %v1597 = vsel %vm1578, %v1564, %v813
      %v1598 = vsel %vm1578, %v1565, %v815
      %v1599 = vsel %vm1578, %v1566, %v817
      %v1600 = vsel %vm1578, %v1567, %v819
      %v1601 = vsel %vm1578, %v1568, %v821
      %v1602 = vsel %vm1578, %v1569, %v823
      %v1603 = vsel %vm1578, %v1570, %v825
      %v1604 = vsel %vm1578, %v1571, %v827
      %v1605 = vsel %vm1578, %v1572, %v829
      %v1606 = vsel %vm1578, %v1573, %v831
      %v1607 = vsel %vm1578, %v1574, %v833
      %v1608 = vsel %vm1578, %v1575, %v835
      %v1609 = vsel %vm1578, %v1576, %v837
      %v1610 = vsel %vm1578, %v1577, %v839
      %vm1611 = vcmask 130048
      %v1612 = vsel %vm1611, %v1579, %v905
      %v1613 = vsel %vm1611, %v1580, %v907
      %v1614 = vsel %vm1611, %v1581, %v909
      %v1615 = vsel %vm1611, %v1582, %v911
      %v1616 = vsel %vm1611, %v1583, %v913
      %v1617 = vsel %vm1611, %v1584, %v915
      %v1618 = vsel %vm1611, %v1585, %v917
      %v1619 = vsel %vm1611, %v1586, %v919
      %v1620 = vsel %vm1611, %v1587, %v921
      %v1621 = vsel %vm1611, %v1588, %v923
      %v1622 = vsel %vm1611, %v1589, %v925
      %v1623 = vsel %vm1611, %v1590, %v927
      %v1624 = vsel %vm1611, %v1591, %v929
      %v1625 = vsel %vm1611, %v1592, %v931
      %v1626 = vsel %vm1611, %v1593, %v933
      %v1627 = vsel %vm1611, %v1594, %v935
      %v1628 = vsel %vm1611, %v1595, %v937
      %v1629 = vsel %vm1611, %v1596, %v939
      %v1630 = vsel %vm1611, %v1597, %v941
      %v1631 = vsel %vm1611, %v1598, %v943
      %v1632 = vsel %vm1611, %v1599, %v945
      %v1633 = vsel %vm1611, %v1600, %v947
      %v1634 = vsel %vm1611, %v1601, %v949
      %v1635 = vsel %vm1611, %v1602, %v951
      %v1636 = vsel %vm1611, %v1603, %v953
      %v1637 = vsel %vm1611, %v1604, %v955
      %v1638 = vsel %vm1611, %v1605, %v957
      %v1639 = vsel %vm1611, %v1606, %v959
      %v1640 = vsel %vm1611, %v1607, %v961
      %v1641 = vsel %vm1611, %v1608, %v963
      %v1642 = vsel %vm1611, %v1609, %v965
      %v1643 = vsel %vm1611, %v1610, %v967
      %vm1644 = vcmask 162816
      %v1645 = vsel %vm1644, %v1612, %v1033
      %v1646 = vsel %vm1644, %v1613, %v1035
      %v1647 = vsel %vm1644, %v1614, %v1037
      %v1648 = vsel %vm1644, %v1615, %v1039
      %v1649 = vsel %vm1644, %v1616, %v1041
      %v1650 = vsel %vm1644, %v1617, %v1043
      %v1651 = vsel %vm1644, %v1618, %v1045
      %v1652 = vsel %vm1644, %v1619, %v1047
      %v1653 = vsel %vm1644, %v1620, %v1049
      %v1654 = vsel %vm1644, %v1621, %v1051
      %v1655 = vsel %vm1644, %v1622, %v1053
      %v1656 = vsel %vm1644, %v1623, %v1055
      %v1657 = vsel %vm1644, %v1624, %v1057
      %v1658 = vsel %vm1644, %v1625, %v1059
      %v1659 = vsel %vm1644, %v1626, %v1061
      %v1660 = vsel %vm1644, %v1627, %v1063
      %v1661 = vsel %vm1644, %v1628, %v1065
      %v1662 = vsel %vm1644, %v1629, %v1067
      %v1663 = vsel %vm1644, %v1630, %v1069
      %v1664 = vsel %vm1644, %v1631, %v1071
      %v1665 = vsel %vm1644, %v1632, %v1073
      %v1666 = vsel %vm1644, %v1633, %v1075
      %v1667 = vsel %vm1644, %v1634, %v1077
      %v1668 = vsel %vm1644, %v1635, %v1079
      %v1669 = vsel %vm1644, %v1636, %v1081
      %v1670 = vsel %vm1644, %v1637, %v1083
      %v1671 = vsel %vm1644, %v1638, %v1085
      %v1672 = vsel %vm1644, %v1639, %v1087
      %v1673 = vsel %vm1644, %v1640, %v1089
      %v1674 = vsel %vm1644, %v1641, %v1091
      %v1675 = vsel %vm1644, %v1642, %v1093
      %v1676 = vsel %vm1644, %v1643, %v1095
      %vm1677 = vcmask 195584
      %v1678 = vsel %vm1677, %v1645, %v1161
      %v1679 = vsel %vm1677, %v1646, %v1163
      %v1680 = vsel %vm1677, %v1647, %v1165
      %v1681 = vsel %vm1677, %v1648, %v1167
      %v1682 = vsel %vm1677, %v1649, %v1169
      %v1683 = vsel %vm1677, %v1650, %v1171
      %v1684 = vsel %vm1677, %v1651, %v1173
      %v1685 = vsel %vm1677, %v1652, %v1175
      %v1686 = vsel %vm1677, %v1653, %v1177
      %v1687 = vsel %vm1677, %v1654, %v1179
      %v1688 = vsel %vm1677, %v1655, %v1181
      %v1689 = vsel %vm1677, %v1656, %v1183
      %v1690 = vsel %vm1677, %v1657, %v1185
      %v1691 = vsel %vm1677, %v1658, %v1187
      %v1692 = vsel %vm1677, %v1659, %v1189
      %v1693 = vsel %vm1677, %v1660, %v1191
      %v1694 = vsel %vm1677, %v1661, %v1193
      %v1695 = vsel %vm1677, %v1662, %v1195
      %v1696 = vsel %vm1677, %v1663, %v1197
      %v1697 = vsel %vm1677, %v1664, %v1199
      %v1698 = vsel %vm1677, %v1665, %v1201
      %v1699 = vsel %vm1677, %v1666, %v1203
      %v1700 = vsel %vm1677, %v1667, %v1205
      %v1701 = vsel %vm1677, %v1668, %v1207
      %v1702 = vsel %vm1677, %v1669, %v1209
      %v1703 = vsel %vm1677, %v1670, %v1211
      %v1704 = vsel %vm1677, %v1671, %v1213
      %v1705 = vsel %vm1677, %v1672, %v1215
      %v1706 = vsel %vm1677, %v1673, %v1217
      %v1707 = vsel %vm1677, %v1674, %v1219
      %v1708 = vsel %vm1677, %v1675, %v1221
      %v1709 = vsel %vm1677, %v1676, %v1223
      %vm1710 = vcmask 228352
      %v1711 = vsel %vm1710, %v1678, %v1289
      %v1712 = vsel %vm1710, %v1679, %v1291
      %v1713 = vsel %vm1710, %v1680, %v1293
      %v1714 = vsel %vm1710, %v1681, %v1295
      %v1715 = vsel %vm1710, %v1682, %v1297
      %v1716 = vsel %vm1710, %v1683, %v1299
      %v1717 = vsel %vm1710, %v1684, %v1301
      %v1718 = vsel %vm1710, %v1685, %v1303
      %v1719 = vsel %vm1710, %v1686, %v1305
      %v1720 = vsel %vm1710, %v1687, %v1307
      %v1721 = vsel %vm1710, %v1688, %v1309
      %v1722 = vsel %vm1710, %v1689, %v1311
      %v1723 = vsel %vm1710, %v1690, %v1313
      %v1724 = vsel %vm1710, %v1691, %v1315
      %v1725 = vsel %vm1710, %v1692, %v1317
      %v1726 = vsel %vm1710, %v1693, %v1319
      %v1727 = vsel %vm1710, %v1694, %v1321
      %v1728 = vsel %vm1710, %v1695, %v1323
      %v1729 = vsel %vm1710, %v1696, %v1325
      %v1730 = vsel %vm1710, %v1697, %v1327
      %v1731 = vsel %vm1710, %v1698, %v1329
      %v1732 = vsel %vm1710, %v1699, %v1331
      %v1733 = vsel %vm1710, %v1700, %v1333
      %v1734 = vsel %vm1710, %v1701, %v1335
      %v1735 = vsel %vm1710, %v1702, %v1337
      %v1736 = vsel %vm1710, %v1703, %v1339
      %v1737 = vsel %vm1710, %v1704, %v1341
      %v1738 = vsel %vm1710, %v1705, %v1343
      %v1739 = vsel %vm1710, %v1706, %v1345
      %v1740 = vsel %vm1710, %v1707, %v1347
      %v1741 = vsel %vm1710, %v1708, %v1349
      %v1742 = vsel %vm1710, %v1709, %v1351
      %vm1743 = vcmask 261120
      %v1744 = vsel %vm1743, %v1711, %v1417
      %v1745 = vsel %vm1743, %v1712, %v1419
      %v1746 = vsel %vm1743, %v1713, %v1421
      %v1747 = vsel %vm1743, %v1714, %v1423
      %v1748 = vsel %vm1743, %v1715, %v1425
      %v1749 = vsel %vm1743, %v1716, %v1427
      %v1750 = vsel %vm1743, %v1717, %v1429
      %v1751 = vsel %vm1743, %v1718, %v1431
      %v1752 = vsel %vm1743, %v1719, %v1433
      %v1753 = vsel %vm1743, %v1720, %v1435
      %v1754 = vsel %vm1743, %v1721, %v1437
      %v1755 = vsel %vm1743, %v1722, %v1439
      %v1756 = vsel %vm1743, %v1723, %v1441
      %v1757 = vsel %vm1743, %v1724, %v1443
      %v1758 = vsel %vm1743, %v1725, %v1445
      %v1759 = vsel %vm1743, %v1726, %v1447
      %v1760 = vsel %vm1743, %v1727, %v1449
      %v1761 = vsel %vm1743, %v1728, %v1451
      %v1762 = vsel %vm1743, %v1729, %v1453
      %v1763 = vsel %vm1743, %v1730, %v1455
      %v1764 = vsel %vm1743, %v1731, %v1457
      %v1765 = vsel %vm1743, %v1732, %v1459
      %v1766 = vsel %vm1743, %v1733, %v1461
      %v1767 = vsel %vm1743, %v1734, %v1463
      %v1768 = vsel %vm1743, %v1735, %v1465
      %v1769 = vsel %vm1743, %v1736, %v1467
      %v1770 = vsel %vm1743, %v1737, %v1469
      %v1771 = vsel %vm1743, %v1738, %v1471
      %v1772 = vsel %vm1743, %v1739, %v1473
      %v1773 = vsel %vm1743, %v1740, %v1475
      %v1774 = vsel %vm1743, %v1741, %v1477
      %v1775 = vsel %vm1743, %v1742, %v1479
      %v1776 = vld [vmem:[%s3] sm:$0x1]
      %v1777 = vld [vmem:[%s294 + $0x1] sm:$0x1]
      %v1778 = vld [vmem:[%s294 + $0x19] sm:$0x1]
      %v1779 = vld [vmem:[%s294 + $0x31] sm:$0x1]
      %v1780 = vld [vmem:[%s294 + $0x49] sm:$0x1]
      %v1781 = vld [vmem:[%s294 + $0x61] sm:$0x1]
      %v1782 = vld [vmem:[%s294 + $0x79] sm:$0x1]
      %v1783 = vld [vmem:[%s294 + $0x91] sm:$0x1]
      %v1784 = vld [vmem:[%s294 + $0xa9] sm:$0x1]
      %v1785 = vld [vmem:[%s294 + $0xc1] sm:$0x1]
      %v1786 = vld [vmem:[%s294 + $0xd9] sm:$0x1]
      %v1787 = vld [vmem:[%s294 + $0xf1] sm:$0x1]
      %v1788 = vld [vmem:[%s294 + $0x109] sm:$0x1]
      %v1789 = vld [vmem:[%s294 + $0x121] sm:$0x1]
      %v1790 = vld [vmem:[%s294 + $0x139] sm:$0x1]
      %v1791 = vld [vmem:[%s294 + $0x151] sm:$0x1]
      %v1792 = vld [vmem:[%s294 + $0x169] sm:$0x1]
      %v1793 = vld [vmem:[%s192 + $0x1] sm:$0x1]
      %v1794 = vld [vmem:[%s192 + $0x19] sm:$0x1]
      %v1795 = vld [vmem:[%s192 + $0x31] sm:$0x1]
      %v1796 = vld [vmem:[%s192 + $0x49] sm:$0x1]
      %v1797 = vld [vmem:[%s192 + $0x61] sm:$0x1]
      %v1798 = vld [vmem:[%s192 + $0x79] sm:$0x1]
      %v1799 = vld [vmem:[%s192 + $0x91] sm:$0x1]
      %v1800 = vld [vmem:[%s192 + $0xa9] sm:$0x1]
      %v1801 = vld [vmem:[%s192 + $0xc1] sm:$0x1]
      %v1802 = vld [vmem:[%s192 + $0xd9] sm:$0x1]
      %v1803 = vld [vmem:[%s192 + $0xf1] sm:$0x1]
      %v1804 = vld [vmem:[%s192 + $0x109] sm:$0x1]
      %v1805 = vld [vmem:[%s192 + $0x121] sm:$0x1]
      %v1806 = vld [vmem:[%s192 + $0x139] sm:$0x1]
      %v1807 = vld [vmem:[%s192 + $0x151] sm:$0x1]
      %v1808 = vld [vmem:[%s192 + $0x169] sm:$0x1]
      %v1809 = vld [vmem:[%s391 + $0x1] sm:$0x1]
      %v1810 = vld [vmem:[%s391 + $0x19] sm:$0x1]
      %v1811 = vld [vmem:[%s391 + $0x31] sm:$0x1]
      %v1812 = vld [vmem:[%s391 + $0x49] sm:$0x1]
      %v1813 = vld [vmem:[%s391 + $0x61] sm:$0x1]
      %v1814 = vld [vmem:[%s391 + $0x79] sm:$0x1]
      %v1815 = vld [vmem:[%s391 + $0x91] sm:$0x1]
      %v1816 = vld [vmem:[%s391 + $0xa9] sm:$0x1]
      %v1817 = vld [vmem:[%s391 + $0xc1] sm:$0x1]
      %v1818 = vld [vmem:[%s391 + $0xd9] sm:$0x1]
      %v1819 = vld [vmem:[%s391 + $0xf1] sm:$0x1]
      %v1820 = vld [vmem:[%s391 + $0x109] sm:$0x1]
      %v1821 = vld [vmem:[%s391 + $0x121] sm:$0x1]
      %v1822 = vld [vmem:[%s391 + $0x139] sm:$0x1]
      %v1823 = vld [vmem:[%s391 + $0x151] sm:$0x1]
      %v1824 = vld [vmem:[%s391 + $0x169] sm:$0x1]
      %v1825 = vmul.f32 %v1777, 0.75
      %v1826 = vmul.f32 %v1778, 0.75
      %v1827 = vmul.f32 %v1779, 0.75
      %v1828 = vmul.f32 %v1780, 0.75
      %v1829 = vmul.f32 %v1781, 0.75
      %v1830 = vmul.f32 %v1782, 0.75
      %v1831 = vmul.f32 %v1783, 0.75
      %v1832 = vmul.f32 %v1784, 0.75
      %v1833 = vmul.f32 %v1785, 0.75
      %v1834 = vmul.f32 %v1786, 0.75
      %v1835 = vmul.f32 %v1787, 0.75
      %v1836 = vmul.f32 %v1788, 0.75
      %v1837 = vmul.f32 %v1789, 0.75
      %v1838 = vmul.f32 %v1790, 0.75
      %v1839 = vmul.f32 %v1791, 0.75
      %v1840 = vmul.f32 %v1792, 0.75
      %v1841 = vmul.f32 %v1793, 0.25
      %v1842 = vmul.f32 %v1794, 0.25
      %v1843 = vmul.f32 %v1795, 0.25
      %v1844 = vmul.f32 %v1796, 0.25
      %v1845 = vmul.f32 %v1797, 0.25
      %v1846 = vmul.f32 %v1798, 0.25
      %v1847 = vmul.f32 %v1799, 0.25
      %v1848 = vmul.f32 %v1800, 0.25
      %v1849 = vmul.f32 %v1801, 0.25
      %v1850 = vmul.f32 %v1802, 0.25
      %v1851 = vmul.f32 %v1803, 0.25
      %v1852 = vmul.f32 %v1804, 0.25
      %v1853 = vmul.f32 %v1805, 0.25
      %v1854 = vmul.f32 %v1806, 0.25
      %v1855 = vmul.f32 %v1807, 0.25
      %v1856 = vmul.f32 %v1808, 0.25
      %v1857 = vadd.f32 %v1825, %v1841
      %v1858 = vadd.f32 %v1826, %v1842
      %v1859 = vadd.f32 %v1827, %v1843
      %v1860 = vadd.f32 %v1828, %v1844
      %v1861 = vadd.f32 %v1829, %v1845
      %v1862 = vadd.f32 %v1830, %v1846
      %v1863 = vadd.f32 %v1831, %v1847
      %v1864 = vadd.f32 %v1832, %v1848
      %v1865 = vadd.f32 %v1833, %v1849
      %v1866 = vadd.f32 %v1834, %v1850
      %v1867 = vadd.f32 %v1835, %v1851
      %v1868 = vadd.f32 %v1836, %v1852
      %v1869 = vadd.f32 %v1837, %v1853
      %v1870 = vadd.f32 %v1838, %v1854
      %v1871 = vadd.f32 %v1839, %v1855
      %v1872 = vadd.f32 %v1840, %v1856
      %v1873 = vmul.f32 %v1809, 0.25
      %v1874 = vmul.f32 %v1810, 0.25
      %v1875 = vmul.f32 %v1811, 0.25
      %v1876 = vmul.f32 %v1812, 0.25
      %v1877 = vmul.f32 %v1813, 0.25
      %v1878 = vmul.f32 %v1814, 0.25
      %v1879 = vmul.f32 %v1815, 0.25
      %v1880 = vmul.f32 %v1816, 0.25
      %v1881 = vmul.f32 %v1817, 0.25
      %v1882 = vmul.f32 %v1818, 0.25
      %v1883 = vmul.f32 %v1819, 0.25
      %v1884 = vmul.f32 %v1820, 0.25
      %v1885 = vmul.f32 %v1821, 0.25
      %v1886 = vmul.f32 %v1822, 0.25
      %v1887 = vmul.f32 %v1823, 0.25
      %v1888 = vmul.f32 %v1824, 0.25
      %v1889 = vadd.f32 %v1825, %v1873
      %v1890 = vadd.f32 %v1826, %v1874
      %v1891 = vadd.f32 %v1827, %v1875
      %v1892 = vadd.f32 %v1828, %v1876
      %v1893 = vadd.f32 %v1829, %v1877
      %v1894 = vadd.f32 %v1830, %v1878
      %v1895 = vadd.f32 %v1831, %v1879
      %v1896 = vadd.f32 %v1832, %v1880
      %v1897 = vadd.f32 %v1833, %v1881
      %v1898 = vadd.f32 %v1834, %v1882
      %v1899 = vadd.f32 %v1835, %v1883
      %v1900 = vadd.f32 %v1836, %v1884
      %v1901 = vadd.f32 %v1837, %v1885
      %v1902 = vadd.f32 %v1838, %v1886
      %v1903 = vadd.f32 %v1839, %v1887
      %v1904 = vadd.f32 %v1840, %v1888
      %v1905 = vld [vmem:[%s294 + $0x10] sm:$0x1]
      %v1906 = vld [vmem:[%s294 + $0x28] sm:$0x1]
      %v1907 = vld [vmem:[%s294 + $0x40] sm:$0x1]
      %v1908 = vld [vmem:[%s294 + $0x58] sm:$0x1]
      %v1909 = vld [vmem:[%s294 + $0x70] sm:$0x1]
      %v1910 = vld [vmem:[%s294 + $0x88] sm:$0x1]
      %v1911 = vld [vmem:[%s294 + $0xa0] sm:$0x1]
      %v1912 = vld [vmem:[%s294 + $0xb8] sm:$0x1]
      %v1913 = vld [vmem:[%s294 + $0xd0] sm:$0x1]
      %v1914 = vld [vmem:[%s294 + $0xe8] sm:$0x1]
      %v1915 = vld [vmem:[%s294 + $0x100] sm:$0x1]
      %v1916 = vld [vmem:[%s294 + $0x118] sm:$0x1]
      %v1917 = vld [vmem:[%s294 + $0x130] sm:$0x1]
      %v1918 = vld [vmem:[%s294 + $0x148] sm:$0x1]
      %v1919 = vld [vmem:[%s294 + $0x160] sm:$0x1]
      %v1920 = vld [vmem:[%s294 + $0x178] sm:$0x1]
      %v1921 = vld [vmem:[%s192 + $0x10] sm:$0x1]
      %v1922 = vld [vmem:[%s192 + $0x28] sm:$0x1]
      %v1923 = vld [vmem:[%s192 + $0x40] sm:$0x1]
      %v1924 = vld [vmem:[%s192 + $0x58] sm:$0x1]
      %v1925 = vld [vmem:[%s192 + $0x70] sm:$0x1]
      %v1926 = vld [vmem:[%s192 + $0x88] sm:$0x1]
      %v1927 = vld [vmem:[%s192 + $0xa0] sm:$0x1]
      %v1928 = vld [vmem:[%s192 + $0xb8] sm:$0x1]
      %v1929 = vld [vmem:[%s192 + $0xd0] sm:$0x1]
      %v1930 = vld [vmem:[%s192 + $0xe8] sm:$0x1]
      %v1931 = vld [vmem:[%s192 + $0x100] sm:$0x1]
      %v1932 = vld [vmem:[%s192 + $0x118] sm:$0x1]
      %v1933 = vld [vmem:[%s192 + $0x130] sm:$0x1]
      %v1934 = vld [vmem:[%s192 + $0x148] sm:$0x1]
      %v1935 = vld [vmem:[%s192 + $0x160] sm:$0x1]
      %v1936 = vld [vmem:[%s192 + $0x178] sm:$0x1]
      %v1937 = vld [vmem:[%s391 + $0x10] sm:$0x1]
      %v1938 = vld [vmem:[%s391 + $0x28] sm:$0x1]
      %v1939 = vld [vmem:[%s391 + $0x40] sm:$0x1]
      %v1940 = vld [vmem:[%s391 + $0x58] sm:$0x1]
      %v1941 = vld [vmem:[%s391 + $0x70] sm:$0x1]
      %v1942 = vld [vmem:[%s391 + $0x88] sm:$0x1]
      %v1943 = vld [vmem:[%s391 + $0xa0] sm:$0x1]
      %v1944 = vld [vmem:[%s391 + $0xb8] sm:$0x1]
      %v1945 = vld [vmem:[%s391 + $0xd0] sm:$0x1]
      %v1946 = vld [vmem:[%s391 + $0xe8] sm:$0x1]
      %v1947 = vld [vmem:[%s391 + $0x100] sm:$0x1]
      %v1948 = vld [vmem:[%s391 + $0x118] sm:$0x1]
      %v1949 = vld [vmem:[%s391 + $0x130] sm:$0x1]
      %v1950 = vld [vmem:[%s391 + $0x148] sm:$0x1]
      %v1951 = vld [vmem:[%s391 + $0x160] sm:$0x1]
      %v1952 = vld [vmem:[%s391 + $0x178] sm:$0x1]
      %v1953 = vmul.f32 %v1905, 0.75
      %v1954 = vmul.f32 %v1906, 0.75
      %v1955 = vmul.f32 %v1907, 0.75
      %v1956 = vmul.f32 %v1908, 0.75
      %v1957 = vmul.f32 %v1909, 0.75
      %v1958 = vmul.f32 %v1910, 0.75
      %v1959 = vmul.f32 %v1911, 0.75
      %v1960 = vmul.f32 %v1912, 0.75
      %v1961 = vmul.f32 %v1913, 0.75
      %v1962 = vmul.f32 %v1914, 0.75
      %v1963 = vmul.f32 %v1915, 0.75
      %v1964 = vmul.f32 %v1916, 0.75
      %v1965 = vmul.f32 %v1917, 0.75
      %v1966 = vmul.f32 %v1918, 0.75
      %v1967 = vmul.f32 %v1919, 0.75
      %v1968 = vmul.f32 %v1920, 0.75
      %v1969 = vmul.f32 %v1921, 0.25
      %v1970 = vmul.f32 %v1922, 0.25
      %v1971 = vmul.f32 %v1923, 0.25
      %v1972 = vmul.f32 %v1924, 0.25
      %v1973 = vmul.f32 %v1925, 0.25
      %v1974 = vmul.f32 %v1926, 0.25
      %v1975 = vmul.f32 %v1927, 0.25
      %v1976 = vmul.f32 %v1928, 0.25
      %v1977 = vmul.f32 %v1929, 0.25
      %v1978 = vmul.f32 %v1930, 0.25
      %v1979 = vmul.f32 %v1931, 0.25
      %v1980 = vmul.f32 %v1932, 0.25
      %v1981 = vmul.f32 %v1933, 0.25
      %v1982 = vmul.f32 %v1934, 0.25
      %v1983 = vmul.f32 %v1935, 0.25
      %v1984 = vmul.f32 %v1936, 0.25
      %v1985 = vadd.f32 %v1953, %v1969
      %v1986 = vadd.f32 %v1954, %v1970
      %v1987 = vadd.f32 %v1955, %v1971
      %v1988 = vadd.f32 %v1956, %v1972
      %v1989 = vadd.f32 %v1957, %v1973
      %v1990 = vadd.f32 %v1958, %v1974
      %v1991 = vadd.f32 %v1959, %v1975
      %v1992 = vadd.f32 %v1960, %v1976
      %v1993 = vadd.f32 %v1961, %v1977
      %v1994 = vadd.f32 %v1962, %v1978
      %v1995 = vadd.f32 %v1963, %v1979
      %v1996 = vadd.f32 %v1964, %v1980
      %v1997 = vadd.f32 %v1965, %v1981
      %v1998 = vadd.f32 %v1966, %v1982
      %v1999 = vadd.f32 %v1967, %v1983
      %v2000 = vadd.f32 %v1968, %v1984
      %v2001 = vmul.f32 %v1937, 0.25
      %v2002 = vmul.f32 %v1938, 0.25
      %v2003 = vmul.f32 %v1939, 0.25
      %v2004 = vmul.f32 %v1940, 0.25
      %v2005 = vmul.f32 %v1941, 0.25
      %v2006 = vmul.f32 %v1942, 0.25
      %v2007 = vmul.f32 %v1943, 0.25
      %v2008 = vmul.f32 %v1944, 0.25
      %v2009 = vmul.f32 %v1945, 0.25
      %v2010 = vmul.f32 %v1946, 0.25
      %v2011 = vmul.f32 %v1947, 0.25
      %v2012 = vmul.f32 %v1948, 0.25
      %v2013 = vmul.f32 %v1949, 0.25
      %v2014 = vmul.f32 %v1950, 0.25
      %v2015 = vmul.f32 %v1951, 0.25
      %v2016 = vmul.f32 %v1952, 0.25
      %v2017 = vadd.f32 %v1953, %v2001
      %v2018 = vadd.f32 %v1954, %v2002
      %v2019 = vadd.f32 %v1955, %v2003
      %v2020 = vadd.f32 %v1956, %v2004
      %v2021 = vadd.f32 %v1957, %v2005
      %v2022 = vadd.f32 %v1958, %v2006
      %v2023 = vadd.f32 %v1959, %v2007
      %v2024 = vadd.f32 %v1960, %v2008
      %v2025 = vadd.f32 %v1961, %v2009
      %v2026 = vadd.f32 %v1962, %v2010
      %v2027 = vadd.f32 %v1963, %v2011
      %v2028 = vadd.f32 %v1964, %v2012
      %v2029 = vadd.f32 %v1965, %v2013
      %v2030 = vadd.f32 %v1966, %v2014
      %v2031 = vadd.f32 %v1967, %v2015
      %v2032 = vadd.f32 %v1968, %v2016
      %v2033 = vld [vmem:[%s1] sm:$0xff]
      %v2034 = vld [vmem:[%s1 + $0x8] sm:$0xff]
      %v2035 = vld [vmem:[%s1 + $0x10] sm:$0xff]
      %v2036 = vld [vmem:[%s1 + $0x18] sm:$0xff]
      %v2037 = vld [vmem:[%s1 + $0x20] sm:$0xf]
      %v2039 = vlaneseq
      %v2040 = vshrl.u32 %v2039, 7
      %v2041 = vsub.s32 0, %v2040
      %v2042 = vrot.slane %v1776, %v2041
      %vm2044 = vcmask 293888
      %v2046 = vsel %vm2044, %v1744, 0
      %v2049 = vsel %vm2044, %v1745, 0
      %v2052 = vsel %vm2044, %v1746, 0
      %v2055 = vsel %vm2044, %v1747, 0
      %v2058 = vsel %vm2044, %v1748, 0
      %v2061 = vsel %vm2044, %v1749, 0
      %v2064 = vsel %vm2044, %v1750, 0
      %v2067 = vsel %vm2044, %v1751, 0
      %v2070 = vsel %vm2044, %v1752, 0
      %v2073 = vsel %vm2044, %v1753, 0
      %v2076 = vsel %vm2044, %v1754, 0
      %v2079 = vsel %vm2044, %v1755, 0
      %v2082 = vsel %vm2044, %v1756, 0
      %v2085 = vsel %vm2044, %v1757, 0
      %v2088 = vsel %vm2044, %v1758, 0
      %v2091 = vsel %vm2044, %v1759, 0
      %v2094 = vsel %vm2044, %v1760, 0
      %v2097 = vsel %vm2044, %v1761, 0
      %v2100 = vsel %vm2044, %v1762, 0
      %v2103 = vsel %vm2044, %v1763, 0
      %v2106 = vsel %vm2044, %v1764, 0
      %v2109 = vsel %vm2044, %v1765, 0
      %v2112 = vsel %vm2044, %v1766, 0
      %v2115 = vsel %vm2044, %v1767, 0
      %v2118 = vsel %vm2044, %v1768, 0
      %v2121 = vsel %vm2044, %v1769, 0
      %v2124 = vsel %vm2044, %v1770, 0
      %v2127 = vsel %vm2044, %v1771, 0
      %v2130 = vsel %vm2044, %v1772, 0
      %v2133 = vsel %vm2044, %v1773, 0
      %v2136 = vsel %vm2044, %v1774, 0
      %v2139 = vsel %vm2044, %v1775, 0
      %vm2141 = vcmask 1043456
      %v2143 = vsel %vm2141, %v2037, 0
      %2145 = vmatprep.subr.mxu0 0.0
      %2146 = vmatpush1.msra.mxu0 %v2033
      %2147 = vmatprep.subr.mxu0 0.0
      %2148 = vmatpush1.msra.mxu0 %v2034
      %2149 = vmatprep.subr.mxu0 0.0
      %2150 = vmatpush1.msra.mxu0 %v2035
      %2151 = vmatprep.subr.mxu0 0.0
      %2152 = vmatpush1.msra.mxu0 %v2036
      %2153 = vmatprep.subr.mxu0 0.0
      %2154 = vmatpush1.msra.mxu0 %v2143
      %2155 = vmatprep.subr.mxu0 0.0
      %2156 = vmatpush1.msra.mxu0 0.0
      %2157 = vmatprep.subr.mxu0 0.0
      %2158 = vmatpush1.msra.mxu0 0.0
      %2159 = vmatprep.subr.mxu0 0.0
      %2160 = vmatpush1.msra.mxu0 0.0
      %2161 = vmatprep.subr.mxu0 0.0
      %2162 = vmatpush1.msra.mxu0 0.0
      %2163 = vmatprep.subr.mxu0 0.0
      %2164 = vmatpush1.msra.mxu0 0.0
      %2165 = vmatprep.subr.mxu0 0.0
      %2166 = vmatpush1.msra.mxu0 0.0
      %2167 = vmatprep.subr.mxu0 0.0
      %2168 = vmatpush1.msra.mxu0 0.0
      %2169 = vmatprep.subr.mxu0 0.0
      %2170 = vmatpush1.msra.mxu0 0.0
      %2171 = vmatprep.subr.mxu0 0.0
      %2172 = vmatpush1.msra.mxu0 0.0
      %2173 = vmatprep.subr.mxu0 0.0
      %2174 = vmatpush1.msra.mxu0 0.0
      %2175 = vmatprep.subr.mxu0 0.0
      %2176 = vmatpush1.msra.mxu0 0.0
      %2177 = vmatprep.subr.mxu0 0.0
      %2178 = vmatpush1.msra.mxu0 0.0
      %2179 = vmatprep.subr.mxu0 0.0
      %2180 = vmatpush1.msra.mxu0 0.0
      %2181 = vmatprep.subr.mxu0 0.0
      %2182 = vmatpush1.msra.mxu0 0.0
      %2183 = vmatprep.subr.mxu0 0.0
      %2184 = vmatpush1.msra.mxu0 0.0
      %2185 = vmatprep.subr.mxu0 0.0
      %2186 = vmatpush1.msra.mxu0 0.0
      %2187 = vmatprep.subr.mxu0 0.0
      %2188 = vmatpush1.msra.mxu0 0.0
      %2189 = vmatprep.subr.mxu0 0.0
      %2190 = vmatpush1.msra.mxu0 0.0
      %2191 = vmatprep.subr.mxu0 0.0
      %2192 = vmatpush1.msra.mxu0 0.0
      %2193 = vmatprep.subr.mxu0 0.0
      %2194 = vmatpush1.msra.mxu0 0.0
      %2195 = vmatprep.subr.mxu0 0.0
      %2196 = vmatpush1.msra.mxu0 0.0
      %2197 = vmatprep.subr.mxu0 0.0
      %2198 = vmatpush1.msra.mxu0 0.0
      %2199 = vmatprep.subr.mxu0 0.0
      %2200 = vmatpush1.msra.mxu0 0.0
      %2201 = vmatprep.subr.mxu0 0.0
      %2202 = vmatpush1.msra.mxu0 0.0
      %2203 = vmatprep.subr.mxu0 0.0
      %2204 = vmatpush1.msra.mxu0 0.0
      %2205 = vmatprep.subr.mxu0 0.0
      %2206 = vmatpush1.msra.mxu0 0.0
      %2207 = vmatprep.subr.mxu0 0.0
      %2208 = vmatpush1.msra.mxu0 0.0
      %2209 = vmatprep.mubr.f32.mxu0 0.0
      %2210 = vmatmul.mubr.f32.gmra.mrb[0].mxu0 %v2046
      %v2211 = vpop.f32.mrb[0].mxu0
      %v2212 = vadd.f32 %v2042, %v2211
      %v2213 = vpop.f32.mrb[0].mxu0
      %2214 = vmatprep.mubr.f32.mxu0 0.0
      %2215 = vmatmul.mubr.f32.gmra.mrb[0].mxu0 %v2049
      %v2216 = vpop.f32.mrb[0].mxu0
      %v2217 = vadd.f32 %v2042, %v2216
      %v2218 = vpop.f32.mrb[0].mxu0
      %2219 = vmatprep.mubr.f32.mxu0 0.0
      %2220 = vmatmul.mubr.f32.gmra.mrb[0].mxu0 %v2052
      %v2221 = vpop.f32.mrb[0].mxu0
      %v2222 = vadd.f32 %v2042, %v2221
      %v2223 = vpop.f32.mrb[0].mxu0
      %2224 = vmatprep.mubr.f32.mxu0 0.0
      %2225 = vmatmul.mubr.f32.gmra.mrb[0].mxu0 %v2055
      %v2226 = vpop.f32.mrb[0].mxu0
      %v2227 = vadd.f32 %v2042, %v2226
      %v2228 = vpop.f32.mrb[0].mxu0
      %2229 = vmatprep.mubr.f32.mxu0 0.0
      %2230 = vmatmul.mubr.f32.gmra.mrb[0].mxu0 %v2058
      %v2231 = vpop.f32.mrb[0].mxu0
      %v2232 = vadd.f32 %v2042, %v2231
      %v2233 = vpop.f32.mrb[0].mxu0
      %2234 = vmatprep.mubr.f32.mxu0 0.0
      %2235 = vmatmul.mubr.f32.gmra.mrb[0].mxu0 %v2061
      %v2236 = vpop.f32.mrb[0].mxu0
      %v2237 = vadd.f32 %v2042, %v2236
      %v2238 = vpop.f32.mrb[0].mxu0
      %2239 = vmatprep.mubr.f32.mxu0 0.0
      %2240 = vmatmul.mubr.f32.gmra.mrb[0].mxu0 %v2064
      %v2241 = vpop.f32.mrb[0].mxu0
      %v2242 = vadd.f32 %v2042, %v2241
      %v2243 = vpop.f32.mrb[0].mxu0
      %2244 = vmatprep.mubr.f32.mxu0 0.0
      %2245 = vmatmul.mubr.f32.gmra.mrb[0].mxu0 %v2067
      %v2246 = vpop.f32.mrb[0].mxu0
      %v2247 = vadd.f32 %v2042, %v2246
      %v2248 = vpop.f32.mrb[0].mxu0
      %2249 = vmatprep.mubr.f32.mxu0 0.0
      %2250 = vmatmul.mubr.f32.gmra.mrb[0].mxu0 %v2070
      %v2251 = vpop.f32.mrb[0].mxu0
      %v2252 = vadd.f32 %v2042, %v2251
      %v2253 = vpop.f32.mrb[0].mxu0
      %2254 = vmatprep.mubr.f32.mxu0 0.0
      %2255 = vmatmul.mubr.f32.gmra.mrb[0].mxu0 %v2073
      %v2256 = vpop.f32.mrb[0].mxu0
      %v2257 = vadd.f32 %v2042, %v2256
      %v2258 = vpop.f32.mrb[0].mxu0
      %2259 = vmatprep.mubr.f32.mxu0 0.0
      %2260 = vmatmul.mubr.f32.gmra.mrb[0].mxu0 %v2076
      %v2261 = vpop.f32.mrb[0].mxu0
      %v2262 = vadd.f32 %v2042, %v2261
      %v2263 = vpop.f32.mrb[0].mxu0
      %2264 = vmatprep.mubr.f32.mxu0 0.0
      %2265 = vmatmul.mubr.f32.gmra.mrb[0].mxu0 %v2079
      %v2266 = vpop.f32.mrb[0].mxu0
      %v2267 = vadd.f32 %v2042, %v2266
      %v2268 = vpop.f32.mrb[0].mxu0
      %2269 = vmatprep.mubr.f32.mxu0 0.0
      %2270 = vmatmul.mubr.f32.gmra.mrb[0].mxu0 %v2082
      %v2271 = vpop.f32.mrb[0].mxu0
      %v2272 = vadd.f32 %v2042, %v2271
      %v2273 = vpop.f32.mrb[0].mxu0
      %2274 = vmatprep.mubr.f32.mxu0 0.0
      %2275 = vmatmul.mubr.f32.gmra.mrb[0].mxu0 %v2085
      %v2276 = vpop.f32.mrb[0].mxu0
      %v2277 = vadd.f32 %v2042, %v2276
      %v2278 = vpop.f32.mrb[0].mxu0
      %2279 = vmatprep.mubr.f32.mxu0 0.0
      %2280 = vmatmul.mubr.f32.gmra.mrb[0].mxu0 %v2088
      %v2281 = vpop.f32.mrb[0].mxu0
      %v2282 = vadd.f32 %v2042, %v2281
      %v2283 = vpop.f32.mrb[0].mxu0
      %2284 = vmatprep.mubr.f32.mxu0 0.0
      %2285 = vmatmul.mubr.f32.gmra.mrb[0].mxu0 %v2091
      %v2286 = vpop.f32.mrb[0].mxu0
      %v2287 = vadd.f32 %v2042, %v2286
      %v2288 = vpop.f32.mrb[0].mxu0
      %2289 = vmatprep.mubr.f32.mxu0 0.0
      %2290 = vmatmul.mubr.f32.gmra.mrb[0].mxu0 %v2094
      %v2291 = vpop.f32.mrb[0].mxu0
      %v2292 = vadd.f32 %v2042, %v2291
      %v2293 = vpop.f32.mrb[0].mxu0
      %2294 = vmatprep.mubr.f32.mxu0 0.0
      %2295 = vmatmul.mubr.f32.gmra.mrb[0].mxu0 %v2097
      %v2296 = vpop.f32.mrb[0].mxu0
      %v2297 = vadd.f32 %v2042, %v2296
      %v2298 = vpop.f32.mrb[0].mxu0
      %2299 = vmatprep.mubr.f32.mxu0 0.0
      %2300 = vmatmul.mubr.f32.gmra.mrb[0].mxu0 %v2100
      %v2301 = vpop.f32.mrb[0].mxu0
      %v2302 = vadd.f32 %v2042, %v2301
      %v2303 = vpop.f32.mrb[0].mxu0
      %2304 = vmatprep.mubr.f32.mxu0 0.0
      %2305 = vmatmul.mubr.f32.gmra.mrb[0].mxu0 %v2103
      %v2306 = vpop.f32.mrb[0].mxu0
      %v2307 = vadd.f32 %v2042, %v2306
      %v2308 = vpop.f32.mrb[0].mxu0
      %2309 = vmatprep.mubr.f32.mxu0 0.0
      %2310 = vmatmul.mubr.f32.gmra.mrb[0].mxu0 %v2106
      %v2311 = vpop.f32.mrb[0].mxu0
      %v2312 = vadd.f32 %v2042, %v2311
      %v2313 = vpop.f32.mrb[0].mxu0
      %2314 = vmatprep.mubr.f32.mxu0 0.0
      %2315 = vmatmul.mubr.f32.gmra.mrb[0].mxu0 %v2109
      %v2316 = vpop.f32.mrb[0].mxu0
      %v2317 = vadd.f32 %v2042, %v2316
      %v2318 = vpop.f32.mrb[0].mxu0
      %2319 = vmatprep.mubr.f32.mxu0 0.0
      %2320 = vmatmul.mubr.f32.gmra.mrb[0].mxu0 %v2112
      %v2321 = vpop.f32.mrb[0].mxu0
      %v2322 = vadd.f32 %v2042, %v2321
      %v2323 = vpop.f32.mrb[0].mxu0
      %2324 = vmatprep.mubr.f32.mxu0 0.0
      %2325 = vmatmul.mubr.f32.gmra.mrb[0].mxu0 %v2115
      %v2326 = vpop.f32.mrb[0].mxu0
      %v2327 = vadd.f32 %v2042, %v2326
      %v2328 = vpop.f32.mrb[0].mxu0
      %2329 = vmatprep.mubr.f32.mxu0 0.0
      %2330 = vmatmul.mubr.f32.gmra.mrb[0].mxu0 %v2118
      %v2331 = vpop.f32.mrb[0].mxu0
      %v2332 = vadd.f32 %v2042, %v2331
      %v2333 = vpop.f32.mrb[0].mxu0
      %2334 = vmatprep.mubr.f32.mxu0 0.0
      %2335 = vmatmul.mubr.f32.gmra.mrb[0].mxu0 %v2121
      %v2336 = vpop.f32.mrb[0].mxu0
      %v2337 = vadd.f32 %v2042, %v2336
      %v2338 = vpop.f32.mrb[0].mxu0
      %2339 = vmatprep.mubr.f32.mxu0 0.0
      %2340 = vmatmul.mubr.f32.gmra.mrb[0].mxu0 %v2124
      %v2341 = vpop.f32.mrb[0].mxu0
      %v2342 = vadd.f32 %v2042, %v2341
      %v2343 = vpop.f32.mrb[0].mxu0
      %2344 = vmatprep.mubr.f32.mxu0 0.0
      %2345 = vmatmul.mubr.f32.gmra.mrb[0].mxu0 %v2127
      %v2346 = vpop.f32.mrb[0].mxu0
      %v2347 = vadd.f32 %v2042, %v2346
      %v2348 = vpop.f32.mrb[0].mxu0
      %2349 = vmatprep.mubr.f32.mxu0 0.0
      %2350 = vmatmul.mubr.f32.gmra.mrb[0].mxu0 %v2130
      %v2351 = vpop.f32.mrb[0].mxu0
      %v2352 = vadd.f32 %v2042, %v2351
      %v2353 = vpop.f32.mrb[0].mxu0
      %2354 = vmatprep.mubr.f32.mxu0 0.0
      %2355 = vmatmul.mubr.f32.gmra.mrb[0].mxu0 %v2133
      %v2356 = vpop.f32.mrb[0].mxu0
      %v2357 = vadd.f32 %v2042, %v2356
      %v2358 = vpop.f32.mrb[0].mxu0
      %2359 = vmatprep.mubr.f32.mxu0 0.0
      %2360 = vmatmul.mubr.f32.gmra.mrb[0].mxu0 %v2136
      %v2361 = vpop.f32.mrb[0].mxu0
      %v2362 = vadd.f32 %v2042, %v2361
      %v2363 = vpop.f32.mrb[0].mxu0
      %2364 = vmatprep.mubr.f32.mxu0 0.0
      %2365 = vmatmul.mubr.f32.gmra.mrb[0].mxu0 %v2139
      %v2366 = vpop.f32.mrb[0].mxu0
      %v2367 = vadd.f32 %v2042, %v2366
      %v2368 = vpop.f32.mrb[0].mxu0
      %2369 = vdwg.mxu0
      %2370 = vst.msk [vmem:[%s197] sm:$0xff] %vm1611, %v2212
      %2371 = vst.msk [vmem:[%s197 + $0x8] sm:$0xff] %vm1611, %v2217
      %2372 = vst.msk [vmem:[%s197 + $0x20] sm:$0xff] %vm1611, %v2222
      %2373 = vst.msk [vmem:[%s197 + $0x28] sm:$0xff] %vm1611, %v2227
      %2374 = vst.msk [vmem:[%s197 + $0x40] sm:$0xff] %vm1611, %v2232
      %2375 = vst.msk [vmem:[%s197 + $0x48] sm:$0xff] %vm1611, %v2237
      %2376 = vst.msk [vmem:[%s197 + $0x60] sm:$0xff] %vm1611, %v2242
      %2377 = vst.msk [vmem:[%s197 + $0x68] sm:$0xff] %vm1611, %v2247
      %2378 = vst.msk [vmem:[%s197 + $0x80] sm:$0xff] %vm1611, %v2252
      %2379 = vst.msk [vmem:[%s197 + $0x88] sm:$0xff] %vm1611, %v2257
      %2380 = vst.msk [vmem:[%s197 + $0xa0] sm:$0xff] %vm1611, %v2262
      %2381 = vst.msk [vmem:[%s197 + $0xa8] sm:$0xff] %vm1611, %v2267
      %2382 = vst.msk [vmem:[%s197 + $0xc0] sm:$0xff] %vm1611, %v2272
      %2383 = vst.msk [vmem:[%s197 + $0xc8] sm:$0xff] %vm1611, %v2277
      %2384 = vst.msk [vmem:[%s197 + $0xe0] sm:$0xff] %vm1611, %v2282
      %2385 = vst.msk [vmem:[%s197 + $0xe8] sm:$0xff] %vm1611, %v2287
      %2386 = vst.msk [vmem:[%s197 + $0x100] sm:$0xff] %vm1611, %v2292
      %2387 = vst.msk [vmem:[%s197 + $0x108] sm:$0xff] %vm1611, %v2297
      %2388 = vst.msk [vmem:[%s197 + $0x120] sm:$0xff] %vm1611, %v2302
      %2389 = vst.msk [vmem:[%s197 + $0x128] sm:$0xff] %vm1611, %v2307
      %2390 = vst.msk [vmem:[%s197 + $0x140] sm:$0xff] %vm1611, %v2312
      %2391 = vst.msk [vmem:[%s197 + $0x148] sm:$0xff] %vm1611, %v2317
      %2392 = vst.msk [vmem:[%s197 + $0x160] sm:$0xff] %vm1611, %v2322
      %2393 = vst.msk [vmem:[%s197 + $0x168] sm:$0xff] %vm1611, %v2327
      %2394 = vst.msk [vmem:[%s197 + $0x180] sm:$0xff] %vm1611, %v2332
      %2395 = vst.msk [vmem:[%s197 + $0x188] sm:$0xff] %vm1611, %v2337
      %2396 = vst.msk [vmem:[%s197 + $0x1a0] sm:$0xff] %vm1611, %v2342
      %2397 = vst.msk [vmem:[%s197 + $0x1a8] sm:$0xff] %vm1611, %v2347
      %2398 = vst.msk [vmem:[%s197 + $0x1c0] sm:$0xff] %vm1611, %v2352
      %2399 = vst.msk [vmem:[%s197 + $0x1c8] sm:$0xff] %vm1611, %v2357
      %2400 = vst.msk [vmem:[%s197 + $0x1e0] sm:$0xff] %vm1611, %v2362
      %2401 = vst.msk [vmem:[%s197 + $0x1e8] sm:$0xff] %vm1611, %v2367
      %v2417 = vrot.slane %v1889, 7
      %v2418 = vrot.slane %v1890, 6
      %vm2419 = vcmask 1042434
      %v2420 = vsel %vm2419, %v2418, %v2417
      %v2421 = vrot.slane %v1891, 5
      %vm2422 = vcmask 1043459
      %v2423 = vsel %vm2422, %v2421, %v2420
      %v2424 = vrot.slane %v1892, 4
      %vm2425 = vcmask 1044484
      %v2426 = vsel %vm2425, %v2424, %v2423
      %v2427 = vrot.slane %v1893, 3
      %vm2428 = vcmask 1045509
      %v2429 = vsel %vm2428, %v2427, %v2426
      %v2430 = vrot.slane %v1894, 2
      %vm2431 = vcmask 1046534
      %v2432 = vsel %vm2431, %v2430, %v2429
      %v2433 = vrot.slane %v1895, 1
      %vm2434 = vcmask 1047559
      %v2435 = vsel %vm2434, %v2433, %v2432
      %v2436 = vrot.slane %v1897, 7
      %vm2437 = vcmask 1041409
      %v2438 = vsel %vm2437, %v2436, %v1896
      %v2439 = vrot.slane %v1898, 6
      %v2440 = vsel %vm2419, %v2439, %v2438
      %v2441 = vrot.slane %v1899, 5
      %v2442 = vsel %vm2422, %v2441, %v2440
      %v2443 = vrot.slane %v1900, 4
      %v2444 = vsel %vm2425, %v2443, %v2442
      %v2445 = vrot.slane %v1901, 3
      %v2446 = vsel %vm2428, %v2445, %v2444
      %v2447 = vrot.slane %v1902, 2
      %v2448 = vsel %vm2431, %v2447, %v2446
      %v2449 = vrot.slane %v1903, 1
      %v2450 = vsel %vm2434, %v2449, %v2448
      %vm2452 = vcmask 1040384
      %v2453 = vsel %vm2452, %v1857, %v2435
      %v2454 = vld [vmem:[%s2] sm:$0xf]
      %s2455 = scalar_lea.vmem %s2, 12
      %v2456 = vld [vmem:[%s2455] sm:$0xf]
      %v2473 = vrot.slane %v1858, 7
      %v2474 = vsel %vm2437, %v2473, %v1857
      %v2475 = vrot.slane %v1859, 6
      %v2476 = vsel %vm2419, %v2475, %v2474
      %v2477 = vrot.slane %v1860, 5
      %v2478 = vsel %vm2422, %v2477, %v2476
      %v2479 = vrot.slane %v1861, 4
      %v2480 = vsel %vm2425, %v2479, %v2478
      %v2481 = vrot.slane %v1862, 3
      %v2482 = vsel %vm2428, %v2481, %v2480
      %v2483 = vrot.slane %v1863, 2
      %v2484 = vsel %vm2431, %v2483, %v2482
      %v2485 = vrot.slane %v1864, 1
      %v2486 = vsel %vm2434, %v2485, %v2484
      %v2487 = vrot.slane %v1866, 7
      %v2488 = vsel %vm2437, %v2487, %v1865
      %v2489 = vrot.slane %v1867, 6
      %v2490 = vsel %vm2419, %v2489, %v2488
      %v2491 = vrot.slane %v1868, 5
      %v2492 = vsel %vm2422, %v2491, %v2490
      %v2493 = vrot.slane %v1869, 4
      %v2494 = vsel %vm2425, %v2493, %v2492
      %v2495 = vrot.slane %v1870, 3
      %v2496 = vsel %vm2428, %v2495, %v2494
      %v2497 = vrot.slane %v1871, 2
      %v2498 = vsel %vm2431, %v2497, %v2496
      %v2499 = vrot.slane %v1872, 1
      %v2500 = vsel %vm2434, %v2499, %v2498
      %v2501 = vsel %vm1512, %v2486, 0
      %v2503 = vsel %vm1512, %v2500, 0
      %v2506 = vsel %vm2141, %v2456, 0
      %2508 = vmatprep.subr.mxu0 0.0
      %2509 = vmatpush1.msra.mxu0 %v2506
      %2510 = vmatprep.subr.mxu0 0.0
      %2511 = vmatpush1.msra.mxu0 0.0
      %2512 = vmatprep.subr.mxu0 0.0
      %2513 = vmatpush1.msra.mxu0 0.0
      %2514 = vmatprep.subr.mxu0 0.0
      %2515 = vmatpush1.msra.mxu0 0.0
      %2516 = vmatprep.subr.mxu0 0.0
      %2517 = vmatpush1.msra.mxu0 0.0
      %2518 = vmatprep.subr.mxu0 0.0
      %2519 = vmatpush1.msra.mxu0 0.0
      %2520 = vmatprep.subr.mxu0 0.0
      %2521 = vmatpush1.msra.mxu0 0.0
      %2522 = vmatprep.subr.mxu0 0.0
      %2523 = vmatpush1.msra.mxu0 0.0
      %2524 = vmatprep.subr.mxu0 0.0
      %2525 = vmatpush1.msra.mxu0 0.0
      %2526 = vmatprep.subr.mxu0 0.0
      %2527 = vmatpush1.msra.mxu0 0.0
      %2528 = vmatprep.subr.mxu0 0.0
      %2529 = vmatpush1.msra.mxu0 0.0
      %2530 = vmatprep.subr.mxu0 0.0
      %2531 = vmatpush1.msra.mxu0 0.0
      %2532 = vmatprep.subr.mxu0 0.0
      %2533 = vmatpush1.msra.mxu0 0.0
      %2534 = vmatprep.subr.mxu0 0.0
      %2535 = vmatpush1.msra.mxu0 0.0
      %2536 = vmatprep.subr.mxu0 0.0
      %2537 = vmatpush1.msra.mxu0 0.0
      %2538 = vmatprep.subr.mxu0 0.0
      %2539 = vmatpush1.msra.mxu0 0.0
      %2540 = vmatprep.subr.mxu0 0.0
      %2541 = vmatpush1.msra.mxu0 0.0
      %2542 = vmatprep.subr.mxu0 0.0
      %2543 = vmatpush1.msra.mxu0 0.0
      %2544 = vmatprep.subr.mxu0 0.0
      %2545 = vmatpush1.msra.mxu0 0.0
      %2546 = vmatprep.subr.mxu0 0.0
      %2547 = vmatpush1.msra.mxu0 0.0
      %2548 = vmatprep.subr.mxu0 0.0
      %2549 = vmatpush1.msra.mxu0 0.0
      %2550 = vmatprep.subr.mxu0 0.0
      %2551 = vmatpush1.msra.mxu0 0.0
      %2552 = vmatprep.subr.mxu0 0.0
      %2553 = vmatpush1.msra.mxu0 0.0
      %2554 = vmatprep.subr.mxu0 0.0
      %2555 = vmatpush1.msra.mxu0 0.0
      %2556 = vmatprep.subr.mxu0 0.0
      %2557 = vmatpush1.msra.mxu0 0.0
      %2558 = vmatprep.subr.mxu0 0.0
      %2559 = vmatpush1.msra.mxu0 0.0
      %2560 = vmatprep.subr.mxu0 0.0
      %2561 = vmatpush1.msra.mxu0 0.0
      %2562 = vmatprep.subr.mxu0 0.0
      %2563 = vmatpush1.msra.mxu0 0.0
      %2564 = vmatprep.subr.mxu0 0.0
      %2565 = vmatpush1.msra.mxu0 0.0
      %2566 = vmatprep.subr.mxu0 0.0
      %2567 = vmatpush1.msra.mxu0 0.0
      %2568 = vmatprep.subr.mxu0 0.0
      %2569 = vmatpush1.msra.mxu0 0.0
      %2570 = vmatprep.subr.mxu0 0.0
      %2571 = vmatpush1.msra.mxu0 0.0
      %2572 = vmatprep.mubr.f32.mxu0 0.0
      %2573 = vmatmul.mubr.f32.gmra.mrb[0].mxu0 %v2501
      %v2574 = vpop.f32.mrb[0].mxu0
      %v2575 = vadd.f32 0.0, %v2574
      %v2576 = vpop.f32.mrb[0].mxu0
      %2577 = vmatprep.mubr.f32.mxu0 0.0
      %2578 = vmatmul.mubr.f32.gmra.mrb[0].mxu0 %v2503
      %v2579 = vpop.f32.mrb[0].mxu0
      %v2580 = vadd.f32 0.0, %v2579
      %v2581 = vpop.f32.mrb[0].mxu0
      %2582 = vdwg.mxu0
      %v2584 = vsel %vm1512, %v2453, 0
      %v2586 = vsel %vm1512, %v2450, 0
      %v2589 = vsel %vm2141, %v2454, 0
      %2591 = vmatprep.subr.mxu0 0.0
      %2592 = vmatpush1.msra.mxu0 %v2589
      %2593 = vmatprep.subr.mxu0 0.0
      %2594 = vmatpush1.msra.mxu0 0.0
      %2595 = vmatprep.subr.mxu0 0.0
      %2596 = vmatpush1.msra.mxu0 0.0
      %2597 = vmatprep.subr.mxu0 0.0
      %2598 = vmatpush1.msra.mxu0 0.0
      %2599 = vmatprep.subr.mxu0 0.0
      %2600 = vmatpush1.msra.mxu0 0.0
      %2601 = vmatprep.subr.mxu0 0.0
      %2602 = vmatpush1.msra.mxu0 0.0
      %2603 = vmatprep.subr.mxu0 0.0
      %2604 = vmatpush1.msra.mxu0 0.0
      %2605 = vmatprep.subr.mxu0 0.0
      %2606 = vmatpush1.msra.mxu0 0.0
      %2607 = vmatprep.subr.mxu0 0.0
      %2608 = vmatpush1.msra.mxu0 0.0
      %2609 = vmatprep.subr.mxu0 0.0
      %2610 = vmatpush1.msra.mxu0 0.0
      %2611 = vmatprep.subr.mxu0 0.0
      %2612 = vmatpush1.msra.mxu0 0.0
      %2613 = vmatprep.subr.mxu0 0.0
      %2614 = vmatpush1.msra.mxu0 0.0
      %2615 = vmatprep.subr.mxu0 0.0
      %2616 = vmatpush1.msra.mxu0 0.0
      %2617 = vmatprep.subr.mxu0 0.0
      %2618 = vmatpush1.msra.mxu0 0.0
      %2619 = vmatprep.subr.mxu0 0.0
      %2620 = vmatpush1.msra.mxu0 0.0
      %2621 = vmatprep.subr.mxu0 0.0
      %2622 = vmatpush1.msra.mxu0 0.0
      %2623 = vmatprep.subr.mxu0 0.0
      %2624 = vmatpush1.msra.mxu0 0.0
      %2625 = vmatprep.subr.mxu0 0.0
      %2626 = vmatpush1.msra.mxu0 0.0
      %2627 = vmatprep.subr.mxu0 0.0
      %2628 = vmatpush1.msra.mxu0 0.0
      %2629 = vmatprep.subr.mxu0 0.0
      %2630 = vmatpush1.msra.mxu0 0.0
      %2631 = vmatprep.subr.mxu0 0.0
      %2632 = vmatpush1.msra.mxu0 0.0
      %2633 = vmatprep.subr.mxu0 0.0
      %2634 = vmatpush1.msra.mxu0 0.0
      %2635 = vmatprep.subr.mxu0 0.0
      %2636 = vmatpush1.msra.mxu0 0.0
      %2637 = vmatprep.subr.mxu0 0.0
      %2638 = vmatpush1.msra.mxu0 0.0
      %2639 = vmatprep.subr.mxu0 0.0
      %2640 = vmatpush1.msra.mxu0 0.0
      %2641 = vmatprep.subr.mxu0 0.0
      %2642 = vmatpush1.msra.mxu0 0.0
      %2643 = vmatprep.subr.mxu0 0.0
      %2644 = vmatpush1.msra.mxu0 0.0
      %2645 = vmatprep.subr.mxu0 0.0
      %2646 = vmatpush1.msra.mxu0 0.0
      %2647 = vmatprep.subr.mxu0 0.0
      %2648 = vmatpush1.msra.mxu0 0.0
      %2649 = vmatprep.subr.mxu0 0.0
      %2650 = vmatpush1.msra.mxu0 0.0
      %2651 = vmatprep.subr.mxu0 0.0
      %2652 = vmatpush1.msra.mxu0 0.0
      %2653 = vmatprep.subr.mxu0 0.0
      %2654 = vmatpush1.msra.mxu0 0.0
      %2655 = vmatprep.mubr.f32.mxu0 0.0
      %2656 = vmatmul.mubr.f32.gmra.mrb[0].mxu0 %v2584
      %v2657 = vpop.f32.mrb[0].mxu0
      %v2658 = vadd.f32 %v2575, %v2657
      %v2659 = vpop.f32.mrb[0].mxu0
      %2660 = vmatprep.mubr.f32.mxu0 0.0
      %2661 = vmatmul.mubr.f32.gmra.mrb[0].mxu0 %v2586
      %v2662 = vpop.f32.mrb[0].mxu0
      %v2663 = vadd.f32 %v2580, %v2662
      %v2664 = vpop.f32.mrb[0].mxu0
      %2665 = vdwg.mxu0
      %s2666 = scalar_lea.vmem %s2, 24
      %v2667 = vld [vmem:[%s2666] sm:$0xf]
      %v2669 = vrot.slane %v1890, 7
      %v2670 = vsel %vm2437, %v2669, %v1889
      %v2671 = vrot.slane %v1891, 6
      %v2672 = vsel %vm2419, %v2671, %v2670
      %v2673 = vrot.slane %v1892, 5
      %v2674 = vsel %vm2422, %v2673, %v2672
      %v2675 = vrot.slane %v1893, 4
      %v2676 = vsel %vm2425, %v2675, %v2674
      %v2677 = vrot.slane %v1894, 3
      %v2678 = vsel %vm2428, %v2677, %v2676
      %v2679 = vrot.slane %v1895, 2
      %v2680 = vsel %vm2431, %v2679, %v2678
      %v2681 = vrot.slane %v1896, 1
      %v2682 = vsel %vm2434, %v2681, %v2680
      %v2683 = vrot.slane %v1898, 7
      %v2684 = vsel %vm2437, %v2683, %v1897
      %v2685 = vrot.slane %v1899, 6
      %v2686 = vsel %vm2419, %v2685, %v2684
      %v2687 = vrot.slane %v1900, 5
      %v2688 = vsel %vm2422, %v2687, %v2686
      %v2689 = vrot.slane %v1901, 4
      %v2690 = vsel %vm2425, %v2689, %v2688
      %v2691 = vrot.slane %v1902, 3
      %v2692 = vsel %vm2428, %v2691, %v2690
      %v2693 = vrot.slane %v1903, 2
      %v2694 = vsel %vm2431, %v2693, %v2692
      %v2695 = vrot.slane %v1904, 1
      %v2696 = vsel %vm2434, %v2695, %v2694
      %v2697 = vsel %vm1512, %v2682, 0
      %v2699 = vsel %vm1512, %v2696, 0
      %v2702 = vsel %vm2141, %v2667, 0
      %2704 = vmatprep.subr.mxu0 0.0
      %2705 = vmatpush1.msra.mxu0 %v2702
      %2706 = vmatprep.subr.mxu0 0.0
      %2707 = vmatpush1.msra.mxu0 0.0
      %2708 = vmatprep.subr.mxu0 0.0
      %2709 = vmatpush1.msra.mxu0 0.0
      %2710 = vmatprep.subr.mxu0 0.0
      %2711 = vmatpush1.msra.mxu0 0.0
      %2712 = vmatprep.subr.mxu0 0.0
      %2713 = vmatpush1.msra.mxu0 0.0
      %2714 = vmatprep.subr.mxu0 0.0
      %2715 = vmatpush1.msra.mxu0 0.0
      %2716 = vmatprep.subr.mxu0 0.0
      %2717 = vmatpush1.msra.mxu0 0.0
      %2718 = vmatprep.subr.mxu0 0.0
      %2719 = vmatpush1.msra.mxu0 0.0
      %2720 = vmatprep.subr.mxu0 0.0
      %2721 = vmatpush1.msra.mxu0 0.0
      %2722 = vmatprep.subr.mxu0 0.0
      %2723 = vmatpush1.msra.mxu0 0.0
      %2724 = vmatprep.subr.mxu0 0.0
      %2725 = vmatpush1.msra.mxu0 0.0
      %2726 = vmatprep.subr.mxu0 0.0
      %2727 = vmatpush1.msra.mxu0 0.0
      %2728 = vmatprep.subr.mxu0 0.0
      %2729 = vmatpush1.msra.mxu0 0.0
      %2730 = vmatprep.subr.mxu0 0.0
      %2731 = vmatpush1.msra.mxu0 0.0
      %2732 = vmatprep.subr.mxu0 0.0
      %2733 = vmatpush1.msra.mxu0 0.0
      %2734 = vmatprep.subr.mxu0 0.0
      %2735 = vmatpush1.msra.mxu0 0.0
      %2736 = vmatprep.subr.mxu0 0.0
      %2737 = vmatpush1.msra.mxu0 0.0
      %2738 = vmatprep.subr.mxu0 0.0
      %2739 = vmatpush1.msra.mxu0 0.0
      %2740 = vmatprep.subr.mxu0 0.0
      %2741 = vmatpush1.msra.mxu0 0.0
      %2742 = vmatprep.subr.mxu0 0.0
      %2743 = vmatpush1.msra.mxu0 0.0
      %2744 = vmatprep.subr.mxu0 0.0
      %2745 = vmatpush1.msra.mxu0 0.0
      %2746 = vmatprep.subr.mxu0 0.0
      %2747 = vmatpush1.msra.mxu0 0.0
      %2748 = vmatprep.subr.mxu0 0.0
      %2749 = vmatpush1.msra.mxu0 0.0
      %2750 = vmatprep.subr.mxu0 0.0
      %2751 = vmatpush1.msra.mxu0 0.0
      %2752 = vmatprep.subr.mxu0 0.0
      %2753 = vmatpush1.msra.mxu0 0.0
      %2754 = vmatprep.subr.mxu0 0.0
      %2755 = vmatpush1.msra.mxu0 0.0
      %2756 = vmatprep.subr.mxu0 0.0
      %2757 = vmatpush1.msra.mxu0 0.0
      %2758 = vmatprep.subr.mxu0 0.0
      %2759 = vmatpush1.msra.mxu0 0.0
      %2760 = vmatprep.subr.mxu0 0.0
      %2761 = vmatpush1.msra.mxu0 0.0
      %2762 = vmatprep.subr.mxu0 0.0
      %2763 = vmatpush1.msra.mxu0 0.0
      %2764 = vmatprep.subr.mxu0 0.0
      %2765 = vmatpush1.msra.mxu0 0.0
      %2766 = vmatprep.subr.mxu0 0.0
      %2767 = vmatpush1.msra.mxu0 0.0
      %2768 = vmatprep.mubr.f32.mxu0 0.0
      %2769 = vmatmul.mubr.f32.gmra.mrb[0].mxu0 %v2697
      %v2770 = vpop.f32.mrb[0].mxu0
      %v2771 = vadd.f32 0.0, %v2770
      %v2772 = vpop.f32.mrb[0].mxu0
      %2773 = vmatprep.mubr.f32.mxu0 0.0
      %2774 = vmatmul.mubr.f32.gmra.mrb[0].mxu0 %v2699
      %v2775 = vpop.f32.mrb[0].mxu0
      %v2776 = vadd.f32 0.0, %v2775
      %v2777 = vpop.f32.mrb[0].mxu0
      %2778 = vdwg.mxu0
      %v2779 = vadd.f32 %v2658, %v2771
      %v2780 = vadd.f32 %v2663, %v2776
      %v2796 = vrot.slane %v2017, 7
      %v2797 = vrot.slane %v2018, 6
      %v2798 = vsel %vm2419, %v2797, %v2796
      %v2799 = vrot.slane %v2019, 5
      %v2800 = vsel %vm2422, %v2799, %v2798
      %v2801 = vrot.slane %v2020, 4
      %v2802 = vsel %vm2425, %v2801, %v2800
      %v2803 = vrot.slane %v2021, 3
      %v2804 = vsel %vm2428, %v2803, %v2802
      %v2805 = vrot.slane %v2022, 2
      %v2806 = vsel %vm2431, %v2805, %v2804
      %v2807 = vrot.slane %v2023, 1
      %v2808 = vsel %vm2434, %v2807, %v2806
      %v2809 = vrot.slane %v2025, 7
      %v2810 = vsel %vm2437, %v2809, %v2024
      %v2811 = vrot.slane %v2026, 6
      %v2812 = vsel %vm2419, %v2811, %v2810
      %v2813 = vrot.slane %v2027, 5
      %v2814 = vsel %vm2422, %v2813, %v2812
      %v2815 = vrot.slane %v2028, 4
      %v2816 = vsel %vm2425, %v2815, %v2814
      %v2817 = vrot.slane %v2029, 3
      %v2818 = vsel %vm2428, %v2817, %v2816
      %v2819 = vrot.slane %v2030, 2
      %v2820 = vsel %vm2431, %v2819, %v2818
      %v2821 = vrot.slane %v2031, 1
      %v2822 = vsel %vm2434, %v2821, %v2820
      %v2824 = vsel %vm2452, %v1985, %v2808
      %s2825 = scalar_lea.vmem %s2, 8
      %v2826 = vld [vmem:[%s2825] sm:$0xf]
      %s2827 = scalar_lea.vmem %s2, 20
      %v2828 = vld [vmem:[%s2827] sm:$0xf]
      %v2845 = vrot.slane %v1986, 7
      %v2846 = vsel %vm2437, %v2845, %v1985
      %v2847 = vrot.slane %v1987, 6
      %v2848 = vsel %vm2419, %v2847, %v2846
      %v2849 = vrot.slane %v1988, 5
      %v2850 = vsel %vm2422, %v2849, %v2848
      %v2851 = vrot.slane %v1989, 4
      %v2852 = vsel %vm2425, %v2851, %v2850
      %v2853 = vrot.slane %v1990, 3
      %v2854 = vsel %vm2428, %v2853, %v2852
      %v2855 = vrot.slane %v1991, 2
      %v2856 = vsel %vm2431, %v2855, %v2854
      %v2857 = vrot.slane %v1992, 1
      %v2858 = vsel %vm2434, %v2857, %v2856
      %v2859 = vrot.slane %v1994, 7
      %v2860 = vsel %vm2437, %v2859, %v1993
      %v2861 = vrot.slane %v1995, 6
      %v2862 = vsel %vm2419, %v2861, %v2860
      %v2863 = vrot.slane %v1996, 5
      %v2864 = vsel %vm2422, %v2863, %v2862
      %v2865 = vrot.slane %v1997, 4
      %v2866 = vsel %vm2425, %v2865, %v2864
      %v2867 = vrot.slane %v1998, 3
      %v2868 = vsel %vm2428, %v2867, %v2866
      %v2869 = vrot.slane %v1999, 2
      %v2870 = vsel %vm2431, %v2869, %v2868
      %v2871 = vrot.slane %v2000, 1
      %v2872 = vsel %vm2434, %v2871, %v2870
      %v2873 = vsel %vm1512, %v2858, 0
      %v2875 = vsel %vm1512, %v2872, 0
      %v2878 = vsel %vm2141, %v2828, 0
      %2880 = vmatprep.subr.mxu0 0.0
      %2881 = vmatpush1.msra.mxu0 %v2878
      %2882 = vmatprep.subr.mxu0 0.0
      %2883 = vmatpush1.msra.mxu0 0.0
      %2884 = vmatprep.subr.mxu0 0.0
      %2885 = vmatpush1.msra.mxu0 0.0
      %2886 = vmatprep.subr.mxu0 0.0
      %2887 = vmatpush1.msra.mxu0 0.0
      %2888 = vmatprep.subr.mxu0 0.0
      %2889 = vmatpush1.msra.mxu0 0.0
      %2890 = vmatprep.subr.mxu0 0.0
      %2891 = vmatpush1.msra.mxu0 0.0
      %2892 = vmatprep.subr.mxu0 0.0
      %2893 = vmatpush1.msra.mxu0 0.0
      %2894 = vmatprep.subr.mxu0 0.0
      %2895 = vmatpush1.msra.mxu0 0.0
      %2896 = vmatprep.subr.mxu0 0.0
      %2897 = vmatpush1.msra.mxu0 0.0
      %2898 = vmatprep.subr.mxu0 0.0
      %2899 = vmatpush1.msra.mxu0 0.0
      %2900 = vmatprep.subr.mxu0 0.0
      %2901 = vmatpush1.msra.mxu0 0.0
      %2902 = vmatprep.subr.mxu0 0.0
      %2903 = vmatpush1.msra.mxu0 0.0
      %2904 = vmatprep.subr.mxu0 0.0
      %2905 = vmatpush1.msra.mxu0 0.0
      %2906 = vmatprep.subr.mxu0 0.0
      %2907 = vmatpush1.msra.mxu0 0.0
      %2908 = vmatprep.subr.mxu0 0.0
      %2909 = vmatpush1.msra.mxu0 0.0
      %2910 = vmatprep.subr.mxu0 0.0
      %2911 = vmatpush1.msra.mxu0 0.0
      %2912 = vmatprep.subr.mxu0 0.0
      %2913 = vmatpush1.msra.mxu0 0.0
      %2914 = vmatprep.subr.mxu0 0.0
      %2915 = vmatpush1.msra.mxu0 0.0
      %2916 = vmatprep.subr.mxu0 0.0
      %2917 = vmatpush1.msra.mxu0 0.0
      %2918 = vmatprep.subr.mxu0 0.0
      %2919 = vmatpush1.msra.mxu0 0.0
      %2920 = vmatprep.subr.mxu0 0.0
      %2921 = vmatpush1.msra.mxu0 0.0
      %2922 = vmatprep.subr.mxu0 0.0
      %2923 = vmatpush1.msra.mxu0 0.0
      %2924 = vmatprep.subr.mxu0 0.0
      %2925 = vmatpush1.msra.mxu0 0.0
      %2926 = vmatprep.subr.mxu0 0.0
      %2927 = vmatpush1.msra.mxu0 0.0
      %2928 = vmatprep.subr.mxu0 0.0
      %2929 = vmatpush1.msra.mxu0 0.0
      %2930 = vmatprep.subr.mxu0 0.0
      %2931 = vmatpush1.msra.mxu0 0.0
      %2932 = vmatprep.subr.mxu0 0.0
      %2933 = vmatpush1.msra.mxu0 0.0
      %2934 = vmatprep.subr.mxu0 0.0
      %2935 = vmatpush1.msra.mxu0 0.0
      %2936 = vmatprep.subr.mxu0 0.0
      %2937 = vmatpush1.msra.mxu0 0.0
      %2938 = vmatprep.subr.mxu0 0.0
      %2939 = vmatpush1.msra.mxu0 0.0
      %2940 = vmatprep.subr.mxu0 0.0
      %2941 = vmatpush1.msra.mxu0 0.0
      %2942 = vmatprep.subr.mxu0 0.0
      %2943 = vmatpush1.msra.mxu0 0.0
      %2944 = vmatprep.mubr.f32.mxu0 0.0
      %2945 = vmatmul.mubr.f32.gmra.mrb[0].mxu0 %v2873
      %v2946 = vpop.f32.mrb[0].mxu0
      %v2947 = vadd.f32 0.0, %v2946
      %v2948 = vpop.f32.mrb[0].mxu0
      %2949 = vmatprep.mubr.f32.mxu0 0.0
      %2950 = vmatmul.mubr.f32.gmra.mrb[0].mxu0 %v2875
      %v2951 = vpop.f32.mrb[0].mxu0
      %v2952 = vadd.f32 0.0, %v2951
      %v2953 = vpop.f32.mrb[0].mxu0
      %2954 = vdwg.mxu0
      %v2956 = vsel %vm1512, %v2824, 0
      %v2958 = vsel %vm1512, %v2822, 0
      %v2961 = vsel %vm2141, %v2826, 0
      %2963 = vmatprep.subr.mxu0 0.0
      %2964 = vmatpush1.msra.mxu0 %v2961
      %2965 = vmatprep.subr.mxu0 0.0
      %2966 = vmatpush1.msra.mxu0 0.0
      %2967 = vmatprep.subr.mxu0 0.0
      %2968 = vmatpush1.msra.mxu0 0.0
      %2969 = vmatprep.subr.mxu0 0.0
      %2970 = vmatpush1.msra.mxu0 0.0
      %2971 = vmatprep.subr.mxu0 0.0
      %2972 = vmatpush1.msra.mxu0 0.0
      %2973 = vmatprep.subr.mxu0 0.0
      %2974 = vmatpush1.msra.mxu0 0.0
      %2975 = vmatprep.subr.mxu0 0.0
      %2976 = vmatpush1.msra.mxu0 0.0
      %2977 = vmatprep.subr.mxu0 0.0
      %2978 = vmatpush1.msra.mxu0 0.0
      %2979 = vmatprep.subr.mxu0 0.0
      %2980 = vmatpush1.msra.mxu0 0.0
      %2981 = vmatprep.subr.mxu0 0.0
      %2982 = vmatpush1.msra.mxu0 0.0
      %2983 = vmatprep.subr.mxu0 0.0
      %2984 = vmatpush1.msra.mxu0 0.0
      %2985 = vmatprep.subr.mxu0 0.0
      %2986 = vmatpush1.msra.mxu0 0.0
      %2987 = vmatprep.subr.mxu0 0.0
      %2988 = vmatpush1.msra.mxu0 0.0
      %2989 = vmatprep.subr.mxu0 0.0
      %2990 = vmatpush1.msra.mxu0 0.0
      %2991 = vmatprep.subr.mxu0 0.0
      %2992 = vmatpush1.msra.mxu0 0.0
      %2993 = vmatprep.subr.mxu0 0.0
      %2994 = vmatpush1.msra.mxu0 0.0
      %2995 = vmatprep.subr.mxu0 0.0
      %2996 = vmatpush1.msra.mxu0 0.0
      %2997 = vmatprep.subr.mxu0 0.0
      %2998 = vmatpush1.msra.mxu0 0.0
      %2999 = vmatprep.subr.mxu0 0.0
      %3000 = vmatpush1.msra.mxu0 0.0
      %3001 = vmatprep.subr.mxu0 0.0
      %3002 = vmatpush1.msra.mxu0 0.0
      %3003 = vmatprep.subr.mxu0 0.0
      %3004 = vmatpush1.msra.mxu0 0.0
      %3005 = vmatprep.subr.mxu0 0.0
      %3006 = vmatpush1.msra.mxu0 0.0
      %3007 = vmatprep.subr.mxu0 0.0
      %3008 = vmatpush1.msra.mxu0 0.0
      %3009 = vmatprep.subr.mxu0 0.0
      %3010 = vmatpush1.msra.mxu0 0.0
      %3011 = vmatprep.subr.mxu0 0.0
      %3012 = vmatpush1.msra.mxu0 0.0
      %3013 = vmatprep.subr.mxu0 0.0
      %3014 = vmatpush1.msra.mxu0 0.0
      %3015 = vmatprep.subr.mxu0 0.0
      %3016 = vmatpush1.msra.mxu0 0.0
      %3017 = vmatprep.subr.mxu0 0.0
      %3018 = vmatpush1.msra.mxu0 0.0
      %3019 = vmatprep.subr.mxu0 0.0
      %3020 = vmatpush1.msra.mxu0 0.0
      %3021 = vmatprep.subr.mxu0 0.0
      %3022 = vmatpush1.msra.mxu0 0.0
      %3023 = vmatprep.subr.mxu0 0.0
      %3024 = vmatpush1.msra.mxu0 0.0
      %3025 = vmatprep.subr.mxu0 0.0
      %3026 = vmatpush1.msra.mxu0 0.0
      %3027 = vmatprep.mubr.f32.mxu0 0.0
      %3028 = vmatmul.mubr.f32.gmra.mrb[0].mxu0 %v2956
      %v3029 = vpop.f32.mrb[0].mxu0
      %v3030 = vadd.f32 %v2947, %v3029
      %v3031 = vpop.f32.mrb[0].mxu0
      %3032 = vmatprep.mubr.f32.mxu0 0.0
      %3033 = vmatmul.mubr.f32.gmra.mrb[0].mxu0 %v2958
      %v3034 = vpop.f32.mrb[0].mxu0
      %v3035 = vadd.f32 %v2952, %v3034
      %v3036 = vpop.f32.mrb[0].mxu0
      %3037 = vdwg.mxu0
      %s3038 = scalar_lea.vmem %s2, 32
      %v3039 = vld [vmem:[%s3038] sm:$0xf]
      %v3041 = vrot.slane %v2018, 7
      %v3042 = vsel %vm2437, %v3041, %v2017
      %v3043 = vrot.slane %v2019, 6
      %v3044 = vsel %vm2419, %v3043, %v3042
      %v3045 = vrot.slane %v2020, 5
      %v3046 = vsel %vm2422, %v3045, %v3044
      %v3047 = vrot.slane %v2021, 4
      %v3048 = vsel %vm2425, %v3047, %v3046
      %v3049 = vrot.slane %v2022, 3
      %v3050 = vsel %vm2428, %v3049, %v3048
      %v3051 = vrot.slane %v2023, 2
      %v3052 = vsel %vm2431, %v3051, %v3050
      %v3053 = vrot.slane %v2024, 1
      %v3054 = vsel %vm2434, %v3053, %v3052
      %v3055 = vrot.slane %v2026, 7
      %v3056 = vsel %vm2437, %v3055, %v2025
      %v3057 = vrot.slane %v2027, 6
      %v3058 = vsel %vm2419, %v3057, %v3056
      %v3059 = vrot.slane %v2028, 5
      %v3060 = vsel %vm2422, %v3059, %v3058
      %v3061 = vrot.slane %v2029, 4
      %v3062 = vsel %vm2425, %v3061, %v3060
      %v3063 = vrot.slane %v2030, 3
      %v3064 = vsel %vm2428, %v3063, %v3062
      %v3065 = vrot.slane %v2031, 2
      %v3066 = vsel %vm2431, %v3065, %v3064
      %v3067 = vrot.slane %v2032, 1
      %v3068 = vsel %vm2434, %v3067, %v3066
      %v3069 = vsel %vm1512, %v3054, 0
      %v3071 = vsel %vm1512, %v3068, 0
      %v3074 = vsel %vm2141, %v3039, 0
      %3076 = vmatprep.subr.mxu0 0.0
      %3077 = vmatpush1.msra.mxu0 %v3074
      %3078 = vmatprep.subr.mxu0 0.0
      %3079 = vmatpush1.msra.mxu0 0.0
      %3080 = vmatprep.subr.mxu0 0.0
      %3081 = vmatpush1.msra.mxu0 0.0
      %3082 = vmatprep.subr.mxu0 0.0
      %3083 = vmatpush1.msra.mxu0 0.0
      %3084 = vmatprep.subr.mxu0 0.0
      %3085 = vmatpush1.msra.mxu0 0.0
      %3086 = vmatprep.subr.mxu0 0.0
      %3087 = vmatpush1.msra.mxu0 0.0
      %3088 = vmatprep.subr.mxu0 0.0
      %3089 = vmatpush1.msra.mxu0 0.0
      %3090 = vmatprep.subr.mxu0 0.0
      %3091 = vmatpush1.msra.mxu0 0.0
      %3092 = vmatprep.subr.mxu0 0.0
      %3093 = vmatpush1.msra.mxu0 0.0
      %3094 = vmatprep.subr.mxu0 0.0
      %3095 = vmatpush1.msra.mxu0 0.0
      %3096 = vmatprep.subr.mxu0 0.0
      %3097 = vmatpush1.msra.mxu0 0.0
      %3098 = vmatprep.subr.mxu0 0.0
      %3099 = vmatpush1.msra.mxu0 0.0
      %3100 = vmatprep.subr.mxu0 0.0
      %3101 = vmatpush1.msra.mxu0 0.0
      %3102 = vmatprep.subr.mxu0 0.0
      %3103 = vmatpush1.msra.mxu0 0.0
      %3104 = vmatprep.subr.mxu0 0.0
      %3105 = vmatpush1.msra.mxu0 0.0
      %3106 = vmatprep.subr.mxu0 0.0
      %3107 = vmatpush1.msra.mxu0 0.0
      %3108 = vmatprep.subr.mxu0 0.0
      %3109 = vmatpush1.msra.mxu0 0.0
      %3110 = vmatprep.subr.mxu0 0.0
      %3111 = vmatpush1.msra.mxu0 0.0
      %3112 = vmatprep.subr.mxu0 0.0
      %3113 = vmatpush1.msra.mxu0 0.0
      %3114 = vmatprep.subr.mxu0 0.0
      %3115 = vmatpush1.msra.mxu0 0.0
      %3116 = vmatprep.subr.mxu0 0.0
      %3117 = vmatpush1.msra.mxu0 0.0
      %3118 = vmatprep.subr.mxu0 0.0
      %3119 = vmatpush1.msra.mxu0 0.0
      %3120 = vmatprep.subr.mxu0 0.0
      %3121 = vmatpush1.msra.mxu0 0.0
      %3122 = vmatprep.subr.mxu0 0.0
      %3123 = vmatpush1.msra.mxu0 0.0
      %3124 = vmatprep.subr.mxu0 0.0
      %3125 = vmatpush1.msra.mxu0 0.0
      %3126 = vmatprep.subr.mxu0 0.0
      %3127 = vmatpush1.msra.mxu0 0.0
      %3128 = vmatprep.subr.mxu0 0.0
      %3129 = vmatpush1.msra.mxu0 0.0
      %3130 = vmatprep.subr.mxu0 0.0
      %3131 = vmatpush1.msra.mxu0 0.0
      %3132 = vmatprep.subr.mxu0 0.0
      %3133 = vmatpush1.msra.mxu0 0.0
      %3134 = vmatprep.subr.mxu0 0.0
      %3135 = vmatpush1.msra.mxu0 0.0
      %3136 = vmatprep.subr.mxu0 0.0
      %3137 = vmatpush1.msra.mxu0 0.0
      %3138 = vmatprep.subr.mxu0 0.0
      %3139 = vmatpush1.msra.mxu0 0.0
      %3140 = vmatprep.mubr.f32.mxu0 0.0
      %3141 = vmatmul.mubr.f32.gmra.mrb[0].mxu0 %v3069
      %v3142 = vpop.f32.mrb[0].mxu0
      %v3143 = vadd.f32 0.0, %v3142
      %v3144 = vpop.f32.mrb[0].mxu0
      %3145 = vmatprep.mubr.f32.mxu0 0.0
      %3146 = vmatmul.mubr.f32.gmra.mrb[0].mxu0 %v3071
      %v3147 = vpop.f32.mrb[0].mxu0
      %v3148 = vadd.f32 0.0, %v3147
      %v3149 = vpop.f32.mrb[0].mxu0
      %3150 = vdwg.mxu0
      %v3151 = vadd.f32 %v3030, %v3143
      %v3152 = vadd.f32 %v3035, %v3148
      %v3153 = vld [vmem:[%s197] sm:$0x1]
      %v3154 = vld [vmem:[%s197 + $0x20] sm:$0x1]
      %v3155 = vld [vmem:[%s197 + $0x40] sm:$0x1]
      %v3156 = vld [vmem:[%s197 + $0x60] sm:$0x1]
      %v3157 = vld [vmem:[%s197 + $0x80] sm:$0x1]
      %v3158 = vld [vmem:[%s197 + $0xa0] sm:$0x1]
      %v3159 = vld [vmem:[%s197 + $0xc0] sm:$0x1]
      %v3160 = vld [vmem:[%s197 + $0xe0] sm:$0x1]
      %v3161 = vld [vmem:[%s197 + $0x100] sm:$0x1]
      %v3162 = vld [vmem:[%s197 + $0x120] sm:$0x1]
      %v3163 = vld [vmem:[%s197 + $0x140] sm:$0x1]
      %v3164 = vld [vmem:[%s197 + $0x160] sm:$0x1]
      %v3165 = vld [vmem:[%s197 + $0x180] sm:$0x1]
      %v3166 = vld [vmem:[%s197 + $0x1a0] sm:$0x1]
      %v3167 = vld [vmem:[%s197 + $0x1c0] sm:$0x1]
      %v3168 = vld [vmem:[%s197 + $0x1e0] sm:$0x1]
      %v3171 = vrot.slane %v2779, 1
      %v3172 = vrot.slane %v2779, 2
      %v3173 = vrot.slane %v2779, 3
      %v3174 = vrot.slane %v2779, 4
      %v3175 = vrot.slane %v2779, 5
      %v3176 = vrot.slane %v2779, 6
      %v3177 = vrot.slane %v2779, 7
      %v3178 = vrot.slane %v2780, 1
      %v3179 = vrot.slane %v2780, 2
      %v3180 = vrot.slane %v2780, 3
      %v3181 = vrot.slane %v2780, 4
      %v3182 = vrot.slane %v2780, 5
      %v3183 = vrot.slane %v2780, 6
      %v3184 = vrot.slane %v2780, 7
      %v3201 = vsub.f32 %v3153, %v2779
      %v3202 = vsub.f32 %v3154, %v3171
      %v3203 = vsub.f32 %v3155, %v3172
      %v3204 = vsub.f32 %v3156, %v3173
      %v3205 = vsub.f32 %v3157, %v3174
      %v3206 = vsub.f32 %v3158, %v3175
      %v3207 = vsub.f32 %v3159, %v3176
      %v3208 = vsub.f32 %v3160, %v3177
      %v3209 = vsub.f32 %v3161, %v2780
      %v3210 = vsub.f32 %v3162, %v3178
      %v3211 = vsub.f32 %v3163, %v3179
      %v3212 = vsub.f32 %v3164, %v3180
      %v3213 = vsub.f32 %v3165, %v3181
      %v3214 = vsub.f32 %v3166, %v3182
      %v3215 = vsub.f32 %v3167, %v3183
      %v3216 = vsub.f32 %v3168, %v3184
      %vm3217 = vcmask 57344
      %3218 = vst.msk [vmem:[%s197] sm:$0x1] %vm3217, %v3201
      %3219 = vst.msk [vmem:[%s197 + $0x20] sm:$0x1] %vm3217, %v3202
      %3220 = vst.msk [vmem:[%s197 + $0x40] sm:$0x1] %vm3217, %v3203
      %3221 = vst.msk [vmem:[%s197 + $0x60] sm:$0x1] %vm3217, %v3204
      %3222 = vst.msk [vmem:[%s197 + $0x80] sm:$0x1] %vm3217, %v3205
      %3223 = vst.msk [vmem:[%s197 + $0xa0] sm:$0x1] %vm3217, %v3206
      %3224 = vst.msk [vmem:[%s197 + $0xc0] sm:$0x1] %vm3217, %v3207
      %3225 = vst.msk [vmem:[%s197 + $0xe0] sm:$0x1] %vm3217, %v3208
      %3226 = vst.msk [vmem:[%s197 + $0x100] sm:$0x1] %vm3217, %v3209
      %3227 = vst.msk [vmem:[%s197 + $0x120] sm:$0x1] %vm3217, %v3210
      %3228 = vst.msk [vmem:[%s197 + $0x140] sm:$0x1] %vm3217, %v3211
      %3229 = vst.msk [vmem:[%s197 + $0x160] sm:$0x1] %vm3217, %v3212
      %3230 = vst.msk [vmem:[%s197 + $0x180] sm:$0x1] %vm3217, %v3213
      %3231 = vst.msk [vmem:[%s197 + $0x1a0] sm:$0x1] %vm3217, %v3214
      %3232 = vst.msk [vmem:[%s197 + $0x1c0] sm:$0x1] %vm3217, %v3215
      %3233 = vst.msk [vmem:[%s197 + $0x1e0] sm:$0x1] %vm3217, %v3216
      %v3234 = vld [vmem:[%s197 + $0xf] sm:$0x1]
      %v3235 = vld [vmem:[%s197 + $0x2f] sm:$0x1]
      %v3236 = vld [vmem:[%s197 + $0x4f] sm:$0x1]
      %v3237 = vld [vmem:[%s197 + $0x6f] sm:$0x1]
      %v3238 = vld [vmem:[%s197 + $0x8f] sm:$0x1]
      %v3239 = vld [vmem:[%s197 + $0xaf] sm:$0x1]
      %v3240 = vld [vmem:[%s197 + $0xcf] sm:$0x1]
      %v3241 = vld [vmem:[%s197 + $0xef] sm:$0x1]
      %v3242 = vld [vmem:[%s197 + $0x10f] sm:$0x1]
      %v3243 = vld [vmem:[%s197 + $0x12f] sm:$0x1]
      %v3244 = vld [vmem:[%s197 + $0x14f] sm:$0x1]
      %v3245 = vld [vmem:[%s197 + $0x16f] sm:$0x1]
      %v3246 = vld [vmem:[%s197 + $0x18f] sm:$0x1]
      %v3247 = vld [vmem:[%s197 + $0x1af] sm:$0x1]
      %v3248 = vld [vmem:[%s197 + $0x1cf] sm:$0x1]
      %v3249 = vld [vmem:[%s197 + $0x1ef] sm:$0x1]
      %v3252 = vrot.slane %v3151, 1
      %v3253 = vrot.slane %v3151, 2
      %v3254 = vrot.slane %v3151, 3
      %v3255 = vrot.slane %v3151, 4
      %v3256 = vrot.slane %v3151, 5
      %v3257 = vrot.slane %v3151, 6
      %v3258 = vrot.slane %v3151, 7
      %v3259 = vrot.slane %v3152, 1
      %v3260 = vrot.slane %v3152, 2
      %v3261 = vrot.slane %v3152, 3
      %v3262 = vrot.slane %v3152, 4
      %v3263 = vrot.slane %v3152, 5
      %v3264 = vrot.slane %v3152, 6
      %v3265 = vrot.slane %v3152, 7
      %3266 = vrot.lane.b32.xlu0 %v3151, 8
      %v3267 = vpop.permute.xlu0 %3266
      %3268 = vrot.lane.b32.xlu0 %v3252, 8
      %v3269 = vpop.permute.xlu0 %3268
      %3270 = vrot.lane.b32.xlu0 %v3253, 8
      %v3271 = vpop.permute.xlu0 %3270
      %3272 = vrot.lane.b32.xlu0 %v3254, 8
      %v3273 = vpop.permute.xlu0 %3272
      %3274 = vrot.lane.b32.xlu0 %v3255, 8
      %v3275 = vpop.permute.xlu0 %3274
      %3276 = vrot.lane.b32.xlu0 %v3256, 8
      %v3277 = vpop.permute.xlu0 %3276
      %3278 = vrot.lane.b32.xlu0 %v3257, 8
      %v3279 = vpop.permute.xlu0 %3278
      %3280 = vrot.lane.b32.xlu0 %v3258, 8
      %v3281 = vpop.permute.xlu0 %3280
      %3282 = vrot.lane.b32.xlu0 %v3152, 8
      %v3283 = vpop.permute.xlu0 %3282
      %3284 = vrot.lane.b32.xlu0 %v3259, 8
      %v3285 = vpop.permute.xlu0 %3284
      %3286 = vrot.lane.b32.xlu0 %v3260, 8
      %v3287 = vpop.permute.xlu0 %3286
      %3288 = vrot.lane.b32.xlu0 %v3261, 8
      %v3289 = vpop.permute.xlu0 %3288
      %3290 = vrot.lane.b32.xlu0 %v3262, 8
      %v3291 = vpop.permute.xlu0 %3290
      %3292 = vrot.lane.b32.xlu0 %v3263, 8
      %v3293 = vpop.permute.xlu0 %3292
      %3294 = vrot.lane.b32.xlu0 %v3264, 8
      %v3295 = vpop.permute.xlu0 %3294
      %3296 = vrot.lane.b32.xlu0 %v3265, 8
      %v3297 = vpop.permute.xlu0 %3296
      %v3314 = vsub.f32 %v3234, %v3267
      %v3315 = vsub.f32 %v3235, %v3269
      %v3316 = vsub.f32 %v3236, %v3271
      %v3317 = vsub.f32 %v3237, %v3273
      %v3318 = vsub.f32 %v3238, %v3275
      %v3319 = vsub.f32 %v3239, %v3277
      %v3320 = vsub.f32 %v3240, %v3279
      %v3321 = vsub.f32 %v3241, %v3281
      %v3322 = vsub.f32 %v3242, %v3283
      %v3323 = vsub.f32 %v3243, %v3285
      %v3324 = vsub.f32 %v3244, %v3287
      %v3325 = vsub.f32 %v3245, %v3289
      %v3326 = vsub.f32 %v3246, %v3291
      %v3327 = vsub.f32 %v3247, %v3293
      %v3328 = vsub.f32 %v3248, %v3295
      %v3329 = vsub.f32 %v3249, %v3297
      %vm3330 = vcmask 122944
      %3331 = vst.msk [vmem:[%s197 + $0xf] sm:$0x1] %vm3330, %v3314
      %3332 = vst.msk [vmem:[%s197 + $0x2f] sm:$0x1] %vm3330, %v3315
      %3333 = vst.msk [vmem:[%s197 + $0x4f] sm:$0x1] %vm3330, %v3316
      %3334 = vst.msk [vmem:[%s197 + $0x6f] sm:$0x1] %vm3330, %v3317
      %3335 = vst.msk [vmem:[%s197 + $0x8f] sm:$0x1] %vm3330, %v3318
      %3336 = vst.msk [vmem:[%s197 + $0xaf] sm:$0x1] %vm3330, %v3319
      %3337 = vst.msk [vmem:[%s197 + $0xcf] sm:$0x1] %vm3330, %v3320
      %3338 = vst.msk [vmem:[%s197 + $0xef] sm:$0x1] %vm3330, %v3321
      %3339 = vst.msk [vmem:[%s197 + $0x10f] sm:$0x1] %vm3330, %v3322
      %3340 = vst.msk [vmem:[%s197 + $0x12f] sm:$0x1] %vm3330, %v3323
      %3341 = vst.msk [vmem:[%s197 + $0x14f] sm:$0x1] %vm3330, %v3324
      %3342 = vst.msk [vmem:[%s197 + $0x16f] sm:$0x1] %vm3330, %v3325
      %3343 = vst.msk [vmem:[%s197 + $0x18f] sm:$0x1] %vm3330, %v3326
      %3344 = vst.msk [vmem:[%s197 + $0x1af] sm:$0x1] %vm3330, %v3327
      %3345 = vst.msk [vmem:[%s197 + $0x1cf] sm:$0x1] %vm3330, %v3328
      %3346 = vst.msk [vmem:[%s197 + $0x1ef] sm:$0x1] %vm3330, %v3329
      %v3347 = vld [vmem:[%s294 + $0x1] sm:$0xff]
      %v3348 = vld [vmem:[%s294 + $0x9] sm:$0xff]
      %v3349 = vld [vmem:[%s294] sm:$0xff]
      %v3350 = vld [vmem:[%s294 + $0x8] sm:$0xff]
      %v3351 = vld [vmem:[%s294 + $0x2] sm:$0xff]
      %v3352 = vld [vmem:[%s294 + $0xa] sm:$0xff]
      %v3353 = vmul.f32 %v3347, 0.75
      %v3354 = vmul.f32 %v3348, 0.75
      %v3355 = vmul.f32 %v3349, 0.25
      %v3356 = vmul.f32 %v3350, 0.25
      %v3357 = vadd.f32 %v3353, %v3355
      %v3358 = vadd.f32 %v3354, %v3356
      %v3359 = vmul.f32 %v3351, 0.25
      %v3360 = vmul.f32 %v3352, 0.25
      %v3361 = vadd.f32 %v3353, %v3359
      %v3362 = vadd.f32 %v3354, %v3360
      %v3365 = vrot.slane %v3361, 7
      %v3366 = vrot.slane %v3362, 7
      %v3367 = vsel %vm2452, %v3365, %v3366
      %v3369 = vsel %vm2452, %v3357, %v3365
      %v3370 = vld [vmem:[%s2] sm:$0xf]
      %s3371 = scalar_lea.vmem %s2, 4
      %v3372 = vld [vmem:[%s3371] sm:$0xf]
      %v3374 = vsel %vm1512, %v3357, 0
      %v3377 = vsel %vm1512, %v3358, 0
      %v3380 = vsel %vm2141, %v3372, 0
      %3382 = vmatprep.subr.mxu0 0.0
      %3383 = vmatpush1.msra.mxu0 %v3380
      %3384 = vmatprep.subr.mxu0 0.0
      %3385 = vmatpush1.msra.mxu0 0.0
      %3386 = vmatprep.subr.mxu0 0.0
      %3387 = vmatpush1.msra.mxu0 0.0
      %3388 = vmatprep.subr.mxu0 0.0
      %3389 = vmatpush1.msra.mxu0 0.0
      %3390 = vmatprep.subr.mxu0 0.0
      %3391 = vmatpush1.msra.mxu0 0.0
      %3392 = vmatprep.subr.mxu0 0.0
      %3393 = vmatpush1.msra.mxu0 0.0
      %3394 = vmatprep.subr.mxu0 0.0
      %3395 = vmatpush1.msra.mxu0 0.0
      %3396 = vmatprep.subr.mxu0 0.0
      %3397 = vmatpush1.msra.mxu0 0.0
      %3398 = vmatprep.subr.mxu0 0.0
      %3399 = vmatpush1.msra.mxu0 0.0
      %3400 = vmatprep.subr.mxu0 0.0
      %3401 = vmatpush1.msra.mxu0 0.0
      %3402 = vmatprep.subr.mxu0 0.0
      %3403 = vmatpush1.msra.mxu0 0.0
      %3404 = vmatprep.subr.mxu0 0.0
      %3405 = vmatpush1.msra.mxu0 0.0
      %3406 = vmatprep.subr.mxu0 0.0
      %3407 = vmatpush1.msra.mxu0 0.0
      %3408 = vmatprep.subr.mxu0 0.0
      %3409 = vmatpush1.msra.mxu0 0.0
      %3410 = vmatprep.subr.mxu0 0.0
      %3411 = vmatpush1.msra.mxu0 0.0
      %3412 = vmatprep.subr.mxu0 0.0
      %3413 = vmatpush1.msra.mxu0 0.0
      %3414 = vmatprep.subr.mxu0 0.0
      %3415 = vmatpush1.msra.mxu0 0.0
      %3416 = vmatprep.subr.mxu0 0.0
      %3417 = vmatpush1.msra.mxu0 0.0
      %3418 = vmatprep.subr.mxu0 0.0
      %3419 = vmatpush1.msra.mxu0 0.0
      %3420 = vmatprep.subr.mxu0 0.0
      %3421 = vmatpush1.msra.mxu0 0.0
      %3422 = vmatprep.subr.mxu0 0.0
      %3423 = vmatpush1.msra.mxu0 0.0
      %3424 = vmatprep.subr.mxu0 0.0
      %3425 = vmatpush1.msra.mxu0 0.0
      %3426 = vmatprep.subr.mxu0 0.0
      %3427 = vmatpush1.msra.mxu0 0.0
      %3428 = vmatprep.subr.mxu0 0.0
      %3429 = vmatpush1.msra.mxu0 0.0
      %3430 = vmatprep.subr.mxu0 0.0
      %3431 = vmatpush1.msra.mxu0 0.0
      %3432 = vmatprep.subr.mxu0 0.0
      %3433 = vmatpush1.msra.mxu0 0.0
      %3434 = vmatprep.subr.mxu0 0.0
      %3435 = vmatpush1.msra.mxu0 0.0
      %3436 = vmatprep.subr.mxu0 0.0
      %3437 = vmatpush1.msra.mxu0 0.0
      %3438 = vmatprep.subr.mxu0 0.0
      %3439 = vmatpush1.msra.mxu0 0.0
      %3440 = vmatprep.subr.mxu0 0.0
      %3441 = vmatpush1.msra.mxu0 0.0
      %3442 = vmatprep.subr.mxu0 0.0
      %3443 = vmatpush1.msra.mxu0 0.0
      %3444 = vmatprep.subr.mxu0 0.0
      %3445 = vmatpush1.msra.mxu0 0.0
      %3446 = vmatprep.mubr.f32.mxu0 0.0
      %3447 = vmatmul.mubr.f32.gmra.mrb[0].mxu0 %v3374
      %v3448 = vpop.f32.mrb[0].mxu0
      %v3449 = vadd.f32 0.0, %v3448
      %v3450 = vpop.f32.mrb[0].mxu0
      %3451 = vmatprep.mubr.f32.mxu0 0.0
      %3452 = vmatmul.mubr.f32.gmra.mrb[0].mxu0 %v3377
      %v3453 = vpop.f32.mrb[0].mxu0
      %v3454 = vadd.f32 0.0, %v3453
      %v3455 = vpop.f32.mrb[0].mxu0
      %3456 = vdwg.mxu0
      %v3458 = vsel %vm1512, %v3369, 0
      %v3460 = vsel %vm1512, %v3367, 0
      %v3463 = vsel %vm2141, %v3370, 0
      %3465 = vmatprep.subr.mxu0 0.0
      %3466 = vmatpush1.msra.mxu0 %v3463
      %3467 = vmatprep.subr.mxu0 0.0
      %3468 = vmatpush1.msra.mxu0 0.0
      %3469 = vmatprep.subr.mxu0 0.0
      %3470 = vmatpush1.msra.mxu0 0.0
      %3471 = vmatprep.subr.mxu0 0.0
      %3472 = vmatpush1.msra.mxu0 0.0
      %3473 = vmatprep.subr.mxu0 0.0
      %3474 = vmatpush1.msra.mxu0 0.0
      %3475 = vmatprep.subr.mxu0 0.0
      %3476 = vmatpush1.msra.mxu0 0.0
      %3477 = vmatprep.subr.mxu0 0.0
      %3478 = vmatpush1.msra.mxu0 0.0
      %3479 = vmatprep.subr.mxu0 0.0
      %3480 = vmatpush1.msra.mxu0 0.0
      %3481 = vmatprep.subr.mxu0 0.0
      %3482 = vmatpush1.msra.mxu0 0.0
      %3483 = vmatprep.subr.mxu0 0.0
      %3484 = vmatpush1.msra.mxu0 0.0
      %3485 = vmatprep.subr.mxu0 0.0
      %3486 = vmatpush1.msra.mxu0 0.0
      %3487 = vmatprep.subr.mxu0 0.0
      %3488 = vmatpush1.msra.mxu0 0.0
      %3489 = vmatprep.subr.mxu0 0.0
      %3490 = vmatpush1.msra.mxu0 0.0
      %3491 = vmatprep.subr.mxu0 0.0
      %3492 = vmatpush1.msra.mxu0 0.0
      %3493 = vmatprep.subr.mxu0 0.0
      %3494 = vmatpush1.msra.mxu0 0.0
      %3495 = vmatprep.subr.mxu0 0.0
      %3496 = vmatpush1.msra.mxu0 0.0
      %3497 = vmatprep.subr.mxu0 0.0
      %3498 = vmatpush1.msra.mxu0 0.0
      %3499 = vmatprep.subr.mxu0 0.0
      %3500 = vmatpush1.msra.mxu0 0.0
      %3501 = vmatprep.subr.mxu0 0.0
      %3502 = vmatpush1.msra.mxu0 0.0
      %3503 = vmatprep.subr.mxu0 0.0
      %3504 = vmatpush1.msra.mxu0 0.0
      %3505 = vmatprep.subr.mxu0 0.0
      %3506 = vmatpush1.msra.mxu0 0.0
      %3507 = vmatprep.subr.mxu0 0.0
      %3508 = vmatpush1.msra.mxu0 0.0
      %3509 = vmatprep.subr.mxu0 0.0
      %3510 = vmatpush1.msra.mxu0 0.0
      %3511 = vmatprep.subr.mxu0 0.0
      %3512 = vmatpush1.msra.mxu0 0.0
      %3513 = vmatprep.subr.mxu0 0.0
      %3514 = vmatpush1.msra.mxu0 0.0
      %3515 = vmatprep.subr.mxu0 0.0
      %3516 = vmatpush1.msra.mxu0 0.0
      %3517 = vmatprep.subr.mxu0 0.0
      %3518 = vmatpush1.msra.mxu0 0.0
      %3519 = vmatprep.subr.mxu0 0.0
      %3520 = vmatpush1.msra.mxu0 0.0
      %3521 = vmatprep.subr.mxu0 0.0
      %3522 = vmatpush1.msra.mxu0 0.0
      %3523 = vmatprep.subr.mxu0 0.0
      %3524 = vmatpush1.msra.mxu0 0.0
      %3525 = vmatprep.subr.mxu0 0.0
      %3526 = vmatpush1.msra.mxu0 0.0
      %3527 = vmatprep.subr.mxu0 0.0
      %3528 = vmatpush1.msra.mxu0 0.0
      %3529 = vmatprep.mubr.f32.mxu0 0.0
      %3530 = vmatmul.mubr.f32.gmra.mrb[0].mxu0 %v3458
      %v3531 = vpop.f32.mrb[0].mxu0
      %v3532 = vadd.f32 %v3449, %v3531
      %v3533 = vpop.f32.mrb[0].mxu0
      %3534 = vmatprep.mubr.f32.mxu0 0.0
      %3535 = vmatmul.mubr.f32.gmra.mrb[0].mxu0 %v3460
      %v3536 = vpop.f32.mrb[0].mxu0
      %v3537 = vadd.f32 %v3454, %v3536
      %v3538 = vpop.f32.mrb[0].mxu0
      %3539 = vdwg.mxu0
      %v3540 = vld [vmem:[%s2825] sm:$0xf]
      %v3541 = vsel %vm1512, %v3361, 0
      %v3543 = vsel %vm1512, %v3362, 0
      %v3546 = vsel %vm2141, %v3540, 0
      %3548 = vmatprep.subr.mxu0 0.0
      %3549 = vmatpush1.msra.mxu0 %v3546
      %3550 = vmatprep.subr.mxu0 0.0
      %3551 = vmatpush1.msra.mxu0 0.0
      %3552 = vmatprep.subr.mxu0 0.0
      %3553 = vmatpush1.msra.mxu0 0.0
      %3554 = vmatprep.subr.mxu0 0.0
      %3555 = vmatpush1.msra.mxu0 0.0
      %3556 = vmatprep.subr.mxu0 0.0
      %3557 = vmatpush1.msra.mxu0 0.0
      %3558 = vmatprep.subr.mxu0 0.0
      %3559 = vmatpush1.msra.mxu0 0.0
      %3560 = vmatprep.subr.mxu0 0.0
      %3561 = vmatpush1.msra.mxu0 0.0
      %3562 = vmatprep.subr.mxu0 0.0
      %3563 = vmatpush1.msra.mxu0 0.0
      %3564 = vmatprep.subr.mxu0 0.0
      %3565 = vmatpush1.msra.mxu0 0.0
      %3566 = vmatprep.subr.mxu0 0.0
      %3567 = vmatpush1.msra.mxu0 0.0
      %3568 = vmatprep.subr.mxu0 0.0
      %3569 = vmatpush1.msra.mxu0 0.0
      %3570 = vmatprep.subr.mxu0 0.0
      %3571 = vmatpush1.msra.mxu0 0.0
      %3572 = vmatprep.subr.mxu0 0.0
      %3573 = vmatpush1.msra.mxu0 0.0
      %3574 = vmatprep.subr.mxu0 0.0
      %3575 = vmatpush1.msra.mxu0 0.0
      %3576 = vmatprep.subr.mxu0 0.0
      %3577 = vmatpush1.msra.mxu0 0.0
      %3578 = vmatprep.subr.mxu0 0.0
      %3579 = vmatpush1.msra.mxu0 0.0
      %3580 = vmatprep.subr.mxu0 0.0
      %3581 = vmatpush1.msra.mxu0 0.0
      %3582 = vmatprep.subr.mxu0 0.0
      %3583 = vmatpush1.msra.mxu0 0.0
      %3584 = vmatprep.subr.mxu0 0.0
      %3585 = vmatpush1.msra.mxu0 0.0
      %3586 = vmatprep.subr.mxu0 0.0
      %3587 = vmatpush1.msra.mxu0 0.0
      %3588 = vmatprep.subr.mxu0 0.0
      %3589 = vmatpush1.msra.mxu0 0.0
      %3590 = vmatprep.subr.mxu0 0.0
      %3591 = vmatpush1.msra.mxu0 0.0
      %3592 = vmatprep.subr.mxu0 0.0
      %3593 = vmatpush1.msra.mxu0 0.0
      %3594 = vmatprep.subr.mxu0 0.0
      %3595 = vmatpush1.msra.mxu0 0.0
      %3596 = vmatprep.subr.mxu0 0.0
      %3597 = vmatpush1.msra.mxu0 0.0
      %3598 = vmatprep.subr.mxu0 0.0
      %3599 = vmatpush1.msra.mxu0 0.0
      %3600 = vmatprep.subr.mxu0 0.0
      %3601 = vmatpush1.msra.mxu0 0.0
      %3602 = vmatprep.subr.mxu0 0.0
      %3603 = vmatpush1.msra.mxu0 0.0
      %3604 = vmatprep.subr.mxu0 0.0
      %3605 = vmatpush1.msra.mxu0 0.0
      %3606 = vmatprep.subr.mxu0 0.0
      %3607 = vmatpush1.msra.mxu0 0.0
      %3608 = vmatprep.subr.mxu0 0.0
      %3609 = vmatpush1.msra.mxu0 0.0
      %3610 = vmatprep.subr.mxu0 0.0
      %3611 = vmatpush1.msra.mxu0 0.0
      %3612 = vmatprep.mubr.f32.mxu0 0.0
      %3613 = vmatmul.mubr.f32.gmra.mrb[0].mxu0 %v3541
      %v3614 = vpop.f32.mrb[0].mxu0
      %v3615 = vadd.f32 0.0, %v3614
      %v3616 = vpop.f32.mrb[0].mxu0
      %3617 = vmatprep.mubr.f32.mxu0 0.0
      %3618 = vmatmul.mubr.f32.gmra.mrb[0].mxu0 %v3543
      %v3619 = vpop.f32.mrb[0].mxu0
      %v3620 = vadd.f32 0.0, %v3619
      %v3621 = vpop.f32.mrb[0].mxu0
      %3622 = vdwg.mxu0
      %v3623 = vadd.f32 %v3532, %v3615
      %v3624 = vadd.f32 %v3537, %v3620
      %3625 = vmatprep.subr.mxu0 0.0
      %3626 = vmatpush1.msra.mxu0 %v3380
      %3627 = vmatprep.subr.mxu0 0.0
      %3628 = vmatpush1.msra.mxu0 0.0
      %3629 = vmatprep.subr.mxu0 0.0
      %3630 = vmatpush1.msra.mxu0 0.0
      %3631 = vmatprep.subr.mxu0 0.0
      %3632 = vmatpush1.msra.mxu0 0.0
      %3633 = vmatprep.subr.mxu0 0.0
      %3634 = vmatpush1.msra.mxu0 0.0
      %3635 = vmatprep.subr.mxu0 0.0
      %3636 = vmatpush1.msra.mxu0 0.0
      %3637 = vmatprep.subr.mxu0 0.0
      %3638 = vmatpush1.msra.mxu0 0.0
      %3639 = vmatprep.subr.mxu0 0.0
      %3640 = vmatpush1.msra.mxu0 0.0
      %3641 = vmatprep.subr.mxu0 0.0
      %3642 = vmatpush1.msra.mxu0 0.0
      %3643 = vmatprep.subr.mxu0 0.0
      %3644 = vmatpush1.msra.mxu0 0.0
      %3645 = vmatprep.subr.mxu0 0.0
      %3646 = vmatpush1.msra.mxu0 0.0
      %3647 = vmatprep.subr.mxu0 0.0
      %3648 = vmatpush1.msra.mxu0 0.0
      %3649 = vmatprep.subr.mxu0 0.0
      %3650 = vmatpush1.msra.mxu0 0.0
      %3651 = vmatprep.subr.mxu0 0.0
      %3652 = vmatpush1.msra.mxu0 0.0
      %3653 = vmatprep.subr.mxu0 0.0
      %3654 = vmatpush1.msra.mxu0 0.0
      %3655 = vmatprep.subr.mxu0 0.0
      %3656 = vmatpush1.msra.mxu0 0.0
      %3657 = vmatprep.subr.mxu0 0.0
      %3658 = vmatpush1.msra.mxu0 0.0
      %3659 = vmatprep.subr.mxu0 0.0
      %3660 = vmatpush1.msra.mxu0 0.0
      %3661 = vmatprep.subr.mxu0 0.0
      %3662 = vmatpush1.msra.mxu0 0.0
      %3663 = vmatprep.subr.mxu0 0.0
      %3664 = vmatpush1.msra.mxu0 0.0
      %3665 = vmatprep.subr.mxu0 0.0
      %3666 = vmatpush1.msra.mxu0 0.0
      %3667 = vmatprep.subr.mxu0 0.0
      %3668 = vmatpush1.msra.mxu0 0.0
      %3669 = vmatprep.subr.mxu0 0.0
      %3670 = vmatpush1.msra.mxu0 0.0
      %3671 = vmatprep.subr.mxu0 0.0
      %3672 = vmatpush1.msra.mxu0 0.0
      %3673 = vmatprep.subr.mxu0 0.0
      %3674 = vmatpush1.msra.mxu0 0.0
      %3675 = vmatprep.subr.mxu0 0.0
      %3676 = vmatpush1.msra.mxu0 0.0
      %3677 = vmatprep.subr.mxu0 0.0
      %3678 = vmatpush1.msra.mxu0 0.0
      %3679 = vmatprep.subr.mxu0 0.0
      %3680 = vmatpush1.msra.mxu0 0.0
      %3681 = vmatprep.subr.mxu0 0.0
      %3682 = vmatpush1.msra.mxu0 0.0
      %3683 = vmatprep.subr.mxu0 0.0
      %3684 = vmatpush1.msra.mxu0 0.0
      %3685 = vmatprep.subr.mxu0 0.0
      %3686 = vmatpush1.msra.mxu0 0.0
      %3687 = vmatprep.subr.mxu0 0.0
      %3688 = vmatpush1.msra.mxu0 0.0
      %3689 = vmatprep.mubr.f32.mxu0 0.0
      %3690 = vmatmul.mubr.f32.gmra.mrb[0].mxu0 %v3541
      %v3691 = vpop.f32.mrb[0].mxu0
      %v3692 = vadd.f32 0.0, %v3691
      %v3693 = vpop.f32.mrb[0].mxu0
      %3694 = vmatprep.mubr.f32.mxu0 0.0
      %3695 = vmatmul.mubr.f32.gmra.mrb[0].mxu0 %v3543
      %v3696 = vpop.f32.mrb[0].mxu0
      %v3697 = vadd.f32 0.0, %v3696
      %v3698 = vpop.f32.mrb[0].mxu0
      %3699 = vdwg.mxu0
      %3700 = vmatprep.subr.mxu0 0.0
      %3701 = vmatpush1.msra.mxu0 %v3463
      %3702 = vmatprep.subr.mxu0 0.0
      %3703 = vmatpush1.msra.mxu0 0.0
      %3704 = vmatprep.subr.mxu0 0.0
      %3705 = vmatpush1.msra.mxu0 0.0
      %3706 = vmatprep.subr.mxu0 0.0
      %3707 = vmatpush1.msra.mxu0 0.0
      %3708 = vmatprep.subr.mxu0 0.0
      %3709 = vmatpush1.msra.mxu0 0.0
      %3710 = vmatprep.subr.mxu0 0.0
      %3711 = vmatpush1.msra.mxu0 0.0
      %3712 = vmatprep.subr.mxu0 0.0
      %3713 = vmatpush1.msra.mxu0 0.0
      %3714 = vmatprep.subr.mxu0 0.0
      %3715 = vmatpush1.msra.mxu0 0.0
      %3716 = vmatprep.subr.mxu0 0.0
      %3717 = vmatpush1.msra.mxu0 0.0
      %3718 = vmatprep.subr.mxu0 0.0
      %3719 = vmatpush1.msra.mxu0 0.0
      %3720 = vmatprep.subr.mxu0 0.0
      %3721 = vmatpush1.msra.mxu0 0.0
      %3722 = vmatprep.subr.mxu0 0.0
      %3723 = vmatpush1.msra.mxu0 0.0
      %3724 = vmatprep.subr.mxu0 0.0
      %3725 = vmatpush1.msra.mxu0 0.0
      %3726 = vmatprep.subr.mxu0 0.0
      %3727 = vmatpush1.msra.mxu0 0.0
      %3728 = vmatprep.subr.mxu0 0.0
      %3729 = vmatpush1.msra.mxu0 0.0
      %3730 = vmatprep.subr.mxu0 0.0
      %3731 = vmatpush1.msra.mxu0 0.0
      %3732 = vmatprep.subr.mxu0 0.0
      %3733 = vmatpush1.msra.mxu0 0.0
      %3734 = vmatprep.subr.mxu0 0.0
      %3735 = vmatpush1.msra.mxu0 0.0
      %3736 = vmatprep.subr.mxu0 0.0
      %3737 = vmatpush1.msra.mxu0 0.0
      %3738 = vmatprep.subr.mxu0 0.0
      %3739 = vmatpush1.msra.mxu0 0.0
      %3740 = vmatprep.subr.mxu0 0.0
      %3741 = vmatpush1.msra.mxu0 0.0
      %3742 = vmatprep.subr.mxu0 0.0
      %3743 = vmatpush1.msra.mxu0 0.0
      %3744 = vmatprep.subr.mxu0 0.0
      %3745 = vmatpush1.msra.mxu0 0.0
      %3746 = vmatprep.subr.mxu0 0.0
      %3747 = vmatpush1.msra.mxu0 0.0
      %3748 = vmatprep.subr.mxu0 0.0
      %3749 = vmatpush1.msra.mxu0 0.0
      %3750 = vmatprep.subr.mxu0 0.0
      %3751 = vmatpush1.msra.mxu0 0.0
      %3752 = vmatprep.subr.mxu0 0.0
      %3753 = vmatpush1.msra.mxu0 0.0
      %3754 = vmatprep.subr.mxu0 0.0
      %3755 = vmatpush1.msra.mxu0 0.0
      %3756 = vmatprep.subr.mxu0 0.0
      %3757 = vmatpush1.msra.mxu0 0.0
      %3758 = vmatprep.subr.mxu0 0.0
      %3759 = vmatpush1.msra.mxu0 0.0
      %3760 = vmatprep.subr.mxu0 0.0
      %3761 = vmatpush1.msra.mxu0 0.0
      %3762 = vmatprep.subr.mxu0 0.0
      %3763 = vmatpush1.msra.mxu0 0.0
      %3764 = vmatprep.mubr.f32.mxu0 0.0
      %3765 = vmatmul.mubr.f32.gmra.mrb[0].mxu0 %v3374
      %v3766 = vpop.f32.mrb[0].mxu0
      %v3767 = vadd.f32 %v3692, %v3766
      %v3768 = vpop.f32.mrb[0].mxu0
      %3769 = vmatprep.mubr.f32.mxu0 0.0
      %3770 = vmatmul.mubr.f32.gmra.mrb[0].mxu0 %v3377
      %v3771 = vpop.f32.mrb[0].mxu0
      %v3772 = vadd.f32 %v3697, %v3771
      %v3773 = vpop.f32.mrb[0].mxu0
      %3774 = vdwg.mxu0
      %vm3775 = vcmask 1046528
      %v3776 = vrot.slane %v3357, 1
      %v3777 = vrot.slane %v3358, 1
      %v3778 = vsel %vm3775, %v3776, %v3777
      %v3780 = vsel %vm3775, %v3777, %v3362
      %v3781 = vsel %vm1512, %v3778, 0
      %v3784 = vsel %vm1512, %v3780, 0
      %3786 = vmatprep.subr.mxu0 0.0
      %3787 = vmatpush1.msra.mxu0 %v3546
      %3788 = vmatprep.subr.mxu0 0.0
      %3789 = vmatpush1.msra.mxu0 0.0
      %3790 = vmatprep.subr.mxu0 0.0
      %3791 = vmatpush1.msra.mxu0 0.0
      %3792 = vmatprep.subr.mxu0 0.0
      %3793 = vmatpush1.msra.mxu0 0.0
      %3794 = vmatprep.subr.mxu0 0.0
      %3795 = vmatpush1.msra.mxu0 0.0
      %3796 = vmatprep.subr.mxu0 0.0
      %3797 = vmatpush1.msra.mxu0 0.0
      %3798 = vmatprep.subr.mxu0 0.0
      %3799 = vmatpush1.msra.mxu0 0.0
      %3800 = vmatprep.subr.mxu0 0.0
      %3801 = vmatpush1.msra.mxu0 0.0
      %3802 = vmatprep.subr.mxu0 0.0
      %3803 = vmatpush1.msra.mxu0 0.0
      %3804 = vmatprep.subr.mxu0 0.0
      %3805 = vmatpush1.msra.mxu0 0.0
      %3806 = vmatprep.subr.mxu0 0.0
      %3807 = vmatpush1.msra.mxu0 0.0
      %3808 = vmatprep.subr.mxu0 0.0
      %3809 = vmatpush1.msra.mxu0 0.0
      %3810 = vmatprep.subr.mxu0 0.0
      %3811 = vmatpush1.msra.mxu0 0.0
      %3812 = vmatprep.subr.mxu0 0.0
      %3813 = vmatpush1.msra.mxu0 0.0
      %3814 = vmatprep.subr.mxu0 0.0
      %3815 = vmatpush1.msra.mxu0 0.0
      %3816 = vmatprep.subr.mxu0 0.0
      %3817 = vmatpush1.msra.mxu0 0.0
      %3818 = vmatprep.subr.mxu0 0.0
      %3819 = vmatpush1.msra.mxu0 0.0
      %3820 = vmatprep.subr.mxu0 0.0
      %3821 = vmatpush1.msra.mxu0 0.0
      %3822 = vmatprep.subr.mxu0 0.0
      %3823 = vmatpush1.msra.mxu0 0.0
      %3824 = vmatprep.subr.mxu0 0.0
      %3825 = vmatpush1.msra.mxu0 0.0
      %3826 = vmatprep.subr.mxu0 0.0
      %3827 = vmatpush1.msra.mxu0 0.0
      %3828 = vmatprep.subr.mxu0 0.0
      %3829 = vmatpush1.msra.mxu0 0.0
      %3830 = vmatprep.subr.mxu0 0.0
      %3831 = vmatpush1.msra.mxu0 0.0
      %3832 = vmatprep.subr.mxu0 0.0
      %3833 = vmatpush1.msra.mxu0 0.0
      %3834 = vmatprep.subr.mxu0 0.0
      %3835 = vmatpush1.msra.mxu0 0.0
      %3836 = vmatprep.subr.mxu0 0.0
      %3837 = vmatpush1.msra.mxu0 0.0
      %3838 = vmatprep.subr.mxu0 0.0
      %3839 = vmatpush1.msra.mxu0 0.0
      %3840 = vmatprep.subr.mxu0 0.0
      %3841 = vmatpush1.msra.mxu0 0.0
      %3842 = vmatprep.subr.mxu0 0.0
      %3843 = vmatpush1.msra.mxu0 0.0
      %3844 = vmatprep.subr.mxu0 0.0
      %3845 = vmatpush1.msra.mxu0 0.0
      %3846 = vmatprep.subr.mxu0 0.0
      %3847 = vmatpush1.msra.mxu0 0.0
      %3848 = vmatprep.subr.mxu0 0.0
      %3849 = vmatpush1.msra.mxu0 0.0
      %3850 = vmatprep.mubr.f32.mxu0 0.0
      %3851 = vmatmul.mubr.f32.gmra.mrb[0].mxu0 %v3781
      %v3852 = vpop.f32.mrb[0].mxu0
      %v3853 = vadd.f32 0.0, %v3852
      %v3854 = vpop.f32.mrb[0].mxu0
      %3855 = vmatprep.mubr.f32.mxu0 0.0
      %3856 = vmatmul.mubr.f32.gmra.mrb[0].mxu0 %v3784
      %v3857 = vpop.f32.mrb[0].mxu0
      %v3858 = vadd.f32 0.0, %v3857
      %v3859 = vpop.f32.mrb[0].mxu0
      %3860 = vdwg.mxu0
      %v3861 = vadd.f32 %v3767, %v3853
      %v3862 = vadd.f32 %v3772, %v3858
      %3865 = vrot.lane.b32.xlu0 %v3861, 8
      %v3866 = vpop.permute.xlu0 %3865
      %3867 = vrot.lane.b32.xlu0 %v3862, 8
      %v3868 = vpop.permute.xlu0 %3867
      %v3871 = vsel %vm1545, %v3623, %v3866
      %v3872 = vsel %vm1545, %v3624, %v3868
      %v3873 = vld [vmem:[%s197] sm:$0xff]
      %v3874 = vld [vmem:[%s197 + $0x8] sm:$0xff]
      %v3875 = vsub.f32 %v3873, %v3871
      %v3876 = vsub.f32 %v3874, %v3872
      %3877 = vst.msk [vmem:[%s197] sm:$0xff] %vm1611, %v3875
      %3878 = vst.msk [vmem:[%s197 + $0x8] sm:$0xff] %vm1611, %v3876
      %v3879 = vld [vmem:[%s294 + $0x1] sm:$0x1]
      %v3880 = vld [vmem:[%s2] sm:$0xf]
      %v3882 = vsel %vm1512, %v3879, 0
      %v3885 = vsel %vm2141, %v3880, 0
      %3887 = vmatprep.subr.mxu0 0.0
      %3888 = vmatpush1.msra.mxu0 %v3885
      %3889 = vmatprep.subr.mxu0 0.0
      %3890 = vmatpush1.msra.mxu0 0.0
      %3891 = vmatprep.subr.mxu0 0.0
      %3892 = vmatpush1.msra.mxu0 0.0
      %3893 = vmatprep.subr.mxu0 0.0
      %3894 = vmatpush1.msra.mxu0 0.0
      %3895 = vmatprep.subr.mxu0 0.0
      %3896 = vmatpush1.msra.mxu0 0.0
      %3897 = vmatprep.subr.mxu0 0.0
      %3898 = vmatpush1.msra.mxu0 0.0
      %3899 = vmatprep.subr.mxu0 0.0
      %3900 = vmatpush1.msra.mxu0 0.0
      %3901 = vmatprep.subr.mxu0 0.0
      %3902 = vmatpush1.msra.mxu0 0.0
      %3903 = vmatprep.subr.mxu0 0.0
      %3904 = vmatpush1.msra.mxu0 0.0
      %3905 = vmatprep.subr.mxu0 0.0
      %3906 = vmatpush1.msra.mxu0 0.0
      %3907 = vmatprep.subr.mxu0 0.0
      %3908 = vmatpush1.msra.mxu0 0.0
      %3909 = vmatprep.subr.mxu0 0.0
      %3910 = vmatpush1.msra.mxu0 0.0
      %3911 = vmatprep.subr.mxu0 0.0
      %3912 = vmatpush1.msra.mxu0 0.0
      %3913 = vmatprep.subr.mxu0 0.0
      %3914 = vmatpush1.msra.mxu0 0.0
      %3915 = vmatprep.subr.mxu0 0.0
      %3916 = vmatpush1.msra.mxu0 0.0
      %3917 = vmatprep.subr.mxu0 0.0
      %3918 = vmatpush1.msra.mxu0 0.0
      %3919 = vmatprep.subr.mxu0 0.0
      %3920 = vmatpush1.msra.mxu0 0.0
      %3921 = vmatprep.subr.mxu0 0.0
      %3922 = vmatpush1.msra.mxu0 0.0
      %3923 = vmatprep.subr.mxu0 0.0
      %3924 = vmatpush1.msra.mxu0 0.0
      %3925 = vmatprep.subr.mxu0 0.0
      %3926 = vmatpush1.msra.mxu0 0.0
      %3927 = vmatprep.subr.mxu0 0.0
      %3928 = vmatpush1.msra.mxu0 0.0
      %3929 = vmatprep.subr.mxu0 0.0
      %3930 = vmatpush1.msra.mxu0 0.0
      %3931 = vmatprep.subr.mxu0 0.0
      %3932 = vmatpush1.msra.mxu0 0.0
      %3933 = vmatprep.subr.mxu0 0.0
      %3934 = vmatpush1.msra.mxu0 0.0
      %3935 = vmatprep.subr.mxu0 0.0
      %3936 = vmatpush1.msra.mxu0 0.0
      %3937 = vmatprep.subr.mxu0 0.0
      %3938 = vmatpush1.msra.mxu0 0.0
      %3939 = vmatprep.subr.mxu0 0.0
      %3940 = vmatpush1.msra.mxu0 0.0
      %3941 = vmatprep.subr.mxu0 0.0
      %3942 = vmatpush1.msra.mxu0 0.0
      %3943 = vmatprep.subr.mxu0 0.0
      %3944 = vmatpush1.msra.mxu0 0.0
      %3945 = vmatprep.subr.mxu0 0.0
      %3946 = vmatpush1.msra.mxu0 0.0
      %3947 = vmatprep.subr.mxu0 0.0
      %3948 = vmatpush1.msra.mxu0 0.0
      %3949 = vmatprep.subr.mxu0 0.0
      %3950 = vmatpush1.msra.mxu0 0.0
      %3951 = vmatprep.mubr.f32.mxu0 0.0
      %3952 = vmatmul.mubr.f32.gmra.mrb[0].mxu0 %v3882
      %v3953 = vpop.f32.mrb[0].mxu0
      %v3954 = vadd.f32 0.0, %v3953
      %v3955 = vpop.f32.mrb[0].mxu0
      %3956 = vdwg.mxu0
      %v3957 = vld [vmem:[%s294 + $0x10] sm:$0x1]
      %v3958 = vld [vmem:[%s2825] sm:$0xf]
      %v3960 = vsel %vm1512, %v3957, 0
      %v3963 = vsel %vm2141, %v3958, 0
      %3965 = vmatprep.subr.mxu0 0.0
      %3966 = vmatpush1.msra.mxu0 %v3963
      %3967 = vmatprep.subr.mxu0 0.0
      %3968 = vmatpush1.msra.mxu0 0.0
      %3969 = vmatprep.subr.mxu0 0.0
      %3970 = vmatpush1.msra.mxu0 0.0
      %3971 = vmatprep.subr.mxu0 0.0
      %3972 = vmatpush1.msra.mxu0 0.0
      %3973 = vmatprep.subr.mxu0 0.0
      %3974 = vmatpush1.msra.mxu0 0.0
      %3975 = vmatprep.subr.mxu0 0.0
      %3976 = vmatpush1.msra.mxu0 0.0
      %3977 = vmatprep.subr.mxu0 0.0
      %3978 = vmatpush1.msra.mxu0 0.0
      %3979 = vmatprep.subr.mxu0 0.0
      %3980 = vmatpush1.msra.mxu0 0.0
      %3981 = vmatprep.subr.mxu0 0.0
      %3982 = vmatpush1.msra.mxu0 0.0
      %3983 = vmatprep.subr.mxu0 0.0
      %3984 = vmatpush1.msra.mxu0 0.0
      %3985 = vmatprep.subr.mxu0 0.0
      %3986 = vmatpush1.msra.mxu0 0.0
      %3987 = vmatprep.subr.mxu0 0.0
      %3988 = vmatpush1.msra.mxu0 0.0
      %3989 = vmatprep.subr.mxu0 0.0
      %3990 = vmatpush1.msra.mxu0 0.0
      %3991 = vmatprep.subr.mxu0 0.0
      %3992 = vmatpush1.msra.mxu0 0.0
      %3993 = vmatprep.subr.mxu0 0.0
      %3994 = vmatpush1.msra.mxu0 0.0
      %3995 = vmatprep.subr.mxu0 0.0
      %3996 = vmatpush1.msra.mxu0 0.0
      %3997 = vmatprep.subr.mxu0 0.0
      %3998 = vmatpush1.msra.mxu0 0.0
      %3999 = vmatprep.subr.mxu0 0.0
      %4000 = vmatpush1.msra.mxu0 0.0
      %4001 = vmatprep.subr.mxu0 0.0
      %4002 = vmatpush1.msra.mxu0 0.0
      %4003 = vmatprep.subr.mxu0 0.0
      %4004 = vmatpush1.msra.mxu0 0.0
      %4005 = vmatprep.subr.mxu0 0.0
      %4006 = vmatpush1.msra.mxu0 0.0
      %4007 = vmatprep.subr.mxu0 0.0
      %4008 = vmatpush1.msra.mxu0 0.0
      %4009 = vmatprep.subr.mxu0 0.0
      %4010 = vmatpush1.msra.mxu0 0.0
      %4011 = vmatprep.subr.mxu0 0.0
      %4012 = vmatpush1.msra.mxu0 0.0
      %4013 = vmatprep.subr.mxu0 0.0
      %4014 = vmatpush1.msra.mxu0 0.0
      %4015 = vmatprep.subr.mxu0 0.0
      %4016 = vmatpush1.msra.mxu0 0.0
      %4017 = vmatprep.subr.mxu0 0.0
      %4018 = vmatpush1.msra.mxu0 0.0
      %4019 = vmatprep.subr.mxu0 0.0
      %4020 = vmatpush1.msra.mxu0 0.0
      %4021 = vmatprep.subr.mxu0 0.0
      %4022 = vmatpush1.msra.mxu0 0.0
      %4023 = vmatprep.subr.mxu0 0.0
      %4024 = vmatpush1.msra.mxu0 0.0
      %4025 = vmatprep.subr.mxu0 0.0
      %4026 = vmatpush1.msra.mxu0 0.0
      %4027 = vmatprep.subr.mxu0 0.0
      %4028 = vmatpush1.msra.mxu0 0.0
      %4029 = vmatprep.mubr.f32.mxu0 0.0
      %4030 = vmatmul.mubr.f32.gmra.mrb[0].mxu0 %v3960
      %v4031 = vpop.f32.mrb[0].mxu0
      %v4032 = vadd.f32 0.0, %v4031
      %v4033 = vpop.f32.mrb[0].mxu0
      %4034 = vdwg.mxu0
      %v4035 = vld [vmem:[%s197] sm:$0x1]
      %v4036 = vadd.f32 %v4035, %v3954
      %4037 = vst.msk [vmem:[%s197] sm:$0x1] %vm3217, %v4036
      %v4038 = vld [vmem:[%s197 + $0xf] sm:$0x1]
      %4040 = vrot.lane.b32.xlu0 %v4032, 8
      %v4041 = vpop.permute.xlu0 %4040
      %v4043 = vadd.f32 %v4038, %v4041
      %4044 = vst.msk [vmem:[%s197 + $0xf] sm:$0x1] %vm3330, %v4043
      %s4045 = scalar_lea.vmem %s1, 40
      %v4046 = vld [vmem:[%s4045] sm:$0xff]
      %v4047 = vld [vmem:[%s4045 + $0x8] sm:$0xff]
      %v4048 = vld [vmem:[%s4045 + $0x10] sm:$0xff]
      %v4049 = vld [vmem:[%s4045 + $0x18] sm:$0xff]
      %v4050 = vld [vmem:[%s4045 + $0x20] sm:$0xf]
      %v4052 = vsel %vm2141, %v4050, 0
      %4054 = vmatprep.subr.mxu0 0.0
      %4055 = vmatpush1.msra.mxu0 %v4046
      %4056 = vmatprep.subr.mxu0 0.0
      %4057 = vmatpush1.msra.mxu0 %v4047
      %4058 = vmatprep.subr.mxu0 0.0
      %4059 = vmatpush1.msra.mxu0 %v4048
      %4060 = vmatprep.subr.mxu0 0.0
      %4061 = vmatpush1.msra.mxu0 %v4049
      %4062 = vmatprep.subr.mxu0 0.0
      %4063 = vmatpush1.msra.mxu0 %v4052
      %4064 = vmatprep.subr.mxu0 0.0
      %4065 = vmatpush1.msra.mxu0 0.0
      %4066 = vmatprep.subr.mxu0 0.0
      %4067 = vmatpush1.msra.mxu0 0.0
      %4068 = vmatprep.subr.mxu0 0.0
      %4069 = vmatpush1.msra.mxu0 0.0
      %4070 = vmatprep.subr.mxu0 0.0
      %4071 = vmatpush1.msra.mxu0 0.0
      %4072 = vmatprep.subr.mxu0 0.0
      %4073 = vmatpush1.msra.mxu0 0.0
      %4074 = vmatprep.subr.mxu0 0.0
      %4075 = vmatpush1.msra.mxu0 0.0
      %4076 = vmatprep.subr.mxu0 0.0
      %4077 = vmatpush1.msra.mxu0 0.0
      %4078 = vmatprep.subr.mxu0 0.0
      %4079 = vmatpush1.msra.mxu0 0.0
      %4080 = vmatprep.subr.mxu0 0.0
      %4081 = vmatpush1.msra.mxu0 0.0
      %4082 = vmatprep.subr.mxu0 0.0
      %4083 = vmatpush1.msra.mxu0 0.0
      %4084 = vmatprep.subr.mxu0 0.0
      %4085 = vmatpush1.msra.mxu0 0.0
      %4086 = vmatprep.subr.mxu0 0.0
      %4087 = vmatpush1.msra.mxu0 0.0
      %4088 = vmatprep.subr.mxu0 0.0
      %4089 = vmatpush1.msra.mxu0 0.0
      %4090 = vmatprep.subr.mxu0 0.0
      %4091 = vmatpush1.msra.mxu0 0.0
      %4092 = vmatprep.subr.mxu0 0.0
      %4093 = vmatpush1.msra.mxu0 0.0
      %4094 = vmatprep.subr.mxu0 0.0
      %4095 = vmatpush1.msra.mxu0 0.0
      %4096 = vmatprep.subr.mxu0 0.0
      %4097 = vmatpush1.msra.mxu0 0.0
      %4098 = vmatprep.subr.mxu0 0.0
      %4099 = vmatpush1.msra.mxu0 0.0
      %4100 = vmatprep.subr.mxu0 0.0
      %4101 = vmatpush1.msra.mxu0 0.0
      %4102 = vmatprep.subr.mxu0 0.0
      %4103 = vmatpush1.msra.mxu0 0.0
      %4104 = vmatprep.subr.mxu0 0.0
      %4105 = vmatpush1.msra.mxu0 0.0
      %4106 = vmatprep.subr.mxu0 0.0
      %4107 = vmatpush1.msra.mxu0 0.0
      %4108 = vmatprep.subr.mxu0 0.0
      %4109 = vmatpush1.msra.mxu0 0.0
      %4110 = vmatprep.subr.mxu0 0.0
      %4111 = vmatpush1.msra.mxu0 0.0
      %4112 = vmatprep.subr.mxu0 0.0
      %4113 = vmatpush1.msra.mxu0 0.0
      %4114 = vmatprep.subr.mxu0 0.0
      %4115 = vmatpush1.msra.mxu0 0.0
      %4116 = vmatprep.subr.mxu0 0.0
      %4117 = vmatpush1.msra.mxu0 0.0
      %4118 = vmatprep.mubr.f32.mxu0 0.0
      %4119 = vmatmul.mubr.f32.gmra.mrb[0].mxu0 %v2046
      %v4120 = vpop.f32.mrb[0].mxu0
      %v4121 = vadd.f32 %v2042, %v4120
      %v4122 = vpop.f32.mrb[0].mxu0
      %4123 = vmatprep.mubr.f32.mxu0 0.0
      %4124 = vmatmul.mubr.f32.gmra.mrb[0].mxu0 %v2049
      %v4125 = vpop.f32.mrb[0].mxu0
      %v4126 = vadd.f32 %v2042, %v4125
      %v4127 = vpop.f32.mrb[0].mxu0
      %4128 = vmatprep.mubr.f32.mxu0 0.0
      %4129 = vmatmul.mubr.f32.gmra.mrb[0].mxu0 %v2052
      %v4130 = vpop.f32.mrb[0].mxu0
      %v4131 = vadd.f32 %v2042, %v4130
      %v4132 = vpop.f32.mrb[0].mxu0
      %4133 = vmatprep.mubr.f32.mxu0 0.0
      %4134 = vmatmul.mubr.f32.gmra.mrb[0].mxu0 %v2055
      %v4135 = vpop.f32.mrb[0].mxu0
      %v4136 = vadd.f32 %v2042, %v4135
      %v4137 = vpop.f32.mrb[0].mxu0
      %4138 = vmatprep.mubr.f32.mxu0 0.0
      %4139 = vmatmul.mubr.f32.gmra.mrb[0].mxu0 %v2058
      %v4140 = vpop.f32.mrb[0].mxu0
      %v4141 = vadd.f32 %v2042, %v4140
      %v4142 = vpop.f32.mrb[0].mxu0
      %4143 = vmatprep.mubr.f32.mxu0 0.0
      %4144 = vmatmul.mubr.f32.gmra.mrb[0].mxu0 %v2061
      %v4145 = vpop.f32.mrb[0].mxu0
      %v4146 = vadd.f32 %v2042, %v4145
      %v4147 = vpop.f32.mrb[0].mxu0
      %4148 = vmatprep.mubr.f32.mxu0 0.0
      %4149 = vmatmul.mubr.f32.gmra.mrb[0].mxu0 %v2064
      %v4150 = vpop.f32.mrb[0].mxu0
      %v4151 = vadd.f32 %v2042, %v4150
      %v4152 = vpop.f32.mrb[0].mxu0
      %4153 = vmatprep.mubr.f32.mxu0 0.0
      %4154 = vmatmul.mubr.f32.gmra.mrb[0].mxu0 %v2067
      %v4155 = vpop.f32.mrb[0].mxu0
      %v4156 = vadd.f32 %v2042, %v4155
      %v4157 = vpop.f32.mrb[0].mxu0
      %4158 = vmatprep.mubr.f32.mxu0 0.0
      %4159 = vmatmul.mubr.f32.gmra.mrb[0].mxu0 %v2070
      %v4160 = vpop.f32.mrb[0].mxu0
      %v4161 = vadd.f32 %v2042, %v4160
      %v4162 = vpop.f32.mrb[0].mxu0
      %4163 = vmatprep.mubr.f32.mxu0 0.0
      %4164 = vmatmul.mubr.f32.gmra.mrb[0].mxu0 %v2073
      %v4165 = vpop.f32.mrb[0].mxu0
      %v4166 = vadd.f32 %v2042, %v4165
      %v4167 = vpop.f32.mrb[0].mxu0
      %4168 = vmatprep.mubr.f32.mxu0 0.0
      %4169 = vmatmul.mubr.f32.gmra.mrb[0].mxu0 %v2076
      %v4170 = vpop.f32.mrb[0].mxu0
      %v4171 = vadd.f32 %v2042, %v4170
      %v4172 = vpop.f32.mrb[0].mxu0
      %4173 = vmatprep.mubr.f32.mxu0 0.0
      %4174 = vmatmul.mubr.f32.gmra.mrb[0].mxu0 %v2079
      %v4175 = vpop.f32.mrb[0].mxu0
      %v4176 = vadd.f32 %v2042, %v4175
      %v4177 = vpop.f32.mrb[0].mxu0
      %4178 = vmatprep.mubr.f32.mxu0 0.0
      %4179 = vmatmul.mubr.f32.gmra.mrb[0].mxu0 %v2082
      %v4180 = vpop.f32.mrb[0].mxu0
      %v4181 = vadd.f32 %v2042, %v4180
      %v4182 = vpop.f32.mrb[0].mxu0
      %4183 = vmatprep.mubr.f32.mxu0 0.0
      %4184 = vmatmul.mubr.f32.gmra.mrb[0].mxu0 %v2085
      %v4185 = vpop.f32.mrb[0].mxu0
      %v4186 = vadd.f32 %v2042, %v4185
      %v4187 = vpop.f32.mrb[0].mxu0
      %4188 = vmatprep.mubr.f32.mxu0 0.0
      %4189 = vmatmul.mubr.f32.gmra.mrb[0].mxu0 %v2088
      %v4190 = vpop.f32.mrb[0].mxu0
      %v4191 = vadd.f32 %v2042, %v4190
      %v4192 = vpop.f32.mrb[0].mxu0
      %4193 = vmatprep.mubr.f32.mxu0 0.0
      %4194 = vmatmul.mubr.f32.gmra.mrb[0].mxu0 %v2091
      %v4195 = vpop.f32.mrb[0].mxu0
      %v4196 = vadd.f32 %v2042, %v4195
      %v4197 = vpop.f32.mrb[0].mxu0
      %4198 = vmatprep.mubr.f32.mxu0 0.0
      %4199 = vmatmul.mubr.f32.gmra.mrb[0].mxu0 %v2094
      %v4200 = vpop.f32.mrb[0].mxu0
      %v4201 = vadd.f32 %v2042, %v4200
      %v4202 = vpop.f32.mrb[0].mxu0
      %4203 = vmatprep.mubr.f32.mxu0 0.0
      %4204 = vmatmul.mubr.f32.gmra.mrb[0].mxu0 %v2097
      %v4205 = vpop.f32.mrb[0].mxu0
      %v4206 = vadd.f32 %v2042, %v4205
      %v4207 = vpop.f32.mrb[0].mxu0
      %4208 = vmatprep.mubr.f32.mxu0 0.0
      %4209 = vmatmul.mubr.f32.gmra.mrb[0].mxu0 %v2100
      %v4210 = vpop.f32.mrb[0].mxu0
      %v4211 = vadd.f32 %v2042, %v4210
      %v4212 = vpop.f32.mrb[0].mxu0
      %4213 = vmatprep.mubr.f32.mxu0 0.0
      %4214 = vmatmul.mubr.f32.gmra.mrb[0].mxu0 %v2103
      %v4215 = vpop.f32.mrb[0].mxu0
      %v4216 = vadd.f32 %v2042, %v4215
      %v4217 = vpop.f32.mrb[0].mxu0
      %4218 = vmatprep.mubr.f32.mxu0 0.0
      %4219 = vmatmul.mubr.f32.gmra.mrb[0].mxu0 %v2106
      %v4220 = vpop.f32.mrb[0].mxu0
      %v4221 = vadd.f32 %v2042, %v4220
      %v4222 = vpop.f32.mrb[0].mxu0
      %4223 = vmatprep.mubr.f32.mxu0 0.0
      %4224 = vmatmul.mubr.f32.gmra.mrb[0].mxu0 %v2109
      %v4225 = vpop.f32.mrb[0].mxu0
      %v4226 = vadd.f32 %v2042, %v4225
      %v4227 = vpop.f32.mrb[0].mxu0
      %4228 = vmatprep.mubr.f32.mxu0 0.0
      %4229 = vmatmul.mubr.f32.gmra.mrb[0].mxu0 %v2112
      %v4230 = vpop.f32.mrb[0].mxu0
      %v4231 = vadd.f32 %v2042, %v4230
      %v4232 = vpop.f32.mrb[0].mxu0
      %4233 = vmatprep.mubr.f32.mxu0 0.0
      %4234 = vmatmul.mubr.f32.gmra.mrb[0].mxu0 %v2115
      %v4235 = vpop.f32.mrb[0].mxu0
      %v4236 = vadd.f32 %v2042, %v4235
      %v4237 = vpop.f32.mrb[0].mxu0
      %4238 = vmatprep.mubr.f32.mxu0 0.0
      %4239 = vmatmul.mubr.f32.gmra.mrb[0].mxu0 %v2118
      %v4240 = vpop.f32.mrb[0].mxu0
      %v4241 = vadd.f32 %v2042, %v4240
      %v4242 = vpop.f32.mrb[0].mxu0
      %4243 = vmatprep.mubr.f32.mxu0 0.0
      %4244 = vmatmul.mubr.f32.gmra.mrb[0].mxu0 %v2121
      %v4245 = vpop.f32.mrb[0].mxu0
      %v4246 = vadd.f32 %v2042, %v4245
      %v4247 = vpop.f32.mrb[0].mxu0
      %4248 = vmatprep.mubr.f32.mxu0 0.0
      %4249 = vmatmul.mubr.f32.gmra.mrb[0].mxu0 %v2124
      %v4250 = vpop.f32.mrb[0].mxu0
      %v4251 = vadd.f32 %v2042, %v4250
      %v4252 = vpop.f32.mrb[0].mxu0
      %4253 = vmatprep.mubr.f32.mxu0 0.0
      %4254 = vmatmul.mubr.f32.gmra.mrb[0].mxu0 %v2127
      %v4255 = vpop.f32.mrb[0].mxu0
      %v4256 = vadd.f32 %v2042, %v4255
      %v4257 = vpop.f32.mrb[0].mxu0
      %4258 = vmatprep.mubr.f32.mxu0 0.0
      %4259 = vmatmul.mubr.f32.gmra.mrb[0].mxu0 %v2130
      %v4260 = vpop.f32.mrb[0].mxu0
      %v4261 = vadd.f32 %v2042, %v4260
      %v4262 = vpop.f32.mrb[0].mxu0
      %4263 = vmatprep.mubr.f32.mxu0 0.0
      %4264 = vmatmul.mubr.f32.gmra.mrb[0].mxu0 %v2133
      %v4265 = vpop.f32.mrb[0].mxu0
      %v4266 = vadd.f32 %v2042, %v4265
      %v4267 = vpop.f32.mrb[0].mxu0
      %4268 = vmatprep.mubr.f32.mxu0 0.0
      %4269 = vmatmul.mubr.f32.gmra.mrb[0].mxu0 %v2136
      %v4270 = vpop.f32.mrb[0].mxu0
      %v4271 = vadd.f32 %v2042, %v4270
      %v4272 = vpop.f32.mrb[0].mxu0
      %4273 = vmatprep.mubr.f32.mxu0 0.0
      %4274 = vmatmul.mubr.f32.gmra.mrb[0].mxu0 %v2139
      %v4275 = vpop.f32.mrb[0].mxu0
      %v4276 = vadd.f32 %v2042, %v4275
      %v4277 = vpop.f32.mrb[0].mxu0
      %4278 = vdwg.mxu0
      %s4279 = scalar_lea.vmem %s197, 16
      %4280 = vst.msk [vmem:[%s4279] sm:$0xff] %vm1611, %v4121
      %4281 = vst.msk [vmem:[%s4279 + $0x8] sm:$0xff] %vm1611, %v4126
      %4282 = vst.msk [vmem:[%s4279 + $0x20] sm:$0xff] %vm1611, %v4131
      %4283 = vst.msk [vmem:[%s4279 + $0x28] sm:$0xff] %vm1611, %v4136
      %4284 = vst.msk [vmem:[%s4279 + $0x40] sm:$0xff] %vm1611, %v4141
      %4285 = vst.msk [vmem:[%s4279 + $0x48] sm:$0xff] %vm1611, %v4146
      %4286 = vst.msk [vmem:[%s4279 + $0x60] sm:$0xff] %vm1611, %v4151
      %4287 = vst.msk [vmem:[%s4279 + $0x68] sm:$0xff] %vm1611, %v4156
      %4288 = vst.msk [vmem:[%s4279 + $0x80] sm:$0xff] %vm1611, %v4161
      %4289 = vst.msk [vmem:[%s4279 + $0x88] sm:$0xff] %vm1611, %v4166
      %4290 = vst.msk [vmem:[%s4279 + $0xa0] sm:$0xff] %vm1611, %v4171
      %4291 = vst.msk [vmem:[%s4279 + $0xa8] sm:$0xff] %vm1611, %v4176
      %4292 = vst.msk [vmem:[%s4279 + $0xc0] sm:$0xff] %vm1611, %v4181
      %4293 = vst.msk [vmem:[%s4279 + $0xc8] sm:$0xff] %vm1611, %v4186
      %4294 = vst.msk [vmem:[%s4279 + $0xe0] sm:$0xff] %vm1611, %v4191
      %4295 = vst.msk [vmem:[%s4279 + $0xe8] sm:$0xff] %vm1611, %v4196
      %4296 = vst.msk [vmem:[%s4279 + $0x100] sm:$0xff] %vm1611, %v4201
      %4297 = vst.msk [vmem:[%s4279 + $0x108] sm:$0xff] %vm1611, %v4206
      %4298 = vst.msk [vmem:[%s4279 + $0x120] sm:$0xff] %vm1611, %v4211
      %4299 = vst.msk [vmem:[%s4279 + $0x128] sm:$0xff] %vm1611, %v4216
      %4300 = vst.msk [vmem:[%s4279 + $0x140] sm:$0xff] %vm1611, %v4221
      %4301 = vst.msk [vmem:[%s4279 + $0x148] sm:$0xff] %vm1611, %v4226
      %4302 = vst.msk [vmem:[%s4279 + $0x160] sm:$0xff] %vm1611, %v4231
      %4303 = vst.msk [vmem:[%s4279 + $0x168] sm:$0xff] %vm1611, %v4236
      %4304 = vst.msk [vmem:[%s4279 + $0x180] sm:$0xff] %vm1611, %v4241
      %4305 = vst.msk [vmem:[%s4279 + $0x188] sm:$0xff] %vm1611, %v4246
      %4306 = vst.msk [vmem:[%s4279 + $0x1a0] sm:$0xff] %vm1611, %v4251
      %4307 = vst.msk [vmem:[%s4279 + $0x1a8] sm:$0xff] %vm1611, %v4256
      %4308 = vst.msk [vmem:[%s4279 + $0x1c0] sm:$0xff] %vm1611, %v4261
      %4309 = vst.msk [vmem:[%s4279 + $0x1c8] sm:$0xff] %vm1611, %v4266
      %4310 = vst.msk [vmem:[%s4279 + $0x1e0] sm:$0xff] %vm1611, %v4271
      %4311 = vst.msk [vmem:[%s4279 + $0x1e8] sm:$0xff] %vm1611, %v4276
      %v4312 = vld [vmem:[%s2] sm:$0xf]
      %v4313 = vld [vmem:[%s2455] sm:$0xf]
      %v4315 = vsel %vm2141, %v4313, 0
      %4317 = vmatprep.subr.mxu0 0.0
      %4318 = vmatpush1.msra.mxu0 %v4315
      %4319 = vmatprep.subr.mxu0 0.0
      %4320 = vmatpush1.msra.mxu0 0.0
      %4321 = vmatprep.subr.mxu0 0.0
      %4322 = vmatpush1.msra.mxu0 0.0
      %4323 = vmatprep.subr.mxu0 0.0
      %4324 = vmatpush1.msra.mxu0 0.0
      %4325 = vmatprep.subr.mxu0 0.0
      %4326 = vmatpush1.msra.mxu0 0.0
      %4327 = vmatprep.subr.mxu0 0.0
      %4328 = vmatpush1.msra.mxu0 0.0
      %4329 = vmatprep.subr.mxu0 0.0
      %4330 = vmatpush1.msra.mxu0 0.0
      %4331 = vmatprep.subr.mxu0 0.0
      %4332 = vmatpush1.msra.mxu0 0.0
      %4333 = vmatprep.subr.mxu0 0.0
      %4334 = vmatpush1.msra.mxu0 0.0
      %4335 = vmatprep.subr.mxu0 0.0
      %4336 = vmatpush1.msra.mxu0 0.0
      %4337 = vmatprep.subr.mxu0 0.0
      %4338 = vmatpush1.msra.mxu0 0.0
      %4339 = vmatprep.subr.mxu0 0.0
      %4340 = vmatpush1.msra.mxu0 0.0
      %4341 = vmatprep.subr.mxu0 0.0
      %4342 = vmatpush1.msra.mxu0 0.0
      %4343 = vmatprep.subr.mxu0 0.0
      %4344 = vmatpush1.msra.mxu0 0.0
      %4345 = vmatprep.subr.mxu0 0.0
      %4346 = vmatpush1.msra.mxu0 0.0
      %4347 = vmatprep.subr.mxu0 0.0
      %4348 = vmatpush1.msra.mxu0 0.0
      %4349 = vmatprep.subr.mxu0 0.0
      %4350 = vmatpush1.msra.mxu0 0.0
      %4351 = vmatprep.subr.mxu0 0.0
      %4352 = vmatpush1.msra.mxu0 0.0
      %4353 = vmatprep.subr.mxu0 0.0
      %4354 = vmatpush1.msra.mxu0 0.0
      %4355 = vmatprep.subr.mxu0 0.0
      %4356 = vmatpush1.msra.mxu0 0.0
      %4357 = vmatprep.subr.mxu0 0.0
      %4358 = vmatpush1.msra.mxu0 0.0
      %4359 = vmatprep.subr.mxu0 0.0
      %4360 = vmatpush1.msra.mxu0 0.0
      %4361 = vmatprep.subr.mxu0 0.0
      %4362 = vmatpush1.msra.mxu0 0.0
      %4363 = vmatprep.subr.mxu0 0.0
      %4364 = vmatpush1.msra.mxu0 0.0
      %4365 = vmatprep.subr.mxu0 0.0
      %4366 = vmatpush1.msra.mxu0 0.0
      %4367 = vmatprep.subr.mxu0 0.0
      %4368 = vmatpush1.msra.mxu0 0.0
      %4369 = vmatprep.subr.mxu0 0.0
      %4370 = vmatpush1.msra.mxu0 0.0
      %4371 = vmatprep.subr.mxu0 0.0
      %4372 = vmatpush1.msra.mxu0 0.0
      %4373 = vmatprep.subr.mxu0 0.0
      %4374 = vmatpush1.msra.mxu0 0.0
      %4375 = vmatprep.subr.mxu0 0.0
      %4376 = vmatpush1.msra.mxu0 0.0
      %4377 = vmatprep.subr.mxu0 0.0
      %4378 = vmatpush1.msra.mxu0 0.0
      %4379 = vmatprep.subr.mxu0 0.0
      %4380 = vmatpush1.msra.mxu0 0.0
      %4381 = vmatprep.mubr.f32.mxu0 0.0
      %4382 = vmatmul.mubr.f32.gmra.mrb[0].mxu0 %v2697
      %v4383 = vpop.f32.mrb[0].mxu0
      %v4384 = vadd.f32 0.0, %v4383
      %v4385 = vpop.f32.mrb[0].mxu0
      %4386 = vmatprep.mubr.f32.mxu0 0.0
      %4387 = vmatmul.mubr.f32.gmra.mrb[0].mxu0 %v2699
      %v4388 = vpop.f32.mrb[0].mxu0
      %v4389 = vadd.f32 0.0, %v4388
      %v4390 = vpop.f32.mrb[0].mxu0
      %4391 = vdwg.mxu0
      %v4393 = vsel %vm2141, %v4312, 0
      %4395 = vmatprep.subr.mxu0 0.0
      %4396 = vmatpush1.msra.mxu0 %v4393
      %4397 = vmatprep.subr.mxu0 0.0
      %4398 = vmatpush1.msra.mxu0 0.0
      %4399 = vmatprep.subr.mxu0 0.0
      %4400 = vmatpush1.msra.mxu0 0.0
      %4401 = vmatprep.subr.mxu0 0.0
      %4402 = vmatpush1.msra.mxu0 0.0
      %4403 = vmatprep.subr.mxu0 0.0
      %4404 = vmatpush1.msra.mxu0 0.0
      %4405 = vmatprep.subr.mxu0 0.0
      %4406 = vmatpush1.msra.mxu0 0.0
      %4407 = vmatprep.subr.mxu0 0.0
      %4408 = vmatpush1.msra.mxu0 0.0
      %4409 = vmatprep.subr.mxu0 0.0
      %4410 = vmatpush1.msra.mxu0 0.0
      %4411 = vmatprep.subr.mxu0 0.0
      %4412 = vmatpush1.msra.mxu0 0.0
      %4413 = vmatprep.subr.mxu0 0.0
      %4414 = vmatpush1.msra.mxu0 0.0
      %4415 = vmatprep.subr.mxu0 0.0
      %4416 = vmatpush1.msra.mxu0 0.0
      %4417 = vmatprep.subr.mxu0 0.0
      %4418 = vmatpush1.msra.mxu0 0.0
      %4419 = vmatprep.subr.mxu0 0.0
      %4420 = vmatpush1.msra.mxu0 0.0
      %4421 = vmatprep.subr.mxu0 0.0
      %4422 = vmatpush1.msra.mxu0 0.0
      %4423 = vmatprep.subr.mxu0 0.0
      %4424 = vmatpush1.msra.mxu0 0.0
      %4425 = vmatprep.subr.mxu0 0.0
      %4426 = vmatpush1.msra.mxu0 0.0
      %4427 = vmatprep.subr.mxu0 0.0
      %4428 = vmatpush1.msra.mxu0 0.0
      %4429 = vmatprep.subr.mxu0 0.0
      %4430 = vmatpush1.msra.mxu0 0.0
      %4431 = vmatprep.subr.mxu0 0.0
      %4432 = vmatpush1.msra.mxu0 0.0
      %4433 = vmatprep.subr.mxu0 0.0
      %4434 = vmatpush1.msra.mxu0 0.0
      %4435 = vmatprep.subr.mxu0 0.0
      %4436 = vmatpush1.msra.mxu0 0.0
      %4437 = vmatprep.subr.mxu0 0.0
      %4438 = vmatpush1.msra.mxu0 0.0
      %4439 = vmatprep.subr.mxu0 0.0
      %4440 = vmatpush1.msra.mxu0 0.0
      %4441 = vmatprep.subr.mxu0 0.0
      %4442 = vmatpush1.msra.mxu0 0.0
      %4443 = vmatprep.subr.mxu0 0.0
      %4444 = vmatpush1.msra.mxu0 0.0
      %4445 = vmatprep.subr.mxu0 0.0
      %4446 = vmatpush1.msra.mxu0 0.0
      %4447 = vmatprep.subr.mxu0 0.0
      %4448 = vmatpush1.msra.mxu0 0.0
      %4449 = vmatprep.subr.mxu0 0.0
      %4450 = vmatpush1.msra.mxu0 0.0
      %4451 = vmatprep.subr.mxu0 0.0
      %4452 = vmatpush1.msra.mxu0 0.0
      %4453 = vmatprep.subr.mxu0 0.0
      %4454 = vmatpush1.msra.mxu0 0.0
      %4455 = vmatprep.subr.mxu0 0.0
      %4456 = vmatpush1.msra.mxu0 0.0
      %4457 = vmatprep.subr.mxu0 0.0
      %4458 = vmatpush1.msra.mxu0 0.0
      %4459 = vmatprep.mubr.f32.mxu0 0.0
      %4460 = vmatmul.mubr.f32.gmra.mrb[0].mxu0 %v2501
      %v4461 = vpop.f32.mrb[0].mxu0
      %v4462 = vadd.f32 %v4384, %v4461
      %v4463 = vpop.f32.mrb[0].mxu0
      %4464 = vmatprep.mubr.f32.mxu0 0.0
      %4465 = vmatmul.mubr.f32.gmra.mrb[0].mxu0 %v2503
      %v4466 = vpop.f32.mrb[0].mxu0
      %v4467 = vadd.f32 %v4389, %v4466
      %v4468 = vpop.f32.mrb[0].mxu0
      %4469 = vdwg.mxu0
      %v4470 = vrot.slane %v1859, 7
      %v4471 = vsel %vm2437, %v4470, %v1858
      %v4472 = vrot.slane %v1860, 6
      %v4473 = vsel %vm2419, %v4472, %v4471
      %v4474 = vrot.slane %v1861, 5
      %v4475 = vsel %vm2422, %v4474, %v4473
      %v4476 = vrot.slane %v1862, 4
      %v4477 = vsel %vm2425, %v4476, %v4475
      %v4478 = vrot.slane %v1863, 3
      %v4479 = vsel %vm2428, %v4478, %v4477
      %v4480 = vrot.slane %v1864, 2
      %v4481 = vsel %vm2431, %v4480, %v4479
      %v4482 = vrot.slane %v1865, 1
      %v4483 = vsel %vm2434, %v4482, %v4481
      %v4484 = vrot.slane %v1867, 7
      %v4485 = vsel %vm2437, %v4484, %v1866
      %v4486 = vrot.slane %v1868, 6
      %v4487 = vsel %vm2419, %v4486, %v4485
      %v4488 = vrot.slane %v1869, 5
      %v4489 = vsel %vm2422, %v4488, %v4487
      %v4490 = vrot.slane %v1870, 4
      %v4491 = vsel %vm2425, %v4490, %v4489
      %v4492 = vrot.slane %v1871, 3
      %v4493 = vsel %vm2428, %v4492, %v4491
      %v4494 = vrot.slane %v1872, 2
      %v4495 = vsel %vm2431, %v4494, %v4493
      %v4498 = vsel %vm3775, %v4495, %v2695
      %v4499 = vld [vmem:[%s2666] sm:$0xf]
      %v4500 = vsel %vm1512, %v4483, 0
      %v4503 = vsel %vm1512, %v4498, 0
      %v4506 = vsel %vm2141, %v4499, 0
      %4508 = vmatprep.subr.mxu0 0.0
      %4509 = vmatpush1.msra.mxu0 %v4506
      %4510 = vmatprep.subr.mxu0 0.0
      %4511 = vmatpush1.msra.mxu0 0.0
      %4512 = vmatprep.subr.mxu0 0.0
      %4513 = vmatpush1.msra.mxu0 0.0
      %4514 = vmatprep.subr.mxu0 0.0
      %4515 = vmatpush1.msra.mxu0 0.0
      %4516 = vmatprep.subr.mxu0 0.0
      %4517 = vmatpush1.msra.mxu0 0.0
      %4518 = vmatprep.subr.mxu0 0.0
      %4519 = vmatpush1.msra.mxu0 0.0
      %4520 = vmatprep.subr.mxu0 0.0
      %4521 = vmatpush1.msra.mxu0 0.0
      %4522 = vmatprep.subr.mxu0 0.0
      %4523 = vmatpush1.msra.mxu0 0.0
      %4524 = vmatprep.subr.mxu0 0.0
      %4525 = vmatpush1.msra.mxu0 0.0
      %4526 = vmatprep.subr.mxu0 0.0
      %4527 = vmatpush1.msra.mxu0 0.0
      %4528 = vmatprep.subr.mxu0 0.0
      %4529 = vmatpush1.msra.mxu0 0.0
      %4530 = vmatprep.subr.mxu0 0.0
      %4531 = vmatpush1.msra.mxu0 0.0
      %4532 = vmatprep.subr.mxu0 0.0
      %4533 = vmatpush1.msra.mxu0 0.0
      %4534 = vmatprep.subr.mxu0 0.0
      %4535 = vmatpush1.msra.mxu0 0.0
      %4536 = vmatprep.subr.mxu0 0.0
      %4537 = vmatpush1.msra.mxu0 0.0
      %4538 = vmatprep.subr.mxu0 0.0
      %4539 = vmatpush1.msra.mxu0 0.0
      %4540 = vmatprep.subr.mxu0 0.0
      %4541 = vmatpush1.msra.mxu0 0.0
      %4542 = vmatprep.subr.mxu0 0.0
      %4543 = vmatpush1.msra.mxu0 0.0
      %4544 = vmatprep.subr.mxu0 0.0
      %4545 = vmatpush1.msra.mxu0 0.0
      %4546 = vmatprep.subr.mxu0 0.0
      %4547 = vmatpush1.msra.mxu0 0.0
      %4548 = vmatprep.subr.mxu0 0.0
      %4549 = vmatpush1.msra.mxu0 0.0
      %4550 = vmatprep.subr.mxu0 0.0
      %4551 = vmatpush1.msra.mxu0 0.0
      %4552 = vmatprep.subr.mxu0 0.0
      %4553 = vmatpush1.msra.mxu0 0.0
      %4554 = vmatprep.subr.mxu0 0.0
      %4555 = vmatpush1.msra.mxu0 0.0
      %4556 = vmatprep.subr.mxu0 0.0
      %4557 = vmatpush1.msra.mxu0 0.0
      %4558 = vmatprep.subr.mxu0 0.0
      %4559 = vmatpush1.msra.mxu0 0.0
      %4560 = vmatprep.subr.mxu0 0.0
      %4561 = vmatpush1.msra.mxu0 0.0
      %4562 = vmatprep.subr.mxu0 0.0
      %4563 = vmatpush1.msra.mxu0 0.0
      %4564 = vmatprep.subr.mxu0 0.0
      %4565 = vmatpush1.msra.mxu0 0.0
      %4566 = vmatprep.subr.mxu0 0.0
      %4567 = vmatpush1.msra.mxu0 0.0
      %4568 = vmatprep.subr.mxu0 0.0
      %4569 = vmatpush1.msra.mxu0 0.0
      %4570 = vmatprep.subr.mxu0 0.0
      %4571 = vmatpush1.msra.mxu0 0.0
      %4572 = vmatprep.mubr.f32.mxu0 0.0
      %4573 = vmatmul.mubr.f32.gmra.mrb[0].mxu0 %v4500
      %v4574 = vpop.f32.mrb[0].mxu0
      %v4575 = vadd.f32 0.0, %v4574
      %v4576 = vpop.f32.mrb[0].mxu0
      %4577 = vmatprep.mubr.f32.mxu0 0.0
      %4578 = vmatmul.mubr.f32.gmra.mrb[0].mxu0 %v4503
      %v4579 = vpop.f32.mrb[0].mxu0
      %v4580 = vadd.f32 0.0, %v4579
      %v4581 = vpop.f32.mrb[0].mxu0
      %4582 = vdwg.mxu0
      %v4583 = vadd.f32 %v4462, %v4575
      %v4584 = vadd.f32 %v4467, %v4580
      %v4585 = vld [vmem:[%s2825] sm:$0xf]
      %v4586 = vld [vmem:[%s2827] sm:$0xf]
      %v4588 = vsel %vm2141, %v4586, 0
      %4590 = vmatprep.subr.mxu0 0.0
      %4591 = vmatpush1.msra.mxu0 %v4588
      %4592 = vmatprep.subr.mxu0 0.0
      %4593 = vmatpush1.msra.mxu0 0.0
      %4594 = vmatprep.subr.mxu0 0.0
      %4595 = vmatpush1.msra.mxu0 0.0
      %4596 = vmatprep.subr.mxu0 0.0
      %4597 = vmatpush1.msra.mxu0 0.0
      %4598 = vmatprep.subr.mxu0 0.0
      %4599 = vmatpush1.msra.mxu0 0.0
      %4600 = vmatprep.subr.mxu0 0.0
      %4601 = vmatpush1.msra.mxu0 0.0
      %4602 = vmatprep.subr.mxu0 0.0
      %4603 = vmatpush1.msra.mxu0 0.0
      %4604 = vmatprep.subr.mxu0 0.0
      %4605 = vmatpush1.msra.mxu0 0.0
      %4606 = vmatprep.subr.mxu0 0.0
      %4607 = vmatpush1.msra.mxu0 0.0
      %4608 = vmatprep.subr.mxu0 0.0
      %4609 = vmatpush1.msra.mxu0 0.0
      %4610 = vmatprep.subr.mxu0 0.0
      %4611 = vmatpush1.msra.mxu0 0.0
      %4612 = vmatprep.subr.mxu0 0.0
      %4613 = vmatpush1.msra.mxu0 0.0
      %4614 = vmatprep.subr.mxu0 0.0
      %4615 = vmatpush1.msra.mxu0 0.0
      %4616 = vmatprep.subr.mxu0 0.0
      %4617 = vmatpush1.msra.mxu0 0.0
      %4618 = vmatprep.subr.mxu0 0.0
      %4619 = vmatpush1.msra.mxu0 0.0
      %4620 = vmatprep.subr.mxu0 0.0
      %4621 = vmatpush1.msra.mxu0 0.0
      %4622 = vmatprep.subr.mxu0 0.0
      %4623 = vmatpush1.msra.mxu0 0.0
      %4624 = vmatprep.subr.mxu0 0.0
      %4625 = vmatpush1.msra.mxu0 0.0
      %4626 = vmatprep.subr.mxu0 0.0
      %4627 = vmatpush1.msra.mxu0 0.0
      %4628 = vmatprep.subr.mxu0 0.0
      %4629 = vmatpush1.msra.mxu0 0.0
      %4630 = vmatprep.subr.mxu0 0.0
      %4631 = vmatpush1.msra.mxu0 0.0
      %4632 = vmatprep.subr.mxu0 0.0
      %4633 = vmatpush1.msra.mxu0 0.0
      %4634 = vmatprep.subr.mxu0 0.0
      %4635 = vmatpush1.msra.mxu0 0.0
      %4636 = vmatprep.subr.mxu0 0.0
      %4637 = vmatpush1.msra.mxu0 0.0
      %4638 = vmatprep.subr.mxu0 0.0
      %4639 = vmatpush1.msra.mxu0 0.0
      %4640 = vmatprep.subr.mxu0 0.0
      %4641 = vmatpush1.msra.mxu0 0.0
      %4642 = vmatprep.subr.mxu0 0.0
      %4643 = vmatpush1.msra.mxu0 0.0
      %4644 = vmatprep.subr.mxu0 0.0
      %4645 = vmatpush1.msra.mxu0 0.0
      %4646 = vmatprep.subr.mxu0 0.0
      %4647 = vmatpush1.msra.mxu0 0.0
      %4648 = vmatprep.subr.mxu0 0.0
      %4649 = vmatpush1.msra.mxu0 0.0
      %4650 = vmatprep.subr.mxu0 0.0
      %4651 = vmatpush1.msra.mxu0 0.0
      %4652 = vmatprep.subr.mxu0 0.0
      %4653 = vmatpush1.msra.mxu0 0.0
      %4654 = vmatprep.mubr.f32.mxu0 0.0
      %4655 = vmatmul.mubr.f32.gmra.mrb[0].mxu0 %v3069
      %v4656 = vpop.f32.mrb[0].mxu0
      %v4657 = vadd.f32 0.0, %v4656
      %v4658 = vpop.f32.mrb[0].mxu0
      %4659 = vmatprep.mubr.f32.mxu0 0.0
      %4660 = vmatmul.mubr.f32.gmra.mrb[0].mxu0 %v3071
      %v4661 = vpop.f32.mrb[0].mxu0
      %v4662 = vadd.f32 0.0, %v4661
      %v4663 = vpop.f32.mrb[0].mxu0
      %4664 = vdwg.mxu0
      %v4666 = vsel %vm2141, %v4585, 0
      %4668 = vmatprep.subr.mxu0 0.0
      %4669 = vmatpush1.msra.mxu0 %v4666
      %4670 = vmatprep.subr.mxu0 0.0
      %4671 = vmatpush1.msra.mxu0 0.0
      %4672 = vmatprep.subr.mxu0 0.0
      %4673 = vmatpush1.msra.mxu0 0.0
      %4674 = vmatprep.subr.mxu0 0.0
      %4675 = vmatpush1.msra.mxu0 0.0
      %4676 = vmatprep.subr.mxu0 0.0
      %4677 = vmatpush1.msra.mxu0 0.0
      %4678 = vmatprep.subr.mxu0 0.0
      %4679 = vmatpush1.msra.mxu0 0.0
      %4680 = vmatprep.subr.mxu0 0.0
      %4681 = vmatpush1.msra.mxu0 0.0
      %4682 = vmatprep.subr.mxu0 0.0
      %4683 = vmatpush1.msra.mxu0 0.0
      %4684 = vmatprep.subr.mxu0 0.0
      %4685 = vmatpush1.msra.mxu0 0.0
      %4686 = vmatprep.subr.mxu0 0.0
      %4687 = vmatpush1.msra.mxu0 0.0
      %4688 = vmatprep.subr.mxu0 0.0
      %4689 = vmatpush1.msra.mxu0 0.0
      %4690 = vmatprep.subr.mxu0 0.0
      %4691 = vmatpush1.msra.mxu0 0.0
      %4692 = vmatprep.subr.mxu0 0.0
      %4693 = vmatpush1.msra.mxu0 0.0
      %4694 = vmatprep.subr.mxu0 0.0
      %4695 = vmatpush1.msra.mxu0 0.0
      %4696 = vmatprep.subr.mxu0 0.0
      %4697 = vmatpush1.msra.mxu0 0.0
      %4698 = vmatprep.subr.mxu0 0.0
      %4699 = vmatpush1.msra.mxu0 0.0
      %4700 = vmatprep.subr.mxu0 0.0
      %4701 = vmatpush1.msra.mxu0 0.0
      %4702 = vmatprep.subr.mxu0 0.0
      %4703 = vmatpush1.msra.mxu0 0.0
      %4704 = vmatprep.subr.mxu0 0.0
      %4705 = vmatpush1.msra.mxu0 0.0
      %4706 = vmatprep.subr.mxu0 0.0
      %4707 = vmatpush1.msra.mxu0 0.0
      %4708 = vmatprep.subr.mxu0 0.0
      %4709 = vmatpush1.msra.mxu0 0.0
      %4710 = vmatprep.subr.mxu0 0.0
      %4711 = vmatpush1.msra.mxu0 0.0
      %4712 = vmatprep.subr.mxu0 0.0
      %4713 = vmatpush1.msra.mxu0 0.0
      %4714 = vmatprep.subr.mxu0 0.0
      %4715 = vmatpush1.msra.mxu0 0.0
      %4716 = vmatprep.subr.mxu0 0.0
      %4717 = vmatpush1.msra.mxu0 0.0
      %4718 = vmatprep.subr.mxu0 0.0
      %4719 = vmatpush1.msra.mxu0 0.0
      %4720 = vmatprep.subr.mxu0 0.0
      %4721 = vmatpush1.msra.mxu0 0.0
      %4722 = vmatprep.subr.mxu0 0.0
      %4723 = vmatpush1.msra.mxu0 0.0
      %4724 = vmatprep.subr.mxu0 0.0
      %4725 = vmatpush1.msra.mxu0 0.0
      %4726 = vmatprep.subr.mxu0 0.0
      %4727 = vmatpush1.msra.mxu0 0.0
      %4728 = vmatprep.subr.mxu0 0.0
      %4729 = vmatpush1.msra.mxu0 0.0
      %4730 = vmatprep.subr.mxu0 0.0
      %4731 = vmatpush1.msra.mxu0 0.0
      %4732 = vmatprep.mubr.f32.mxu0 0.0
      %4733 = vmatmul.mubr.f32.gmra.mrb[0].mxu0 %v2873
      %v4734 = vpop.f32.mrb[0].mxu0
      %v4735 = vadd.f32 %v4657, %v4734
      %v4736 = vpop.f32.mrb[0].mxu0
      %4737 = vmatprep.mubr.f32.mxu0 0.0
      %4738 = vmatmul.mubr.f32.gmra.mrb[0].mxu0 %v2875
      %v4739 = vpop.f32.mrb[0].mxu0
      %v4740 = vadd.f32 %v4662, %v4739
      %v4741 = vpop.f32.mrb[0].mxu0
      %4742 = vdwg.mxu0
      %v4743 = vrot.slane %v1987, 7
      %v4744 = vsel %vm2437, %v4743, %v1986
      %v4745 = vrot.slane %v1988, 6
      %v4746 = vsel %vm2419, %v4745, %v4744
      %v4747 = vrot.slane %v1989, 5
      %v4748 = vsel %vm2422, %v4747, %v4746
      %v4749 = vrot.slane %v1990, 4
      %v4750 = vsel %vm2425, %v4749, %v4748
      %v4751 = vrot.slane %v1991, 3
      %v4752 = vsel %vm2428, %v4751, %v4750
      %v4753 = vrot.slane %v1992, 2
      %v4754 = vsel %vm2431, %v4753, %v4752
      %v4755 = vrot.slane %v1993, 1
      %v4756 = vsel %vm2434, %v4755, %v4754
      %v4757 = vrot.slane %v1995, 7
      %v4758 = vsel %vm2437, %v4757, %v1994
      %v4759 = vrot.slane %v1996, 6
      %v4760 = vsel %vm2419, %v4759, %v4758
      %v4761 = vrot.slane %v1997, 5
      %v4762 = vsel %vm2422, %v4761, %v4760
      %v4763 = vrot.slane %v1998, 4
      %v4764 = vsel %vm2425, %v4763, %v4762
      %v4765 = vrot.slane %v1999, 3
      %v4766 = vsel %vm2428, %v4765, %v4764
      %v4767 = vrot.slane %v2000, 2
      %v4768 = vsel %vm2431, %v4767, %v4766
      %v4771 = vsel %vm3775, %v4768, %v3067
      %v4772 = vld [vmem:[%s3038] sm:$0xf]
      %v4773 = vsel %vm1512, %v4756, 0
      %v4776 = vsel %vm1512, %v4771, 0
      %v4779 = vsel %vm2141, %v4772, 0
      %4781 = vmatprep.subr.mxu0 0.0
      %4782 = vmatpush1.msra.mxu0 %v4779
      %4783 = vmatprep.subr.mxu0 0.0
      %4784 = vmatpush1.msra.mxu0 0.0
      %4785 = vmatprep.subr.mxu0 0.0
      %4786 = vmatpush1.msra.mxu0 0.0
      %4787 = vmatprep.subr.mxu0 0.0
      %4788 = vmatpush1.msra.mxu0 0.0
      %4789 = vmatprep.subr.mxu0 0.0
      %4790 = vmatpush1.msra.mxu0 0.0
      %4791 = vmatprep.subr.mxu0 0.0
      %4792 = vmatpush1.msra.mxu0 0.0
      %4793 = vmatprep.subr.mxu0 0.0
      %4794 = vmatpush1.msra.mxu0 0.0
      %4795 = vmatprep.subr.mxu0 0.0
      %4796 = vmatpush1.msra.mxu0 0.0
      %4797 = vmatprep.subr.mxu0 0.0
      %4798 = vmatpush1.msra.mxu0 0.0
      %4799 = vmatprep.subr.mxu0 0.0
      %4800 = vmatpush1.msra.mxu0 0.0
      %4801 = vmatprep.subr.mxu0 0.0
      %4802 = vmatpush1.msra.mxu0 0.0
      %4803 = vmatprep.subr.mxu0 0.0
      %4804 = vmatpush1.msra.mxu0 0.0
      %4805 = vmatprep.subr.mxu0 0.0
      %4806 = vmatpush1.msra.mxu0 0.0
      %4807 = vmatprep.subr.mxu0 0.0
      %4808 = vmatpush1.msra.mxu0 0.0
      %4809 = vmatprep.subr.mxu0 0.0
      %4810 = vmatpush1.msra.mxu0 0.0
      %4811 = vmatprep.subr.mxu0 0.0
      %4812 = vmatpush1.msra.mxu0 0.0
      %4813 = vmatprep.subr.mxu0 0.0
      %4814 = vmatpush1.msra.mxu0 0.0
      %4815 = vmatprep.subr.mxu0 0.0
      %4816 = vmatpush1.msra.mxu0 0.0
      %4817 = vmatprep.subr.mxu0 0.0
      %4818 = vmatpush1.msra.mxu0 0.0
      %4819 = vmatprep.subr.mxu0 0.0
      %4820 = vmatpush1.msra.mxu0 0.0
      %4821 = vmatprep.subr.mxu0 0.0
      %4822 = vmatpush1.msra.mxu0 0.0
      %4823 = vmatprep.subr.mxu0 0.0
      %4824 = vmatpush1.msra.mxu0 0.0
      %4825 = vmatprep.subr.mxu0 0.0
      %4826 = vmatpush1.msra.mxu0 0.0
      %4827 = vmatprep.subr.mxu0 0.0
      %4828 = vmatpush1.msra.mxu0 0.0
      %4829 = vmatprep.subr.mxu0 0.0
      %4830 = vmatpush1.msra.mxu0 0.0
      %4831 = vmatprep.subr.mxu0 0.0
      %4832 = vmatpush1.msra.mxu0 0.0
      %4833 = vmatprep.subr.mxu0 0.0
      %4834 = vmatpush1.msra.mxu0 0.0
      %4835 = vmatprep.subr.mxu0 0.0
      %4836 = vmatpush1.msra.mxu0 0.0
      %4837 = vmatprep.subr.mxu0 0.0
      %4838 = vmatpush1.msra.mxu0 0.0
      %4839 = vmatprep.subr.mxu0 0.0
      %4840 = vmatpush1.msra.mxu0 0.0
      %4841 = vmatprep.subr.mxu0 0.0
      %4842 = vmatpush1.msra.mxu0 0.0
      %4843 = vmatprep.subr.mxu0 0.0
      %4844 = vmatpush1.msra.mxu0 0.0
      %4845 = vmatprep.mubr.f32.mxu0 0.0
      %4846 = vmatmul.mubr.f32.gmra.mrb[0].mxu0 %v4773
      %v4847 = vpop.f32.mrb[0].mxu0
      %v4848 = vadd.f32 0.0, %v4847
      %v4849 = vpop.f32.mrb[0].mxu0
      %4850 = vmatprep.mubr.f32.mxu0 0.0
      %4851 = vmatmul.mubr.f32.gmra.mrb[0].mxu0 %v4776
      %v4852 = vpop.f32.mrb[0].mxu0
      %v4853 = vadd.f32 0.0, %v4852
      %v4854 = vpop.f32.mrb[0].mxu0
      %4855 = vdwg.mxu0
      %v4856 = vadd.f32 %v4735, %v4848
      %v4857 = vadd.f32 %v4740, %v4853
      %v4858 = vld [vmem:[%s4279] sm:$0x1]
      %v4859 = vld [vmem:[%s4279 + $0x20] sm:$0x1]
      %v4860 = vld [vmem:[%s4279 + $0x40] sm:$0x1]
      %v4861 = vld [vmem:[%s4279 + $0x60] sm:$0x1]
      %v4862 = vld [vmem:[%s4279 + $0x80] sm:$0x1]
      %v4863 = vld [vmem:[%s4279 + $0xa0] sm:$0x1]
      %v4864 = vld [vmem:[%s4279 + $0xc0] sm:$0x1]
      %v4865 = vld [vmem:[%s4279 + $0xe0] sm:$0x1]
      %v4866 = vld [vmem:[%s4279 + $0x100] sm:$0x1]
      %v4867 = vld [vmem:[%s4279 + $0x120] sm:$0x1]
      %v4868 = vld [vmem:[%s4279 + $0x140] sm:$0x1]
      %v4869 = vld [vmem:[%s4279 + $0x160] sm:$0x1]
      %v4870 = vld [vmem:[%s4279 + $0x180] sm:$0x1]
      %v4871 = vld [vmem:[%s4279 + $0x1a0] sm:$0x1]
      %v4872 = vld [vmem:[%s4279 + $0x1c0] sm:$0x1]
      %v4873 = vld [vmem:[%s4279 + $0x1e0] sm:$0x1]
      %v4876 = vrot.slane %v4583, 1
      %v4877 = vrot.slane %v4583, 2
      %v4878 = vrot.slane %v4583, 3
      %v4879 = vrot.slane %v4583, 4
      %v4880 = vrot.slane %v4583, 5
      %v4881 = vrot.slane %v4583, 6
      %v4882 = vrot.slane %v4583, 7
      %v4883 = vrot.slane %v4584, 1
      %v4884 = vrot.slane %v4584, 2
      %v4885 = vrot.slane %v4584, 3
      %v4886 = vrot.slane %v4584, 4
      %v4887 = vrot.slane %v4584, 5
      %v4888 = vrot.slane %v4584, 6
      %v4889 = vrot.slane %v4584, 7
      %v4906 = vsub.f32 %v4858, %v4583
      %v4907 = vsub.f32 %v4859, %v4876
      %v4908 = vsub.f32 %v4860, %v4877
      %v4909 = vsub.f32 %v4861, %v4878
      %v4910 = vsub.f32 %v4862, %v4879
      %v4911 = vsub.f32 %v4863, %v4880
      %v4912 = vsub.f32 %v4864, %v4881
      %v4913 = vsub.f32 %v4865, %v4882
      %v4914 = vsub.f32 %v4866, %v4584
      %v4915 = vsub.f32 %v4867, %v4883
      %v4916 = vsub.f32 %v4868, %v4884
      %v4917 = vsub.f32 %v4869, %v4885
      %v4918 = vsub.f32 %v4870, %v4886
      %v4919 = vsub.f32 %v4871, %v4887
      %v4920 = vsub.f32 %v4872, %v4888
      %v4921 = vsub.f32 %v4873, %v4889
      %4922 = vst.msk [vmem:[%s4279] sm:$0x1] %vm3217, %v4906
      %4923 = vst.msk [vmem:[%s4279 + $0x20] sm:$0x1] %vm3217, %v4907
      %4924 = vst.msk [vmem:[%s4279 + $0x40] sm:$0x1] %vm3217, %v4908
      %4925 = vst.msk [vmem:[%s4279 + $0x60] sm:$0x1] %vm3217, %v4909
      %4926 = vst.msk [vmem:[%s4279 + $0x80] sm:$0x1] %vm3217, %v4910
      %4927 = vst.msk [vmem:[%s4279 + $0xa0] sm:$0x1] %vm3217, %v4911
      %4928 = vst.msk [vmem:[%s4279 + $0xc0] sm:$0x1] %vm3217, %v4912
      %4929 = vst.msk [vmem:[%s4279 + $0xe0] sm:$0x1] %vm3217, %v4913
      %4930 = vst.msk [vmem:[%s4279 + $0x100] sm:$0x1] %vm3217, %v4914
      %4931 = vst.msk [vmem:[%s4279 + $0x120] sm:$0x1] %vm3217, %v4915
      %4932 = vst.msk [vmem:[%s4279 + $0x140] sm:$0x1] %vm3217, %v4916
      %4933 = vst.msk [vmem:[%s4279 + $0x160] sm:$0x1] %vm3217, %v4917
      %4934 = vst.msk [vmem:[%s4279 + $0x180] sm:$0x1] %vm3217, %v4918
      %4935 = vst.msk [vmem:[%s4279 + $0x1a0] sm:$0x1] %vm3217, %v4919
      %4936 = vst.msk [vmem:[%s4279 + $0x1c0] sm:$0x1] %vm3217, %v4920
      %4937 = vst.msk [vmem:[%s4279 + $0x1e0] sm:$0x1] %vm3217, %v4921
      %v4938 = vld [vmem:[%s4279 + $0xf] sm:$0x1]
      %v4939 = vld [vmem:[%s4279 + $0x2f] sm:$0x1]
      %v4940 = vld [vmem:[%s4279 + $0x4f] sm:$0x1]
      %v4941 = vld [vmem:[%s4279 + $0x6f] sm:$0x1]
      %v4942 = vld [vmem:[%s4279 + $0x8f] sm:$0x1]
      %v4943 = vld [vmem:[%s4279 + $0xaf] sm:$0x1]
      %v4944 = vld [vmem:[%s4279 + $0xcf] sm:$0x1]
      %v4945 = vld [vmem:[%s4279 + $0xef] sm:$0x1]
      %v4946 = vld [vmem:[%s4279 + $0x10f] sm:$0x1]
      %v4947 = vld [vmem:[%s4279 + $0x12f] sm:$0x1]
      %v4948 = vld [vmem:[%s4279 + $0x14f] sm:$0x1]
      %v4949 = vld [vmem:[%s4279 + $0x16f] sm:$0x1]
      %v4950 = vld [vmem:[%s4279 + $0x18f] sm:$0x1]
      %v4951 = vld [vmem:[%s4279 + $0x1af] sm:$0x1]
      %v4952 = vld [vmem:[%s4279 + $0x1cf] sm:$0x1]
      %v4953 = vld [vmem:[%s4279 + $0x1ef] sm:$0x1]
      %v4956 = vrot.slane %v4856, 1
      %v4957 = vrot.slane %v4856, 2
      %v4958 = vrot.slane %v4856, 3
      %v4959 = vrot.slane %v4856, 4
      %v4960 = vrot.slane %v4856, 5
      %v4961 = vrot.slane %v4856, 6
      %v4962 = vrot.slane %v4856, 7
      %v4963 = vrot.slane %v4857, 1
      %v4964 = vrot.slane %v4857, 2
      %v4965 = vrot.slane %v4857, 3
      %v4966 = vrot.slane %v4857, 4
      %v4967 = vrot.slane %v4857, 5
      %v4968 = vrot.slane %v4857, 6
      %v4969 = vrot.slane %v4857, 7
      %4970 = vrot.lane.b32.xlu0 %v4856, 8
      %v4971 = vpop.permute.xlu0 %4970
      %4972 = vrot.lane.b32.xlu0 %v4956, 8
      %v4973 = vpop.permute.xlu0 %4972
      %4974 = vrot.lane.b32.xlu0 %v4957, 8
      %v4975 = vpop.permute.xlu0 %4974
      %4976 = vrot.lane.b32.xlu0 %v4958, 8
      %v4977 = vpop.permute.xlu0 %4976
      %4978 = vrot.lane.b32.xlu0 %v4959, 8
      %v4979 = vpop.permute.xlu0 %4978
      %4980 = vrot.lane.b32.xlu0 %v4960, 8
      %v4981 = vpop.permute.xlu0 %4980
      %4982 = vrot.lane.b32.xlu0 %v4961, 8
      %v4983 = vpop.permute.xlu0 %4982
      %4984 = vrot.lane.b32.xlu0 %v4962, 8
      %v4985 = vpop.permute.xlu0 %4984
      %4986 = vrot.lane.b32.xlu0 %v4857, 8
      %v4987 = vpop.permute.xlu0 %4986
      %4988 = vrot.lane.b32.xlu0 %v4963, 8
      %v4989 = vpop.permute.xlu0 %4988
      %4990 = vrot.lane.b32.xlu0 %v4964, 8
      %v4991 = vpop.permute.xlu0 %4990
      %4992 = vrot.lane.b32.xlu0 %v4965, 8
      %v4993 = vpop.permute.xlu0 %4992
      %4994 = vrot.lane.b32.xlu0 %v4966, 8
      %v4995 = vpop.permute.xlu0 %4994
      %4996 = vrot.lane.b32.xlu0 %v4967, 8
      %v4997 = vpop.permute.xlu0 %4996
      %4998 = vrot.lane.b32.xlu0 %v4968, 8
      %v4999 = vpop.permute.xlu0 %4998
      %5000 = vrot.lane.b32.xlu0 %v4969, 8
      %v5001 = vpop.permute.xlu0 %5000
      %v5018 = vsub.f32 %v4938, %v4971
      %v5019 = vsub.f32 %v4939, %v4973
      %v5020 = vsub.f32 %v4940, %v4975
      %v5021 = vsub.f32 %v4941, %v4977
      %v5022 = vsub.f32 %v4942, %v4979
      %v5023 = vsub.f32 %v4943, %v4981
      %v5024 = vsub.f32 %v4944, %v4983
      %v5025 = vsub.f32 %v4945, %v4985
      %v5026 = vsub.f32 %v4946, %v4987
      %v5027 = vsub.f32 %v4947, %v4989
      %v5028 = vsub.f32 %v4948, %v4991
      %v5029 = vsub.f32 %v4949, %v4993
      %v5030 = vsub.f32 %v4950, %v4995
      %v5031 = vsub.f32 %v4951, %v4997
      %v5032 = vsub.f32 %v4952, %v4999
      %v5033 = vsub.f32 %v4953, %v5001
      %5034 = vst.msk [vmem:[%s4279 + $0xf] sm:$0x1] %vm3330, %v5018
      %5035 = vst.msk [vmem:[%s4279 + $0x2f] sm:$0x1] %vm3330, %v5019
      %5036 = vst.msk [vmem:[%s4279 + $0x4f] sm:$0x1] %vm3330, %v5020
      %5037 = vst.msk [vmem:[%s4279 + $0x6f] sm:$0x1] %vm3330, %v5021
      %5038 = vst.msk [vmem:[%s4279 + $0x8f] sm:$0x1] %vm3330, %v5022
      %5039 = vst.msk [vmem:[%s4279 + $0xaf] sm:$0x1] %vm3330, %v5023
      %5040 = vst.msk [vmem:[%s4279 + $0xcf] sm:$0x1] %vm3330, %v5024
      %5041 = vst.msk [vmem:[%s4279 + $0xef] sm:$0x1] %vm3330, %v5025
      %5042 = vst.msk [vmem:[%s4279 + $0x10f] sm:$0x1] %vm3330, %v5026
      %5043 = vst.msk [vmem:[%s4279 + $0x12f] sm:$0x1] %vm3330, %v5027
      %5044 = vst.msk [vmem:[%s4279 + $0x14f] sm:$0x1] %vm3330, %v5028
      %5045 = vst.msk [vmem:[%s4279 + $0x16f] sm:$0x1] %vm3330, %v5029
      %5046 = vst.msk [vmem:[%s4279 + $0x18f] sm:$0x1] %vm3330, %v5030
      %5047 = vst.msk [vmem:[%s4279 + $0x1af] sm:$0x1] %vm3330, %v5031
      %5048 = vst.msk [vmem:[%s4279 + $0x1cf] sm:$0x1] %vm3330, %v5032
      %5049 = vst.msk [vmem:[%s4279 + $0x1ef] sm:$0x1] %vm3330, %v5033
      %s5050 = scalar_lea.vmem %s192, 384
      %v5051 = vld [vmem:[%s5050 + $0x1] sm:$0xff]
      %v5052 = vld [vmem:[%s5050 + $0x9] sm:$0xff]
      %v5053 = vld [vmem:[%s5050] sm:$0xff]
      %v5054 = vld [vmem:[%s5050 + $0x8] sm:$0xff]
      %v5055 = vld [vmem:[%s5050 + $0x2] sm:$0xff]
      %v5056 = vld [vmem:[%s5050 + $0xa] sm:$0xff]
      %v5057 = vmul.f32 %v5051, 0.75
      %v5058 = vmul.f32 %v5052, 0.75
      %v5059 = vmul.f32 %v5053, 0.25
      %v5060 = vmul.f32 %v5054, 0.25
      %v5061 = vadd.f32 %v5057, %v5059
      %v5062 = vadd.f32 %v5058, %v5060
      %v5063 = vmul.f32 %v5055, 0.25
      %v5064 = vmul.f32 %v5056, 0.25
      %v5065 = vadd.f32 %v5057, %v5063
      %v5066 = vadd.f32 %v5058, %v5064
      %v5069 = vrot.slane %v5065, 7
      %v5070 = vrot.slane %v5066, 7
      %v5071 = vsel %vm2452, %v5069, %v5070
      %v5073 = vsel %vm2452, %v5061, %v5069
      %v5074 = vld [vmem:[%s2666] sm:$0xf]
      %s5075 = scalar_lea.vmem %s2, 28
      %v5076 = vld [vmem:[%s5075] sm:$0xf]
      %v5078 = vsel %vm1512, %v5061, 0
      %v5081 = vsel %vm1512, %v5062, 0
      %v5084 = vsel %vm2141, %v5076, 0
      %5086 = vmatprep.subr.mxu0 0.0
      %5087 = vmatpush1.msra.mxu0 %v5084
      %5088 = vmatprep.subr.mxu0 0.0
      %5089 = vmatpush1.msra.mxu0 0.0
      %5090 = vmatprep.subr.mxu0 0.0
      %5091 = vmatpush1.msra.mxu0 0.0
      %5092 = vmatprep.subr.mxu0 0.0
      %5093 = vmatpush1.msra.mxu0 0.0
      %5094 = vmatprep.subr.mxu0 0.0
      %5095 = vmatpush1.msra.mxu0 0.0
      %5096 = vmatprep.subr.mxu0 0.0
      %5097 = vmatpush1.msra.mxu0 0.0
      %5098 = vmatprep.subr.mxu0 0.0
      %5099 = vmatpush1.msra.mxu0 0.0
      %5100 = vmatprep.subr.mxu0 0.0
      %5101 = vmatpush1.msra.mxu0 0.0
      %5102 = vmatprep.subr.mxu0 0.0
      %5103 = vmatpush1.msra.mxu0 0.0
      %5104 = vmatprep.subr.mxu0 0.0
      %5105 = vmatpush1.msra.mxu0 0.0
      %5106 = vmatprep.subr.mxu0 0.0
      %5107 = vmatpush1.msra.mxu0 0.0
      %5108 = vmatprep.subr.mxu0 0.0
      %5109 = vmatpush1.msra.mxu0 0.0
      %5110 = vmatprep.subr.mxu0 0.0
      %5111 = vmatpush1.msra.mxu0 0.0
      %5112 = vmatprep.subr.mxu0 0.0
      %5113 = vmatpush1.msra.mxu0 0.0
      %5114 = vmatprep.subr.mxu0 0.0
      %5115 = vmatpush1.msra.mxu0 0.0
      %5116 = vmatprep.subr.mxu0 0.0
      %5117 = vmatpush1.msra.mxu0 0.0
      %5118 = vmatprep.subr.mxu0 0.0
      %5119 = vmatpush1.msra.mxu0 0.0
      %5120 = vmatprep.subr.mxu0 0.0
      %5121 = vmatpush1.msra.mxu0 0.0
      %5122 = vmatprep.subr.mxu0 0.0
      %5123 = vmatpush1.msra.mxu0 0.0
      %5124 = vmatprep.subr.mxu0 0.0
      %5125 = vmatpush1.msra.mxu0 0.0
      %5126 = vmatprep.subr.mxu0 0.0
      %5127 = vmatpush1.msra.mxu0 0.0
      %5128 = vmatprep.subr.mxu0 0.0
      %5129 = vmatpush1.msra.mxu0 0.0
      %5130 = vmatprep.subr.mxu0 0.0
      %5131 = vmatpush1.msra.mxu0 0.0
      %5132 = vmatprep.subr.mxu0 0.0
      %5133 = vmatpush1.msra.mxu0 0.0
      %5134 = vmatprep.subr.mxu0 0.0
      %5135 = vmatpush1.msra.mxu0 0.0
      %5136 = vmatprep.subr.mxu0 0.0
      %5137 = vmatpush1.msra.mxu0 0.0
      %5138 = vmatprep.subr.mxu0 0.0
      %5139 = vmatpush1.msra.mxu0 0.0
      %5140 = vmatprep.subr.mxu0 0.0
      %5141 = vmatpush1.msra.mxu0 0.0
      %5142 = vmatprep.subr.mxu0 0.0
      %5143 = vmatpush1.msra.mxu0 0.0
      %5144 = vmatprep.subr.mxu0 0.0
      %5145 = vmatpush1.msra.mxu0 0.0
      %5146 = vmatprep.subr.mxu0 0.0
      %5147 = vmatpush1.msra.mxu0 0.0
      %5148 = vmatprep.subr.mxu0 0.0
      %5149 = vmatpush1.msra.mxu0 0.0
      %5150 = vmatprep.mubr.f32.mxu0 0.0
      %5151 = vmatmul.mubr.f32.gmra.mrb[0].mxu0 %v5078
      %v5152 = vpop.f32.mrb[0].mxu0
      %v5153 = vadd.f32 0.0, %v5152
      %v5154 = vpop.f32.mrb[0].mxu0
      %5155 = vmatprep.mubr.f32.mxu0 0.0
      %5156 = vmatmul.mubr.f32.gmra.mrb[0].mxu0 %v5081
      %v5157 = vpop.f32.mrb[0].mxu0
      %v5158 = vadd.f32 0.0, %v5157
      %v5159 = vpop.f32.mrb[0].mxu0
      %5160 = vdwg.mxu0
      %v5162 = vsel %vm1512, %v5073, 0
      %v5164 = vsel %vm1512, %v5071, 0
      %v5167 = vsel %vm2141, %v5074, 0
      %5169 = vmatprep.subr.mxu0 0.0
      %5170 = vmatpush1.msra.mxu0 %v5167
      %5171 = vmatprep.subr.mxu0 0.0
      %5172 = vmatpush1.msra.mxu0 0.0
      %5173 = vmatprep.subr.mxu0 0.0
      %5174 = vmatpush1.msra.mxu0 0.0
      %5175 = vmatprep.subr.mxu0 0.0
      %5176 = vmatpush1.msra.mxu0 0.0
      %5177 = vmatprep.subr.mxu0 0.0
      %5178 = vmatpush1.msra.mxu0 0.0
      %5179 = vmatprep.subr.mxu0 0.0
      %5180 = vmatpush1.msra.mxu0 0.0
      %5181 = vmatprep.subr.mxu0 0.0
      %5182 = vmatpush1.msra.mxu0 0.0
      %5183 = vmatprep.subr.mxu0 0.0
      %5184 = vmatpush1.msra.mxu0 0.0
      %5185 = vmatprep.subr.mxu0 0.0
      %5186 = vmatpush1.msra.mxu0 0.0
      %5187 = vmatprep.subr.mxu0 0.0
      %5188 = vmatpush1.msra.mxu0 0.0
      %5189 = vmatprep.subr.mxu0 0.0
      %5190 = vmatpush1.msra.mxu0 0.0
      %5191 = vmatprep.subr.mxu0 0.0
      %5192 = vmatpush1.msra.mxu0 0.0
      %5193 = vmatprep.subr.mxu0 0.0
      %5194 = vmatpush1.msra.mxu0 0.0
      %5195 = vmatprep.subr.mxu0 0.0
      %5196 = vmatpush1.msra.mxu0 0.0
      %5197 = vmatprep.subr.mxu0 0.0
      %5198 = vmatpush1.msra.mxu0 0.0
      %5199 = vmatprep.subr.mxu0 0.0
      %5200 = vmatpush1.msra.mxu0 0.0
      %5201 = vmatprep.subr.mxu0 0.0
      %5202 = vmatpush1.msra.mxu0 0.0
      %5203 = vmatprep.subr.mxu0 0.0
      %5204 = vmatpush1.msra.mxu0 0.0
      %5205 = vmatprep.subr.mxu0 0.0
      %5206 = vmatpush1.msra.mxu0 0.0
      %5207 = vmatprep.subr.mxu0 0.0
      %5208 = vmatpush1.msra.mxu0 0.0
      %5209 = vmatprep.subr.mxu0 0.0
      %5210 = vmatpush1.msra.mxu0 0.0
      %5211 = vmatprep.subr.mxu0 0.0
      %5212 = vmatpush1.msra.mxu0 0.0
      %5213 = vmatprep.subr.mxu0 0.0
      %5214 = vmatpush1.msra.mxu0 0.0
      %5215 = vmatprep.subr.mxu0 0.0
      %5216 = vmatpush1.msra.mxu0 0.0
      %5217 = vmatprep.subr.mxu0 0.0
      %5218 = vmatpush1.msra.mxu0 0.0
      %5219 = vmatprep.subr.mxu0 0.0
      %5220 = vmatpush1.msra.mxu0 0.0
      %5221 = vmatprep.subr.mxu0 0.0
      %5222 = vmatpush1.msra.mxu0 0.0
      %5223 = vmatprep.subr.mxu0 0.0
      %5224 = vmatpush1.msra.mxu0 0.0
      %5225 = vmatprep.subr.mxu0 0.0
      %5226 = vmatpush1.msra.mxu0 0.0
      %5227 = vmatprep.subr.mxu0 0.0
      %5228 = vmatpush1.msra.mxu0 0.0
      %5229 = vmatprep.subr.mxu0 0.0
      %5230 = vmatpush1.msra.mxu0 0.0
      %5231 = vmatprep.subr.mxu0 0.0
      %5232 = vmatpush1.msra.mxu0 0.0
      %5233 = vmatprep.mubr.f32.mxu0 0.0
      %5234 = vmatmul.mubr.f32.gmra.mrb[0].mxu0 %v5162
      %v5235 = vpop.f32.mrb[0].mxu0
      %v5236 = vadd.f32 %v5153, %v5235
      %v5237 = vpop.f32.mrb[0].mxu0
      %5238 = vmatprep.mubr.f32.mxu0 0.0
      %5239 = vmatmul.mubr.f32.gmra.mrb[0].mxu0 %v5164
      %v5240 = vpop.f32.mrb[0].mxu0
      %v5241 = vadd.f32 %v5158, %v5240
      %v5242 = vpop.f32.mrb[0].mxu0
      %5243 = vdwg.mxu0
      %v5244 = vld [vmem:[%s3038] sm:$0xf]
      %v5245 = vsel %vm1512, %v5065, 0
      %v5247 = vsel %vm1512, %v5066, 0
      %v5250 = vsel %vm2141, %v5244, 0
      %5252 = vmatprep.subr.mxu0 0.0
      %5253 = vmatpush1.msra.mxu0 %v5250
      %5254 = vmatprep.subr.mxu0 0.0
      %5255 = vmatpush1.msra.mxu0 0.0
      %5256 = vmatprep.subr.mxu0 0.0
      %5257 = vmatpush1.msra.mxu0 0.0
      %5258 = vmatprep.subr.mxu0 0.0
      %5259 = vmatpush1.msra.mxu0 0.0
      %5260 = vmatprep.subr.mxu0 0.0
      %5261 = vmatpush1.msra.mxu0 0.0
      %5262 = vmatprep.subr.mxu0 0.0
      %5263 = vmatpush1.msra.mxu0 0.0
      %5264 = vmatprep.subr.mxu0 0.0
      %5265 = vmatpush1.msra.mxu0 0.0
      %5266 = vmatprep.subr.mxu0 0.0
      %5267 = vmatpush1.msra.mxu0 0.0
      %5268 = vmatprep.subr.mxu0 0.0
      %5269 = vmatpush1.msra.mxu0 0.0
      %5270 = vmatprep.subr.mxu0 0.0
      %5271 = vmatpush1.msra.mxu0 0.0
      %5272 = vmatprep.subr.mxu0 0.0
      %5273 = vmatpush1.msra.mxu0 0.0
      %5274 = vmatprep.subr.mxu0 0.0
      %5275 = vmatpush1.msra.mxu0 0.0
      %5276 = vmatprep.subr.mxu0 0.0
      %5277 = vmatpush1.msra.mxu0 0.0
      %5278 = vmatprep.subr.mxu0 0.0
      %5279 = vmatpush1.msra.mxu0 0.0
      %5280 = vmatprep.subr.mxu0 0.0
      %5281 = vmatpush1.msra.mxu0 0.0
      %5282 = vmatprep.subr.mxu0 0.0
      %5283 = vmatpush1.msra.mxu0 0.0
      %5284 = vmatprep.subr.mxu0 0.0
      %5285 = vmatpush1.msra.mxu0 0.0
      %5286 = vmatprep.subr.mxu0 0.0
      %5287 = vmatpush1.msra.mxu0 0.0
      %5288 = vmatprep.subr.mxu0 0.0
      %5289 = vmatpush1.msra.mxu0 0.0
      %5290 = vmatprep.subr.mxu0 0.0
      %5291 = vmatpush1.msra.mxu0 0.0
      %5292 = vmatprep.subr.mxu0 0.0
      %5293 = vmatpush1.msra.mxu0 0.0
      %5294 = vmatprep.subr.mxu0 0.0
      %5295 = vmatpush1.msra.mxu0 0.0
      %5296 = vmatprep.subr.mxu0 0.0
      %5297 = vmatpush1.msra.mxu0 0.0
      %5298 = vmatprep.subr.mxu0 0.0
      %5299 = vmatpush1.msra.mxu0 0.0
      %5300 = vmatprep.subr.mxu0 0.0
      %5301 = vmatpush1.msra.mxu0 0.0
      %5302 = vmatprep.subr.mxu0 0.0
      %5303 = vmatpush1.msra.mxu0 0.0
      %5304 = vmatprep.subr.mxu0 0.0
      %5305 = vmatpush1.msra.mxu0 0.0
      %5306 = vmatprep.subr.mxu0 0.0
      %5307 = vmatpush1.msra.mxu0 0.0
      %5308 = vmatprep.subr.mxu0 0.0
      %5309 = vmatpush1.msra.mxu0 0.0
      %5310 = vmatprep.subr.mxu0 0.0
      %5311 = vmatpush1.msra.mxu0 0.0
      %5312 = vmatprep.subr.mxu0 0.0
      %5313 = vmatpush1.msra.mxu0 0.0
      %5314 = vmatprep.subr.mxu0 0.0
      %5315 = vmatpush1.msra.mxu0 0.0
      %5316 = vmatprep.mubr.f32.mxu0 0.0
      %5317 = vmatmul.mubr.f32.gmra.mrb[0].mxu0 %v5245
      %v5318 = vpop.f32.mrb[0].mxu0
      %v5319 = vadd.f32 0.0, %v5318
      %v5320 = vpop.f32.mrb[0].mxu0
      %5321 = vmatprep.mubr.f32.mxu0 0.0
      %5322 = vmatmul.mubr.f32.gmra.mrb[0].mxu0 %v5247
      %v5323 = vpop.f32.mrb[0].mxu0
      %v5324 = vadd.f32 0.0, %v5323
      %v5325 = vpop.f32.mrb[0].mxu0
      %5326 = vdwg.mxu0
      %v5327 = vadd.f32 %v5236, %v5319
      %v5328 = vadd.f32 %v5241, %v5324
      %5329 = vmatprep.subr.mxu0 0.0
      %5330 = vmatpush1.msra.mxu0 %v5084
      %5331 = vmatprep.subr.mxu0 0.0
      %5332 = vmatpush1.msra.mxu0 0.0
      %5333 = vmatprep.subr.mxu0 0.0
      %5334 = vmatpush1.msra.mxu0 0.0
      %5335 = vmatprep.subr.mxu0 0.0
      %5336 = vmatpush1.msra.mxu0 0.0
      %5337 = vmatprep.subr.mxu0 0.0
      %5338 = vmatpush1.msra.mxu0 0.0
      %5339 = vmatprep.subr.mxu0 0.0
      %5340 = vmatpush1.msra.mxu0 0.0
      %5341 = vmatprep.subr.mxu0 0.0
      %5342 = vmatpush1.msra.mxu0 0.0
      %5343 = vmatprep.subr.mxu0 0.0
      %5344 = vmatpush1.msra.mxu0 0.0
      %5345 = vmatprep.subr.mxu0 0.0
      %5346 = vmatpush1.msra.mxu0 0.0
      %5347 = vmatprep.subr.mxu0 0.0
      %5348 = vmatpush1.msra.mxu0 0.0
      %5349 = vmatprep.subr.mxu0 0.0
      %5350 = vmatpush1.msra.mxu0 0.0
      %5351 = vmatprep.subr.mxu0 0.0
      %5352 = vmatpush1.msra.mxu0 0.0
      %5353 = vmatprep.subr.mxu0 0.0
      %5354 = vmatpush1.msra.mxu0 0.0
      %5355 = vmatprep.subr.mxu0 0.0
      %5356 = vmatpush1.msra.mxu0 0.0
      %5357 = vmatprep.subr.mxu0 0.0
      %5358 = vmatpush1.msra.mxu0 0.0
      %5359 = vmatprep.subr.mxu0 0.0
      %5360 = vmatpush1.msra.mxu0 0.0
      %5361 = vmatprep.subr.mxu0 0.0
      %5362 = vmatpush1.msra.mxu0 0.0
      %5363 = vmatprep.subr.mxu0 0.0
      %5364 = vmatpush1.msra.mxu0 0.0
      %5365 = vmatprep.subr.mxu0 0.0
      %5366 = vmatpush1.msra.mxu0 0.0
      %5367 = vmatprep.subr.mxu0 0.0
      %5368 = vmatpush1.msra.mxu0 0.0
      %5369 = vmatprep.subr.mxu0 0.0
      %5370 = vmatpush1.msra.mxu0 0.0
      %5371 = vmatprep.subr.mxu0 0.0
      %5372 = vmatpush1.msra.mxu0 0.0
      %5373 = vmatprep.subr.mxu0 0.0
      %5374 = vmatpush1.msra.mxu0 0.0
      %5375 = vmatprep.subr.mxu0 0.0
      %5376 = vmatpush1.msra.mxu0 0.0
      %5377 = vmatprep.subr.mxu0 0.0
      %5378 = vmatpush1.msra.mxu0 0.0
      %5379 = vmatprep.subr.mxu0 0.0
      %5380 = vmatpush1.msra.mxu0 0.0
      %5381 = vmatprep.subr.mxu0 0.0
      %5382 = vmatpush1.msra.mxu0 0.0
      %5383 = vmatprep.subr.mxu0 0.0
      %5384 = vmatpush1.msra.mxu0 0.0
      %5385 = vmatprep.subr.mxu0 0.0
      %5386 = vmatpush1.msra.mxu0 0.0
      %5387 = vmatprep.subr.mxu0 0.0
      %5388 = vmatpush1.msra.mxu0 0.0
      %5389 = vmatprep.subr.mxu0 0.0
      %5390 = vmatpush1.msra.mxu0 0.0
      %5391 = vmatprep.subr.mxu0 0.0
      %5392 = vmatpush1.msra.mxu0 0.0
      %5393 = vmatprep.mubr.f32.mxu0 0.0
      %5394 = vmatmul.mubr.f32.gmra.mrb[0].mxu0 %v5245
      %v5395 = vpop.f32.mrb[0].mxu0
      %v5396 = vadd.f32 0.0, %v5395
      %v5397 = vpop.f32.mrb[0].mxu0
      %5398 = vmatprep.mubr.f32.mxu0 0.0
      %5399 = vmatmul.mubr.f32.gmra.mrb[0].mxu0 %v5247
      %v5400 = vpop.f32.mrb[0].mxu0
      %v5401 = vadd.f32 0.0, %v5400
      %v5402 = vpop.f32.mrb[0].mxu0
      %5403 = vdwg.mxu0
      %5404 = vmatprep.subr.mxu0 0.0
      %5405 = vmatpush1.msra.mxu0 %v5167
      %5406 = vmatprep.subr.mxu0 0.0
      %5407 = vmatpush1.msra.mxu0 0.0
      %5408 = vmatprep.subr.mxu0 0.0
      %5409 = vmatpush1.msra.mxu0 0.0
      %5410 = vmatprep.subr.mxu0 0.0
      %5411 = vmatpush1.msra.mxu0 0.0
      %5412 = vmatprep.subr.mxu0 0.0
      %5413 = vmatpush1.msra.mxu0 0.0
      %5414 = vmatprep.subr.mxu0 0.0
      %5415 = vmatpush1.msra.mxu0 0.0
      %5416 = vmatprep.subr.mxu0 0.0
      %5417 = vmatpush1.msra.mxu0 0.0
      %5418 = vmatprep.subr.mxu0 0.0
      %5419 = vmatpush1.msra.mxu0 0.0
      %5420 = vmatprep.subr.mxu0 0.0
      %5421 = vmatpush1.msra.mxu0 0.0
      %5422 = vmatprep.subr.mxu0 0.0
      %5423 = vmatpush1.msra.mxu0 0.0
      %5424 = vmatprep.subr.mxu0 0.0
      %5425 = vmatpush1.msra.mxu0 0.0
      %5426 = vmatprep.subr.mxu0 0.0
      %5427 = vmatpush1.msra.mxu0 0.0
      %5428 = vmatprep.subr.mxu0 0.0
      %5429 = vmatpush1.msra.mxu0 0.0
      %5430 = vmatprep.subr.mxu0 0.0
      %5431 = vmatpush1.msra.mxu0 0.0
      %5432 = vmatprep.subr.mxu0 0.0
      %5433 = vmatpush1.msra.mxu0 0.0
      %5434 = vmatprep.subr.mxu0 0.0
      %5435 = vmatpush1.msra.mxu0 0.0
      %5436 = vmatprep.subr.mxu0 0.0
      %5437 = vmatpush1.msra.mxu0 0.0
      %5438 = vmatprep.subr.mxu0 0.0
      %5439 = vmatpush1.msra.mxu0 0.0
      %5440 = vmatprep.subr.mxu0 0.0
      %5441 = vmatpush1.msra.mxu0 0.0
      %5442 = vmatprep.subr.mxu0 0.0
      %5443 = vmatpush1.msra.mxu0 0.0
      %5444 = vmatprep.subr.mxu0 0.0
      %5445 = vmatpush1.msra.mxu0 0.0
      %5446 = vmatprep.subr.mxu0 0.0
      %5447 = vmatpush1.msra.mxu0 0.0
      %5448 = vmatprep.subr.mxu0 0.0
      %5449 = vmatpush1.msra.mxu0 0.0
      %5450 = vmatprep.subr.mxu0 0.0
      %5451 = vmatpush1.msra.mxu0 0.0
      %5452 = vmatprep.subr.mxu0 0.0
      %5453 = vmatpush1.msra.mxu0 0.0
      %5454 = vmatprep.subr.mxu0 0.0
      %5455 = vmatpush1.msra.mxu0 0.0
      %5456 = vmatprep.subr.mxu0 0.0
      %5457 = vmatpush1.msra.mxu0 0.0
      %5458 = vmatprep.subr.mxu0 0.0
      %5459 = vmatpush1.msra.mxu0 0.0
      %5460 = vmatprep.subr.mxu0 0.0
      %5461 = vmatpush1.msra.mxu0 0.0
      %5462 = vmatprep.subr.mxu0 0.0
      %5463 = vmatpush1.msra.mxu0 0.0
      %5464 = vmatprep.subr.mxu0 0.0
      %5465 = vmatpush1.msra.mxu0 0.0
      %5466 = vmatprep.subr.mxu0 0.0
      %5467 = vmatpush1.msra.mxu0 0.0
      %5468 = vmatprep.mubr.f32.mxu0 0.0
      %5469 = vmatmul.mubr.f32.gmra.mrb[0].mxu0 %v5078
      %v5470 = vpop.f32.mrb[0].mxu0
      %v5471 = vadd.f32 %v5396, %v5470
      %v5472 = vpop.f32.mrb[0].mxu0
      %5473 = vmatprep.mubr.f32.mxu0 0.0
      %5474 = vmatmul.mubr.f32.gmra.mrb[0].mxu0 %v5081
      %v5475 = vpop.f32.mrb[0].mxu0
      %v5476 = vadd.f32 %v5401, %v5475
      %v5477 = vpop.f32.mrb[0].mxu0
      %5478 = vdwg.mxu0
      %v5479 = vrot.slane %v5061, 1
      %v5480 = vrot.slane %v5062, 1
      %v5481 = vsel %vm3775, %v5479, %v5480
      %v5483 = vsel %vm3775, %v5480, %v5066
      %v5484 = vsel %vm1512, %v5481, 0
      %v5487 = vsel %vm1512, %v5483, 0
      %5489 = vmatprep.subr.mxu0 0.0
      %5490 = vmatpush1.msra.mxu0 %v5250
      %5491 = vmatprep.subr.mxu0 0.0
      %5492 = vmatpush1.msra.mxu0 0.0
      %5493 = vmatprep.subr.mxu0 0.0
      %5494 = vmatpush1.msra.mxu0 0.0
      %5495 = vmatprep.subr.mxu0 0.0
      %5496 = vmatpush1.msra.mxu0 0.0
      %5497 = vmatprep.subr.mxu0 0.0
      %5498 = vmatpush1.msra.mxu0 0.0
      %5499 = vmatprep.subr.mxu0 0.0
      %5500 = vmatpush1.msra.mxu0 0.0
      %5501 = vmatprep.subr.mxu0 0.0
      %5502 = vmatpush1.msra.mxu0 0.0
      %5503 = vmatprep.subr.mxu0 0.0
      %5504 = vmatpush1.msra.mxu0 0.0
      %5505 = vmatprep.subr.mxu0 0.0
      %5506 = vmatpush1.msra.mxu0 0.0
      %5507 = vmatprep.subr.mxu0 0.0
      %5508 = vmatpush1.msra.mxu0 0.0
      %5509 = vmatprep.subr.mxu0 0.0
      %5510 = vmatpush1.msra.mxu0 0.0
      %5511 = vmatprep.subr.mxu0 0.0
      %5512 = vmatpush1.msra.mxu0 0.0
      %5513 = vmatprep.subr.mxu0 0.0
      %5514 = vmatpush1.msra.mxu0 0.0
      %5515 = vmatprep.subr.mxu0 0.0
      %5516 = vmatpush1.msra.mxu0 0.0
      %5517 = vmatprep.subr.mxu0 0.0
      %5518 = vmatpush1.msra.mxu0 0.0
      %5519 = vmatprep.subr.mxu0 0.0
      %5520 = vmatpush1.msra.mxu0 0.0
      %5521 = vmatprep.subr.mxu0 0.0
      %5522 = vmatpush1.msra.mxu0 0.0
      %5523 = vmatprep.subr.mxu0 0.0
      %5524 = vmatpush1.msra.mxu0 0.0
      %5525 = vmatprep.subr.mxu0 0.0
      %5526 = vmatpush1.msra.mxu0 0.0
      %5527 = vmatprep.subr.mxu0 0.0
      %5528 = vmatpush1.msra.mxu0 0.0
      %5529 = vmatprep.subr.mxu0 0.0
      %5530 = vmatpush1.msra.mxu0 0.0
      %5531 = vmatprep.subr.mxu0 0.0
      %5532 = vmatpush1.msra.mxu0 0.0
      %5533 = vmatprep.subr.mxu0 0.0
      %5534 = vmatpush1.msra.mxu0 0.0
      %5535 = vmatprep.subr.mxu0 0.0
      %5536 = vmatpush1.msra.mxu0 0.0
      %5537 = vmatprep.subr.mxu0 0.0
      %5538 = vmatpush1.msra.mxu0 0.0
      %5539 = vmatprep.subr.mxu0 0.0
      %5540 = vmatpush1.msra.mxu0 0.0
      %5541 = vmatprep.subr.mxu0 0.0
      %5542 = vmatpush1.msra.mxu0 0.0
      %5543 = vmatprep.subr.mxu0 0.0
      %5544 = vmatpush1.msra.mxu0 0.0
      %5545 = vmatprep.subr.mxu0 0.0
      %5546 = vmatpush1.msra.mxu0 0.0
      %5547 = vmatprep.subr.mxu0 0.0
      %5548 = vmatpush1.msra.mxu0 0.0
      %5549 = vmatprep.subr.mxu0 0.0
      %5550 = vmatpush1.msra.mxu0 0.0
      %5551 = vmatprep.subr.mxu0 0.0
      %5552 = vmatpush1.msra.mxu0 0.0
      %5553 = vmatprep.mubr.f32.mxu0 0.0
      %5554 = vmatmul.mubr.f32.gmra.mrb[0].mxu0 %v5484
      %v5555 = vpop.f32.mrb[0].mxu0
      %v5556 = vadd.f32 0.0, %v5555
      %v5557 = vpop.f32.mrb[0].mxu0
      %5558 = vmatprep.mubr.f32.mxu0 0.0
      %5559 = vmatmul.mubr.f32.gmra.mrb[0].mxu0 %v5487
      %v5560 = vpop.f32.mrb[0].mxu0
      %v5561 = vadd.f32 0.0, %v5560
      %v5562 = vpop.f32.mrb[0].mxu0
      %5563 = vdwg.mxu0
      %v5564 = vadd.f32 %v5471, %v5556
      %v5565 = vadd.f32 %v5476, %v5561
      %5568 = vrot.lane.b32.xlu0 %v5564, 8
      %v5569 = vpop.permute.xlu0 %5568
      %5570 = vrot.lane.b32.xlu0 %v5565, 8
      %v5571 = vpop.permute.xlu0 %5570
      %v5574 = vsel %vm1545, %v5327, %v5569
      %v5575 = vsel %vm1545, %v5328, %v5571
      %s5576 = scalar_lea.vmem %s197, 496
      %v5577 = vld [vmem:[%s5576] sm:$0xff]
      %v5578 = vld [vmem:[%s5576 + $0x8] sm:$0xff]
      %v5579 = vsub.f32 %v5577, %v5574
      %v5580 = vsub.f32 %v5578, %v5575
      %5581 = vst.msk [vmem:[%s5576] sm:$0xff] %vm1611, %v5579
      %5582 = vst.msk [vmem:[%s5576 + $0x8] sm:$0xff] %vm1611, %v5580
      %v5583 = vld [vmem:[%s5050 + $0x1] sm:$0x1]
      %v5584 = vld [vmem:[%s2666] sm:$0xf]
      %v5586 = vsel %vm1512, %v5583, 0
      %v5589 = vsel %vm2141, %v5584, 0
      %5591 = vmatprep.subr.mxu0 0.0
      %5592 = vmatpush1.msra.mxu0 %v5589
      %5593 = vmatprep.subr.mxu0 0.0
      %5594 = vmatpush1.msra.mxu0 0.0
      %5595 = vmatprep.subr.mxu0 0.0
      %5596 = vmatpush1.msra.mxu0 0.0
      %5597 = vmatprep.subr.mxu0 0.0
      %5598 = vmatpush1.msra.mxu0 0.0
      %5599 = vmatprep.subr.mxu0 0.0
      %5600 = vmatpush1.msra.mxu0 0.0
      %5601 = vmatprep.subr.mxu0 0.0
      %5602 = vmatpush1.msra.mxu0 0.0
      %5603 = vmatprep.subr.mxu0 0.0
      %5604 = vmatpush1.msra.mxu0 0.0
      %5605 = vmatprep.subr.mxu0 0.0
      %5606 = vmatpush1.msra.mxu0 0.0
      %5607 = vmatprep.subr.mxu0 0.0
      %5608 = vmatpush1.msra.mxu0 0.0
      %5609 = vmatprep.subr.mxu0 0.0
      %5610 = vmatpush1.msra.mxu0 0.0
      %5611 = vmatprep.subr.mxu0 0.0
      %5612 = vmatpush1.msra.mxu0 0.0
      %5613 = vmatprep.subr.mxu0 0.0
      %5614 = vmatpush1.msra.mxu0 0.0
      %5615 = vmatprep.subr.mxu0 0.0
      %5616 = vmatpush1.msra.mxu0 0.0
      %5617 = vmatprep.subr.mxu0 0.0
      %5618 = vmatpush1.msra.mxu0 0.0
      %5619 = vmatprep.subr.mxu0 0.0
      %5620 = vmatpush1.msra.mxu0 0.0
      %5621 = vmatprep.subr.mxu0 0.0
      %5622 = vmatpush1.msra.mxu0 0.0
      %5623 = vmatprep.subr.mxu0 0.0
      %5624 = vmatpush1.msra.mxu0 0.0
      %5625 = vmatprep.subr.mxu0 0.0
      %5626 = vmatpush1.msra.mxu0 0.0
      %5627 = vmatprep.subr.mxu0 0.0
      %5628 = vmatpush1.msra.mxu0 0.0
      %5629 = vmatprep.subr.mxu0 0.0
      %5630 = vmatpush1.msra.mxu0 0.0
      %5631 = vmatprep.subr.mxu0 0.0
      %5632 = vmatpush1.msra.mxu0 0.0
      %5633 = vmatprep.subr.mxu0 0.0
      %5634 = vmatpush1.msra.mxu0 0.0
      %5635 = vmatprep.subr.mxu0 0.0
      %5636 = vmatpush1.msra.mxu0 0.0
      %5637 = vmatprep.subr.mxu0 0.0
      %5638 = vmatpush1.msra.mxu0 0.0
      %5639 = vmatprep.subr.mxu0 0.0
      %5640 = vmatpush1.msra.mxu0 0.0
      %5641 = vmatprep.subr.mxu0 0.0
      %5642 = vmatpush1.msra.mxu0 0.0
      %5643 = vmatprep.subr.mxu0 0.0
      %5644 = vmatpush1.msra.mxu0 0.0
      %5645 = vmatprep.subr.mxu0 0.0
      %5646 = vmatpush1.msra.mxu0 0.0
      %5647 = vmatprep.subr.mxu0 0.0
      %5648 = vmatpush1.msra.mxu0 0.0
      %5649 = vmatprep.subr.mxu0 0.0
      %5650 = vmatpush1.msra.mxu0 0.0
      %5651 = vmatprep.subr.mxu0 0.0
      %5652 = vmatpush1.msra.mxu0 0.0
      %5653 = vmatprep.subr.mxu0 0.0
      %5654 = vmatpush1.msra.mxu0 0.0
      %5655 = vmatprep.mubr.f32.mxu0 0.0
      %5656 = vmatmul.mubr.f32.gmra.mrb[0].mxu0 %v5586
      %v5657 = vpop.f32.mrb[0].mxu0
      %v5658 = vadd.f32 0.0, %v5657
      %v5659 = vpop.f32.mrb[0].mxu0
      %5660 = vdwg.mxu0
      %v5661 = vld [vmem:[%s5050 + $0x10] sm:$0x1]
      %v5662 = vld [vmem:[%s3038] sm:$0xf]
      %v5664 = vsel %vm1512, %v5661, 0
      %v5667 = vsel %vm2141, %v5662, 0
      %5669 = vmatprep.subr.mxu0 0.0
      %5670 = vmatpush1.msra.mxu0 %v5667
      %5671 = vmatprep.subr.mxu0 0.0
      %5672 = vmatpush1.msra.mxu0 0.0
      %5673 = vmatprep.subr.mxu0 0.0
      %5674 = vmatpush1.msra.mxu0 0.0
      %5675 = vmatprep.subr.mxu0 0.0
      %5676 = vmatpush1.msra.mxu0 0.0
      %5677 = vmatprep.subr.mxu0 0.0
      %5678 = vmatpush1.msra.mxu0 0.0
      %5679 = vmatprep.subr.mxu0 0.0
      %5680 = vmatpush1.msra.mxu0 0.0
      %5681 = vmatprep.subr.mxu0 0.0
      %5682 = vmatpush1.msra.mxu0 0.0
      %5683 = vmatprep.subr.mxu0 0.0
      %5684 = vmatpush1.msra.mxu0 0.0
      %5685 = vmatprep.subr.mxu0 0.0
      %5686 = vmatpush1.msra.mxu0 0.0
      %5687 = vmatprep.subr.mxu0 0.0
      %5688 = vmatpush1.msra.mxu0 0.0
      %5689 = vmatprep.subr.mxu0 0.0
      %5690 = vmatpush1.msra.mxu0 0.0
      %5691 = vmatprep.subr.mxu0 0.0
      %5692 = vmatpush1.msra.mxu0 0.0
      %5693 = vmatprep.subr.mxu0 0.0
      %5694 = vmatpush1.msra.mxu0 0.0
      %5695 = vmatprep.subr.mxu0 0.0
      %5696 = vmatpush1.msra.mxu0 0.0
      %5697 = vmatprep.subr.mxu0 0.0
      %5698 = vmatpush1.msra.mxu0 0.0
      %5699 = vmatprep.subr.mxu0 0.0
      %5700 = vmatpush1.msra.mxu0 0.0
      %5701 = vmatprep.subr.mxu0 0.0
      %5702 = vmatpush1.msra.mxu0 0.0
      %5703 = vmatprep.subr.mxu0 0.0
      %5704 = vmatpush1.msra.mxu0 0.0
      %5705 = vmatprep.subr.mxu0 0.0
      %5706 = vmatpush1.msra.mxu0 0.0
      %5707 = vmatprep.subr.mxu0 0.0
      %5708 = vmatpush1.msra.mxu0 0.0
      %5709 = vmatprep.subr.mxu0 0.0
      %5710 = vmatpush1.msra.mxu0 0.0
      %5711 = vmatprep.subr.mxu0 0.0
      %5712 = vmatpush1.msra.mxu0 0.0
      %5713 = vmatprep.subr.mxu0 0.0
      %5714 = vmatpush1.msra.mxu0 0.0
      %5715 = vmatprep.subr.mxu0 0.0
      %5716 = vmatpush1.msra.mxu0 0.0
      %5717 = vmatprep.subr.mxu0 0.0
      %5718 = vmatpush1.msra.mxu0 0.0
      %5719 = vmatprep.subr.mxu0 0.0
      %5720 = vmatpush1.msra.mxu0 0.0
      %5721 = vmatprep.subr.mxu0 0.0
      %5722 = vmatpush1.msra.mxu0 0.0
      %5723 = vmatprep.subr.mxu0 0.0
      %5724 = vmatpush1.msra.mxu0 0.0
      %5725 = vmatprep.subr.mxu0 0.0
      %5726 = vmatpush1.msra.mxu0 0.0
      %5727 = vmatprep.subr.mxu0 0.0
      %5728 = vmatpush1.msra.mxu0 0.0
      %5729 = vmatprep.subr.mxu0 0.0
      %5730 = vmatpush1.msra.mxu0 0.0
      %5731 = vmatprep.subr.mxu0 0.0
      %5732 = vmatpush1.msra.mxu0 0.0
      %5733 = vmatprep.mubr.f32.mxu0 0.0
      %5734 = vmatmul.mubr.f32.gmra.mrb[0].mxu0 %v5664
      %v5735 = vpop.f32.mrb[0].mxu0
      %v5736 = vadd.f32 0.0, %v5735
      %v5737 = vpop.f32.mrb[0].mxu0
      %5738 = vdwg.mxu0
      %v5739 = vld [vmem:[%s5576] sm:$0x1]
      %v5740 = vadd.f32 %v5739, %v5658
      %5741 = vst.msk [vmem:[%s5576] sm:$0x1] %vm3217, %v5740
      %v5742 = vld [vmem:[%s5576 + $0xf] sm:$0x1]
      %5744 = vrot.lane.b32.xlu0 %v5736, 8
      %v5745 = vpop.permute.xlu0 %5744
      %v5747 = vadd.f32 %v5742, %v5745
      %5748 = vst.msk [vmem:[%s5576 + $0xf] sm:$0x1] %vm3330, %v5747
      %p5749 = scmp.lt.s32.totalorder %s15, 1
      %s5750 = scalar_select %p5749, %s15, 1
      %s5751 = smul.addr %s5750, 64
      %s5752 = smul.addr %s5751, 8
      %s5753 = scalar_lea.vmem %s4, %s5752
      // Predicated region
      $region37: #{upsample_conv.1} parent=35 // pred_check
        %p5754 = pneg %p122
      $region38: #{upsample_conv.1} parent=35 // pred_check_branch
        %5756 = sbr.rel (%p5754) target = $region40
      $region39: #{upsample_conv.1} parent=35 // pred_region
        _
      $region40: #{upsample_conv.1} parent=35 // pred_fallthru
        _
    $region36: #{upsample_conv.1} parent=5 // pred_fallthru
      _
    %p5757 = scmp.le.s32.totalorder 2, %s10
    // Predicated region
    $region41: #{upsample_conv.1} parent=5 // pred_check
      %p5758 = pneg %p5757
    $region42: #{upsample_conv.1} parent=5 // pred_check_branch
      %5760 = sbr.rel (%p5758) target = $region44
    $region43: #{upsample_conv.1} parent=5 // pred_region
      %s5761 = ssub.s32 %s10, 2
      // Predicated region
      $region45: #{upsample_conv.1} parent=43 // pred_check
        %p5762 = pneg %p128
      $region46: #{upsample_conv.1} parent=43 // pred_check_branch
        %5764 = sbr.rel (%p5762) target = $region48
      $region47: #{upsample_conv.1} parent=43 // pred_region
        %p5765 = scmp.lt.s32.totalorder %s16, 1
        %s5766 = scalar_select %p5765, %s16, 1
        %s5767 = smul.addr %s5766, 64
        %s5768 = smul.addr %s5767, 8
        %s5769 = scalar_lea.vmem %s4, %s5768
      $region48: #{upsample_conv.1} parent=43 // pred_fallthru
        _
    $region44: #{upsample_conv.1} parent=5 // pred_fallthru
      _
  $region6: #{upsample_conv.1} parent=0 // loop_footer
    %s14 = sadd.s32 1, %s10
  $region7: #{upsample_conv.1} parent=0 // loop_footer_branch
    %9 = sbr.rel target = $region3
  $region8: #{upsample_conv.1} parent=0 // loop_exit
    _

</llo_original>
